<compile_context>
chip_gen: v7x
topology: tpu7x:2x2x1
jax: 0.10.0
libtpu: 0.0.40
codegen_flags: <defaults>
</compile_context>

<pallas_src>
import jax
import jax.numpy as jnp
from jax.experimental import pallas as pl
from jax.experimental.pallas import tpu as pltpu

LN_EPS = 1e-5  # PyTorch nn.LayerNorm default


def re_unit_kernel(h_i_ref, xb_ref, mask_i_ref, mask_all_ref,
                   w1a_ref, gamma_ref, beta_ref, w2_ref, b2_ref, out_ref):
    TI, B, D = h_i_ref.shape          # D = 4*H
    L = xb_ref.shape[0]
    H = w1a_ref.shape[1]
    R = w2_ref.shape[1]

    # Per-i part of hid2hid on the MXU (bf16 x bf16 -> f32 accumulation).
    xa = jnp.dot(h_i_ref[...].reshape(TI * B, D), w1a_ref[...],
                 preferred_element_type=jnp.float32).reshape(TI, B, H)

    # Combine with the hoisted, i-independent term:
    #   x[i', j, b] = h_i[i', b] @ W1a + (h_re[j, b] @ W1b + h_global[b] @ W1c + b1)
    x = xa[:, None, :, :] + xb_ref[...][None, :, :, :]          # (TI, L, B, H) f32

    # LayerNorm over the hidden axis (f32).
    mu = jnp.mean(x, axis=-1, keepdims=True)
    var = jnp.mean((x - mu) ** 2, axis=-1, keepdims=True)
    x = (x - mu) * jax.lax.rsqrt(var + LN_EPS)
    x = x * gamma_ref[...] + beta_ref[...]

    # Dropout is identity in eval mode; ELU (alpha = 1).  min() keeps the
    # unselected exp() branch finite for large positive x.
    x = jnp.where(x > 0, x, jnp.exp(jnp.minimum(x, 0.0)) - 1.0)

    # hid2rel + sigmoid (bf16 matmul, f32 accumulation).
    logits = jnp.dot(x.reshape(TI * L * B, H).astype(jnp.bfloat16), w2_ref[...],
                     preferred_element_type=jnp.float32) + b2_ref[...]
    re = jax.nn.sigmoid(logits).reshape(TI, L, B, R)            # (TI, L, B, R)

    # mask[i, b] * mask[j, b]
    m = mask_i_ref[...][:, None, :, None] * mask_all_ref[...][None, :, :, None]
    out_ref[...] = re * m


def re_unit_forward(h_re, mask, w1, b1, gamma, beta, w2, b2, *, block_i=8):
    L, B, D = h_re.shape
    H = w1.shape[1]
    R = w2.shape[1]
    assert w1.shape[0] == 3 * D, "hid2hid expects the [h_i, h_j, h_global] concat"

    # Largest divisor of L that is <= requested block size.
    block_i = min(block_i, L)
    while L % block_i:
        block_i -= 1

    bf16 = jnp.bfloat16
    w1a = w1[:D].astype(bf16)          # acts on h_re[i]
    w1b = w1[D:2 * D].astype(bf16)     # acts on h_re[j]
    w1c = w1[2 * D:].astype(bf16)      # acts on h_global
    h_bf = h_re.astype(bf16)

    # Hoisted, i-independent work (done once, not per grid step):
    #   global max over length + the j/global/bias part of hid2hid.
    h_global = jnp.max(h_re, axis=0)                                     # (B, D)
    xb = (jnp.dot(h_bf.reshape(L * B, D), w1b,
                  preferred_element_type=jnp.float32).reshape(L, B, H)
          + jnp.dot(h_global.astype(bf16), w1c,
                    preferred_element_type=jnp.float32)[None]
          + b1.reshape(1, 1, H).astype(jnp.float32))                     # (L, B, H) f32

    grid = (L // block_i,)
    in_specs = [
        pl.BlockSpec((block_i, B, D), lambda i: (i, 0, 0)),   # h_re i-block (bf16)
        pl.BlockSpec((L, B, H), lambda i: (0, 0, 0)),         # hoisted term (resident)
        pl.BlockSpec((block_i, B), lambda i: (i, 0)),         # mask rows for i
        pl.BlockSpec((L, B), lambda i: (0, 0)),               # mask (full, for j)
        pl.BlockSpec((D, H), lambda i: (0, 0)),               # W1a (bf16)
        pl.BlockSpec((1, H), lambda i: (0, 0)),               # LN gamma
        pl.BlockSpec((1, H), lambda i: (0, 0)),               # LN beta
        pl.BlockSpec((H, R), lambda i: (0, 0)),               # hid2rel weight (bf16)
        pl.BlockSpec((1, R), lambda i: (0, 0)),               # hid2rel bias
    ]
    out_specs = pl.BlockSpec((block_i, L, B, R), lambda i: (i, 0, 0, 0))

    return pl.pallas_call(
        re_unit_kernel,
        grid=grid,
        in_specs=in_specs,
        out_specs=out_specs,
        out_shape=jax.ShapeDtypeStruct((L, L, B, R), jnp.float32),
        compiler_params=pltpu.CompilerParams(
            dimension_semantics=("parallel",),
            vmem_limit_bytes=32 * 1024 * 1024),
    )(h_bf, xb, mask, mask, w1a, gamma, beta, w2.astype(bf16), b2)


def re_unit_reference(h_re, mask, w1, b1, gamma, beta, w2, b2):
    """Pure-JAX (f32) mirror of the PyTorch forward (eval mode)."""
    L, B, D = h_re.shape
    R = w2.shape[1]
    h_global = jnp.max(h_re, axis=0)                                   # (B, D)
    hg = jnp.broadcast_to(h_global[None, None], (L, L, B, D))
    r1 = jnp.broadcast_to(h_re[:, None], (L, L, B, D))
    r2 = jnp.broadcast_to(h_re[None, :], (L, L, B, D))
    re = jnp.concatenate([r1, r2, hg], axis=-1)                        # (L, L, B, 12H)
    x = re @ w1 + b1[0]
    mu = x.mean(-1, keepdims=True)
    var = ((x - mu) ** 2).mean(-1, keepdims=True)
    x = (x - mu) / jnp.sqrt(var + LN_EPS) * gamma[0] + beta[0]
    x = jnp.where(x > 0, x, jnp.exp(jnp.minimum(x, 0.0)) - 1.0)
    x = jax.nn.sigmoid(x @ w2 + b2[0])                                 # (L, L, B, R)
    m = mask[:, None, :, None] * mask[None, :, :, None]                # (L, L, B, 1)
    return x * jnp.broadcast_to(m, (L, L, B, R))


if __name__ == "__main__":
    # Small shapes implied by the module: seq length L, batch B, hidden H,
    # relation count R; h_re feature size is 4*H (so the concat is 12*H).
    # L is chosen so the blocked grid has an even number of steps (2 TCs on v7x).
    L, B, H, R = 16, 2, 32, 5
    D = 4 * H

    key = jax.random.PRNGKey(0)
    ks = jax.random.split(key, 6)

    h_re = jax.random.normal(ks[0], (L, B, D), jnp.float32)
    mask = (jax.random.uniform(ks[1], (L, B)) > 0.2).astype(jnp.float32)

    # Deterministic synthetic parameters (stored as (in, out) so y = x @ W + b).
    w1 = jax.random.normal(ks[2], (12 * H, H), jnp.float32) * (1.0 / jnp.sqrt(12 * H))
    b1 = jax.random.normal(ks[3], (1, H), jnp.float32) * 0.01
    gamma = jnp.ones((1, H), jnp.float32)
    beta = jnp.zeros((1, H), jnp.float32)
    w2 = jax.random.normal(ks[4], (H, R), jnp.float32) * (1.0 / jnp.sqrt(H))
    b2 = jax.random.normal(ks[5], (1, R), jnp.float32) * 0.01

    out = re_unit_forward(h_re, mask, w1, b1, gamma, beta, w2, b2, block_i=8)
    out = jax.block_until_ready(out)

    ref = re_unit_reference(h_re, mask, w1, b1, gamma, beta, w2, b2)
    assert out.shape == (L, L, B, R)
    # Matmuls run in bf16 (f32 accumulation); sigmoid outputs differ from the
    # pure-f32 reference by ~1e-3, so the tolerance is loosened accordingly.
    assert jnp.allclose(out, ref, atol=2e-2, rtol=2e-2), "mismatch vs pure-JAX reference"

    print("KERNEL_OK")
</pallas_src>

<mosaic_0001>
module attributes {stable_mosaic.version = 11 : i64} {
  func.func @re_unit_kernel(%arg0: i32, %arg1: memref<8x2x128xbf16, #tpu.memory_space<vmem>>, %arg2: memref<16x2x32xf32, #tpu.memory_space<vmem>>, %arg3: memref<8x2xf32, #tpu.memory_space<vmem>>, %arg4: memref<16x2xf32, #tpu.memory_space<vmem>>, %arg5: memref<128x32xbf16, #tpu.memory_space<vmem>>, %arg6: memref<1x32xf32, #tpu.memory_space<vmem>>, %arg7: memref<1x32xf32, #tpu.memory_space<vmem>>, %arg8: memref<32x5xbf16, #tpu.memory_space<vmem>>, %arg9: memref<1x5xf32, #tpu.memory_space<vmem>>, %arg10: memref<8x16x2x5xf32, #tpu.memory_space<vmem>>) attributes {dimension_semantics = [#tpu.dimension_semantics<parallel>], iteration_bounds = array<i64: 2>, scalar_prefetch = 0 : i64, scratch_operands = 0 : i64, tpu.core_type = #tpu.core_type<tc>, window_params = [{transform_indices = @transform_0, window_bounds = array<i64: 8, 2, 128>}, {pipeline_mode = #tpu.pipeline_mode<synchronous>, transform_indices = @transform_1, window_bounds = array<i64: 16, 2, 32>}, {transform_indices = @transform_2, window_bounds = array<i64: 8, 2>}, {pipeline_mode = #tpu.pipeline_mode<synchronous>, transform_indices = @transform_3, window_bounds = array<i64: 16, 2>}, {pipeline_mode = #tpu.pipeline_mode<synchronous>, transform_indices = @transform_4, window_bounds = array<i64: 128, 32>}, {pipeline_mode = #tpu.pipeline_mode<synchronous>, transform_indices = @transform_5, window_bounds = array<i64: 1, 32>}, {pipeline_mode = #tpu.pipeline_mode<synchronous>, transform_indices = @transform_6, window_bounds = array<i64: 1, 32>}, {pipeline_mode = #tpu.pipeline_mode<synchronous>, transform_indices = @transform_7, window_bounds = array<i64: 32, 5>}, {pipeline_mode = #tpu.pipeline_mode<synchronous>, transform_indices = @transform_8, window_bounds = array<i64: 1, 5>}, {transform_indices = @transform_9, window_bounds = array<i64: 8, 16, 2, 5>}]} {
    %c0 = arith.constant 0 : index
    %c0_0 = arith.constant 0 : index
    %c0_1 = arith.constant 0 : index
    %0 = vector.load %arg1[%c0, %c0_0, %c0_1] : memref<8x2x128xbf16, #tpu.memory_space<vmem>>, vector<8x2x128xbf16>
    %1 = vector.shape_cast %0 : vector<8x2x128xbf16> to vector<16x128xbf16>
    %c0_2 = arith.constant 0 : index
    %c0_3 = arith.constant 0 : index
    %2 = vector.load %arg5[%c0_2, %c0_3] : memref<128x32xbf16, #tpu.memory_space<vmem>>, vector<128x32xbf16>
    %cst = arith.constant dense<0.000000e+00> : vector<16x32xf32>
    %3 = tpu.matmul %1, %2, %cst {dimension_numbers = #tpu.dot_dimension_numbers<[1], [0], [0], [1], [0, 0, 1, 1], [], []>} : vector<16x128xbf16>, vector<128x32xbf16>, vector<16x32xf32> -> vector<16x32xf32>
    %4 = vector.shape_cast %3 : vector<16x32xf32> to vector<8x2x32xf32>
    %5 = vector.shape_cast %4 : vector<8x2x32xf32> to vector<8x1x2x32xf32>
    %c0_4 = arith.constant 0 : index
    %c0_5 = arith.constant 0 : index
    %c0_6 = arith.constant 0 : index
    %6 = vector.load %arg2[%c0_4, %c0_5, %c0_6] : memref<16x2x32xf32, #tpu.memory_space<vmem>>, vector<16x2x32xf32>
    %7 = vector.shape_cast %6 : vector<16x2x32xf32> to vector<1x16x2x32xf32>
    %8 = vector.broadcast %5 : vector<8x1x2x32xf32> to vector<8x16x2x32xf32>
    %9 = vector.broadcast %7 : vector<1x16x2x32xf32> to vector<8x16x2x32xf32>
    %10 = arith.addf %8, %9 : vector<8x16x2x32xf32>
    %cst_7 = arith.constant dense<0.000000e+00> : vector<8x16x2xf32>
    %11 = vector.multi_reduction <add>, %10, %cst_7 [3] : vector<8x16x2x32xf32> to vector<8x16x2xf32>
    %12 = vector.shape_cast %11 : vector<8x16x2xf32> to vector<8x16x2x1xf32>
    %cst_8 = arith.constant 3.200000e+01 : f32
    %13 = vector.broadcast %cst_8 : f32 to vector<8x16x2x1xf32>
    %14 = arith.divf %12, %13 : vector<8x16x2x1xf32>
    %15 = vector.broadcast %14 : vector<8x16x2x1xf32> to vector<8x16x2x32xf32>
    %16 = arith.subf %10, %15 : vector<8x16x2x32xf32>
    %17 = arith.mulf %16, %16 : vector<8x16x2x32xf32>
    %cst_9 = arith.constant dense<0.000000e+00> : vector<8x16x2xf32>
    %18 = vector.multi_reduction <add>, %17, %cst_9 [3] : vector<8x16x2x32xf32> to vector<8x16x2xf32>
    %19 = vector.shape_cast %18 : vector<8x16x2xf32> to vector<8x16x2x1xf32>
    %cst_10 = arith.constant 3.200000e+01 : f32
    %20 = vector.broadcast %cst_10 : f32 to vector<8x16x2x1xf32>
    %21 = arith.divf %19, %20 : vector<8x16x2x1xf32>
    %22 = vector.broadcast %14 : vector<8x16x2x1xf32> to vector<8x16x2x32xf32>
    %23 = arith.subf %10, %22 : vector<8x16x2x32xf32>
    %cst_11 = arith.constant 9.99999974E-6 : f32
    %24 = vector.broadcast %cst_11 : f32 to vector<8x16x2x1xf32>
    %25 = arith.addf %21, %24 : vector<8x16x2x1xf32>
    %26 = math.rsqrt %25 : vector<8x16x2x1xf32>
    %27 = vector.broadcast %26 : vector<8x16x2x1xf32> to vector<8x16x2x32xf32>
    %28 = arith.mulf %23, %27 : vector<8x16x2x32xf32>
    %c0_12 = arith.constant 0 : index
    %c0_13 = arith.constant 0 : index
    %29 = vector.load %arg6[%c0_12, %c0_13] : memref<1x32xf32, #tpu.memory_space<vmem>>, vector<1x32xf32>
    %30 = vector.shape_cast %29 : vector<1x32xf32> to vector<1x1x1x32xf32>
    %31 = vector.broadcast %30 : vector<1x1x1x32xf32> to vector<8x16x2x32xf32>
    %32 = arith.mulf %28, %31 : vector<8x16x2x32xf32>
    %c0_14 = arith.constant 0 : index
    %c0_15 = arith.constant 0 : index
    %33 = vector.load %arg7[%c0_14, %c0_15] : memref<1x32xf32, #tpu.memory_space<vmem>>, vector<1x32xf32>
    %34 = vector.shape_cast %33 : vector<1x32xf32> to vector<1x1x1x32xf32>
    %35 = vector.broadcast %34 : vector<1x1x1x32xf32> to vector<8x16x2x32xf32>
    %36 = arith.addf %32, %35 : vector<8x16x2x32xf32>
    %cst_16 = arith.constant 0.000000e+00 : f32
    %37 = vector.broadcast %cst_16 : f32 to vector<8x16x2x32xf32>
    %38 = arith.cmpf ogt, %36, %37 : vector<8x16x2x32xf32>
    %cst_17 = arith.constant 0.000000e+00 : f32
    %39 = vector.broadcast %cst_17 : f32 to vector<8x16x2x32xf32>
    %40 = arith.minimumf %36, %39 : vector<8x16x2x32xf32>
    %41 = math.exp %40 : vector<8x16x2x32xf32>
    %cst_18 = arith.constant 1.000000e+00 : f32
    %42 = vector.broadcast %cst_18 : f32 to vector<8x16x2x32xf32>
    %43 = arith.subf %41, %42 : vector<8x16x2x32xf32>
    %44 = arith.select %38, %36, %43 : vector<8x16x2x32xi1>, vector<8x16x2x32xf32>
    %45 = vector.shape_cast %44 : vector<8x16x2x32xf32> to vector<256x32xf32>
    %46 = arith.truncf %45 : vector<256x32xf32> to vector<256x32xbf16>
    %c0_19 = arith.constant 0 : index
    %c0_20 = arith.constant 0 : index
    %47 = vector.load %arg8[%c0_19, %c0_20] : memref<32x5xbf16, #tpu.memory_space<vmem>>, vector<32x5xbf16>
    %cst_21 = arith.constant dense<0.000000e+00> : vector<256x5xf32>
    %48 = tpu.matmul %46, %47, %cst_21 {dimension_numbers = #tpu.dot_dimension_numbers<[1], [0], [0], [1], [0, 0, 1, 1], [], []>} : vector<256x32xbf16>, vector<32x5xbf16>, vector<256x5xf32> -> vector<256x5xf32>
    %c0_22 = arith.constant 0 : index
    %c0_23 = arith.constant 0 : index
    %49 = vector.load %arg9[%c0_22, %c0_23] : memref<1x5xf32, #tpu.memory_space<vmem>>, vector<1x5xf32>
    %50 = vector.broadcast %49 : vector<1x5xf32> to vector<256x5xf32>
    %51 = arith.addf %48, %50 : vector<256x5xf32>
    %52 = arith.negf %51 : vector<256x5xf32>
    %53 = math.exp %52 : vector<256x5xf32>
    %cst_24 = arith.constant 1.000000e+00 : f32
    %54 = vector.broadcast %cst_24 : f32 to vector<256x5xf32>
    %55 = arith.addf %54, %53 : vector<256x5xf32>
    %56 = arith.divf %54, %55 : vector<256x5xf32>
    %57 = vector.shape_cast %56 : vector<256x5xf32> to vector<8x16x2x5xf32>
    %c0_25 = arith.constant 0 : index
    %c0_26 = arith.constant 0 : index
    %58 = vector.load %arg3[%c0_25, %c0_26] : memref<8x2xf32, #tpu.memory_space<vmem>>, vector<8x2xf32>
    %59 = vector.shape_cast %58 : vector<8x2xf32> to vector<8x1x2x1xf32>
    %c0_27 = arith.constant 0 : index
    %c0_28 = arith.constant 0 : index
    %60 = vector.load %arg4[%c0_27, %c0_28] : memref<16x2xf32, #tpu.memory_space<vmem>>, vector<16x2xf32>
    %61 = vector.shape_cast %60 : vector<16x2xf32> to vector<1x16x2x1xf32>
    %62 = vector.broadcast %59 : vector<8x1x2x1xf32> to vector<8x16x2x1xf32>
    %63 = vector.broadcast %61 : vector<1x16x2x1xf32> to vector<8x16x2x1xf32>
    %64 = arith.mulf %62, %63 : vector<8x16x2x1xf32>
    %65 = vector.broadcast %64 : vector<8x16x2x1xf32> to vector<8x16x2x5xf32>
    %66 = arith.mulf %57, %65 : vector<8x16x2x5xf32>
    %c0_29 = arith.constant 0 : index
    %c0_30 = arith.constant 0 : index
    %c0_31 = arith.constant 0 : index
    %c0_32 = arith.constant 0 : index
    %67 = vector.load %arg10[%c0_29, %c0_30, %c0_31, %c0_32] : memref<8x16x2x5xf32, #tpu.memory_space<vmem>>, vector<8x16x2x5xf32>
    tpu.vector_store %arg10[%c0_29, %c0_30, %c0_31, %c0_32], %66 {strides = array<i32>} : memref<8x16x2x5xf32, #tpu.memory_space<vmem>>, vector<8x16x2x5xf32>,
    return
  }
  func.func @transform_0(%arg0: i32) -> (i32, i32, i32) {
    %c0_i32 = arith.constant 0 : i32
    %c0_i32_0 = arith.constant 0 : i32
    %c0_i32_1 = arith.constant 0 : i32
    return %arg0, %c0_i32, %c0_i32_0 : i32, i32, i32
  }
  func.func @transform_1(%arg0: i32) -> (i32, i32, i32) {
    %c0_i32 = arith.constant 0 : i32
    %c0_i32_0 = arith.constant 0 : i32
    %c0_i32_1 = arith.constant 0 : i32
    %c0_i32_2 = arith.constant 0 : i32
    return %c0_i32, %c0_i32_0, %c0_i32_1 : i32, i32, i32
  }
  func.func @transform_2(%arg0: i32) -> (i32, i32) {
    %c0_i32 = arith.constant 0 : i32
    %c0_i32_0 = arith.constant 0 : i32
    return %arg0, %c0_i32 : i32, i32
  }
  func.func @transform_3(%arg0: i32) -> (i32, i32) {
    %c0_i32 = arith.constant 0 : i32
    %c0_i32_0 = arith.constant 0 : i32
    %c0_i32_1 = arith.constant 0 : i32
    return %c0_i32, %c0_i32_0 : i32, i32
  }
  func.func @transform_4(%arg0: i32) -> (i32, i32) {
    %c0_i32 = arith.constant 0 : i32
    %c0_i32_0 = arith.constant 0 : i32
    %c0_i32_1 = arith.constant 0 : i32
    return %c0_i32, %c0_i32_0 : i32, i32
  }
  func.func @transform_5(%arg0: i32) -> (i32, i32) {
    %c0_i32 = arith.constant 0 : i32
    %c0_i32_0 = arith.constant 0 : i32
    %c0_i32_1 = arith.constant 0 : i32
    return %c0_i32, %c0_i32_0 : i32, i32
  }
  func.func @transform_6(%arg0: i32) -> (i32, i32) {
    %c0_i32 = arith.constant 0 : i32
    %c0_i32_0 = arith.constant 0 : i32
    %c0_i32_1 = arith.constant 0 : i32
    return %c0_i32, %c0_i32_0 : i32, i32
  }
  func.func @transform_7(%arg0: i32) -> (i32, i32) {
    %c0_i32 = arith.constant 0 : i32
    %c0_i32_0 = arith.constant 0 : i32
    %c0_i32_1 = arith.constant 0 : i32
    return %c0_i32, %c0_i32_0 : i32, i32
  }
  func.func @transform_8(%arg0: i32) -> (i32, i32) {
    %c0_i32 = arith.constant 0 : i32
    %c0_i32_0 = arith.constant 0 : i32
    %c0_i32_1 = arith.constant 0 : i32
    return %c0_i32, %c0_i32_0 : i32, i32
  }
  func.func @transform_9(%arg0: i32) -> (i32, i32, i32, i32) {
    %c0_i32 = arith.constant 0 : i32
    %c0_i32_0 = arith.constant 0 : i32
    %c0_i32_1 = arith.constant 0 : i32
    %c0_i32_2 = arith.constant 0 : i32
    return %arg0, %c0_i32, %c0_i32_0, %c0_i32_1 : i32, i32, i32, i32
  }
}

</mosaic_0001>

<llo_original>
// kernel: tpu_custom_call.1
$region0: #{tpu_custom_call.1}
  #allocation0 [shape = 'u32[]', space=smem, size = 0x4, offset = 0x4, fixed_abs, tag = 'smem constant byte address 0x4 - core index']
  #allocation1 [shape = 'u32[144,128]{1,0:T(1,128)}', space=vmem, size = 0x12000, scoped, tag = 'internal scratch']
  %s0 = inlined_call_operand.vmem [shape: bf16[16,2,128], index: 0, kind: input, shape index: {}]
  %s1 = inlined_call_operand.vmem [shape: f32[16,2,32], index: 1, kind: input, shape index: {}]
  %s2 = inlined_call_operand.vmem [shape: f32[16,2], index: 2, kind: input, shape index: {}]
  %s3 = inlined_call_operand.vmem [shape: f32[16,2], index: 3, kind: input, shape index: {}]
  %s4 = inlined_call_operand.vmem [shape: bf16[128,32], index: 4, kind: input, shape index: {}]
  %s5 = inlined_call_operand.vmem [shape: f32[1,32], index: 5, kind: input, shape index: {}]
  %s6 = inlined_call_operand.vmem [shape: f32[1,32], index: 6, kind: input, shape index: {}]
  %s7 = inlined_call_operand.vmem [shape: bf16[32,5], index: 7, kind: input, shape index: {}]
  %s8 = inlined_call_operand.vmem [shape: f32[1,5], index: 8, kind: input, shape index: {}]
  %s9 = inlined_call_operand.vmem [shape: f32[16,16,2,5], index: 9, kind: output, shape index: {}]
  %s10 = sld [smem:[#allocation0]]
  $region69: #{tpu_custom_call.1} parent=0
    _
  %s12 = ssub.s32 1, %s10
  %s13 = scalar_select 0, %s12, %s10
  loop: start=0, step=1, limit=4
  $region2: #{tpu_custom_call.1} parent=0 // loop_pre_header
    _
  $region3: #{tpu_custom_call.1} parent=0 // loop_header
    %s15 = sphi 0, %s19
    %p16 = scmp.ge.s32.totalorder %s15, 4
    %s25 = sphi 0, %s27
    %s28 = sphi 0, %s25
    %s29 = sphi 0, %s28
    %s45 = sphi 0, %s29
    %s49 = sphi 0, %s49
    %s51 = sphi 0, %s49
    %s52 = sphi 0, %s51
    %s66 = sphi 0, %s52
    %s72 = sphi 0, %s74
    %s75 = sphi 0, %s72
    %s76 = sphi 0, %s75
    %s92 = sphi 0, %s76
    %s96 = sphi 0, %s96
    %s98 = sphi 0, %s96
    %s99 = sphi 0, %s98
    %s113 = sphi 0, %s99
    %s117 = sphi 0, %s117
    %s119 = sphi 0, %s117
    %s120 = sphi 0, %s119
    %s134 = sphi 0, %s120
    %s138 = sphi 0, %s138
    %s140 = sphi 0, %s138
    %s141 = sphi 0, %s140
    %s155 = sphi 0, %s141
    %s159 = sphi 0, %s159
    %s161 = sphi 0, %s159
    %s162 = sphi 0, %s161
    %s176 = sphi 0, %s162
    %s180 = sphi 0, %s180
    %s182 = sphi 0, %s180
    %s183 = sphi 0, %s182
    %s197 = sphi 0, %s183
    %s201 = sphi 0, %s201
    %s203 = sphi 0, %s201
    %s204 = sphi 0, %s203
    %s218 = sphi 0, %s204
    %s224 = sphi 0, %s226
    %s227 = sphi 0, %s224
    %s228 = sphi 0, %s227
    %s244 = sphi 0, %s228
  $region4: #{tpu_custom_call.1} parent=0 // loop_header_branch
    %18 = sbr.rel (%p16) target = $region8
  $region5: #{tpu_custom_call.1} parent=0 // loop_body
    %s20 = ssub.s32 %s15, 1
    %s21 = ssub.s32 %s15, 2
    %s22 = sadd.s32 %s15, 1
    %s23 = ssub.s32 %s15, %s22
    %p24 = scmp.eq.s32.totalorder %s23, 0
    %s26 = sadd.s32 %s25, 1
    %s27 = scalar_select %p24, %s25, %s26
    %p30 = pneg %p24
    %p31 = scmp.eq.s32.totalorder %s15, 1
    %p32 = por %p30, %p31
    %p33 = scmp.ne.s32.totalorder %s25, %s28
    %p34 = scmp.eq.s32.totalorder %s15, 0
    %p35 = por %p33, %p34
    %p36 = scmp.ne.s32.totalorder %s25, %s28
    %p37 = scmp.eq.s32.totalorder %s20, 1
    %p38 = por %p36, %p37
    %p39 = scmp.ne.s32.totalorder %s28, %s29
    %p40 = scmp.eq.s32.totalorder %s20, 0
    %p41 = por %p39, %p40
    %p42 = scmp.ne.s32.totalorder %s28, %s29
    %p43 = scmp.eq.s32.totalorder %s21, 1
    %p44 = por %p42, %p43
    %p46 = scmp.ne.s32.totalorder %s29, %s45
    %p47 = scmp.eq.s32.totalorder %s21, 0
    %p48 = por %p46, %p47
    %s50 = sadd.s32 %s49, 1
    %p53 = scmp.eq.s32.totalorder %s15, 1
    %p54 = scmp.ne.s32.totalorder %s49, %s51
    %p55 = scmp.eq.s32.totalorder %s15, 0
    %p56 = por %p54, %p55
    %p57 = scmp.ne.s32.totalorder %s49, %s51
    %p58 = scmp.eq.s32.totalorder %s20, 1
    %p59 = por %p57, %p58
    %p60 = scmp.ne.s32.totalorder %s51, %s52
    %p61 = scmp.eq.s32.totalorder %s20, 0
    %p62 = por %p60, %p61
    %p63 = scmp.ne.s32.totalorder %s51, %s52
    %p64 = scmp.eq.s32.totalorder %s21, 1
    %p65 = por %p63, %p64
    %p67 = scmp.ne.s32.totalorder %s52, %s66
    %p68 = scmp.eq.s32.totalorder %s21, 0
    %p69 = por %p67, %p68
    %s70 = ssub.s32 %s15, %s22
    %p71 = scmp.eq.s32.totalorder %s70, 0
    %s73 = sadd.s32 %s72, 1
    %s74 = scalar_select %p71, %s72, %s73
    %p77 = pneg %p71
    %p78 = scmp.eq.s32.totalorder %s15, 1
    %p79 = por %p77, %p78
    %p80 = scmp.ne.s32.totalorder %s72, %s75
    %p81 = scmp.eq.s32.totalorder %s15, 0
    %p82 = por %p80, %p81
    %p83 = scmp.ne.s32.totalorder %s72, %s75
    %p84 = scmp.eq.s32.totalorder %s20, 1
    %p85 = por %p83, %p84
    %p86 = scmp.ne.s32.totalorder %s75, %s76
    %p87 = scmp.eq.s32.totalorder %s20, 0
    %p88 = por %p86, %p87
    %p89 = scmp.ne.s32.totalorder %s75, %s76
    %p90 = scmp.eq.s32.totalorder %s21, 1
    %p91 = por %p89, %p90
    %p93 = scmp.ne.s32.totalorder %s76, %s92
    %p94 = scmp.eq.s32.totalorder %s21, 0
    %p95 = por %p93, %p94
    %s97 = sadd.s32 %s96, 1
    %p100 = scmp.eq.s32.totalorder %s15, 1
    %p101 = scmp.ne.s32.totalorder %s96, %s98
    %p102 = scmp.eq.s32.totalorder %s15, 0
    %p103 = por %p101, %p102
    %p104 = scmp.ne.s32.totalorder %s96, %s98
    %p105 = scmp.eq.s32.totalorder %s20, 1
    %p106 = por %p104, %p105
    %p107 = scmp.ne.s32.totalorder %s98, %s99
    %p108 = scmp.eq.s32.totalorder %s20, 0
    %p109 = por %p107, %p108
    %p110 = scmp.ne.s32.totalorder %s98, %s99
    %p111 = scmp.eq.s32.totalorder %s21, 1
    %p112 = por %p110, %p111
    %p114 = scmp.ne.s32.totalorder %s99, %s113
    %p115 = scmp.eq.s32.totalorder %s21, 0
    %p116 = por %p114, %p115
    %s118 = sadd.s32 %s117, 1
    %p121 = scmp.eq.s32.totalorder %s15, 1
    %p122 = scmp.ne.s32.totalorder %s117, %s119
    %p123 = scmp.eq.s32.totalorder %s15, 0
    %p124 = por %p122, %p123
    %p125 = scmp.ne.s32.totalorder %s117, %s119
    %p126 = scmp.eq.s32.totalorder %s20, 1
    %p127 = por %p125, %p126
    %p128 = scmp.ne.s32.totalorder %s119, %s120
    %p129 = scmp.eq.s32.totalorder %s20, 0
    %p130 = por %p128, %p129
    %p131 = scmp.ne.s32.totalorder %s119, %s120
    %p132 = scmp.eq.s32.totalorder %s21, 1
    %p133 = por %p131, %p132
    %p135 = scmp.ne.s32.totalorder %s120, %s134
    %p136 = scmp.eq.s32.totalorder %s21, 0
    %p137 = por %p135, %p136
    %s139 = sadd.s32 %s138, 1
    %p142 = scmp.eq.s32.totalorder %s15, 1
    %p143 = scmp.ne.s32.totalorder %s138, %s140
    %p144 = scmp.eq.s32.totalorder %s15, 0
    %p145 = por %p143, %p144
    %p146 = scmp.ne.s32.totalorder %s138, %s140
    %p147 = scmp.eq.s32.totalorder %s20, 1
    %p148 = por %p146, %p147
    %p149 = scmp.ne.s32.totalorder %s140, %s141
    %p150 = scmp.eq.s32.totalorder %s20, 0
    %p151 = por %p149, %p150
    %p152 = scmp.ne.s32.totalorder %s140, %s141
    %p153 = scmp.eq.s32.totalorder %s21, 1
    %p154 = por %p152, %p153
    %p156 = scmp.ne.s32.totalorder %s141, %s155
    %p157 = scmp.eq.s32.totalorder %s21, 0
    %p158 = por %p156, %p157
    %s160 = sadd.s32 %s159, 1
    %p163 = scmp.eq.s32.totalorder %s15, 1
    %p164 = scmp.ne.s32.totalorder %s159, %s161
    %p165 = scmp.eq.s32.totalorder %s15, 0
    %p166 = por %p164, %p165
    %p167 = scmp.ne.s32.totalorder %s159, %s161
    %p168 = scmp.eq.s32.totalorder %s20, 1
    %p169 = por %p167, %p168
    %p170 = scmp.ne.s32.totalorder %s161, %s162
    %p171 = scmp.eq.s32.totalorder %s20, 0
    %p172 = por %p170, %p171
    %p173 = scmp.ne.s32.totalorder %s161, %s162
    %p174 = scmp.eq.s32.totalorder %s21, 1
    %p175 = por %p173, %p174
    %p177 = scmp.ne.s32.totalorder %s162, %s176
    %p178 = scmp.eq.s32.totalorder %s21, 0
    %p179 = por %p177, %p178
    %s181 = sadd.s32 %s180, 1
    %p184 = scmp.eq.s32.totalorder %s15, 1
    %p185 = scmp.ne.s32.totalorder %s180, %s182
    %p186 = scmp.eq.s32.totalorder %s15, 0
    %p187 = por %p185, %p186
    %p188 = scmp.ne.s32.totalorder %s180, %s182
    %p189 = scmp.eq.s32.totalorder %s20, 1
    %p190 = por %p188, %p189
    %p191 = scmp.ne.s32.totalorder %s182, %s183
    %p192 = scmp.eq.s32.totalorder %s20, 0
    %p193 = por %p191, %p192
    %p194 = scmp.ne.s32.totalorder %s182, %s183
    %p195 = scmp.eq.s32.totalorder %s21, 1
    %p196 = por %p194, %p195
    %p198 = scmp.ne.s32.totalorder %s183, %s197
    %p199 = scmp.eq.s32.totalorder %s21, 0
    %p200 = por %p198, %p199
    %s202 = sadd.s32 %s201, 1
    %p205 = scmp.eq.s32.totalorder %s15, 1
    %p206 = scmp.ne.s32.totalorder %s201, %s203
    %p207 = scmp.eq.s32.totalorder %s15, 0
    %p208 = por %p206, %p207
    %p209 = scmp.ne.s32.totalorder %s201, %s203
    %p210 = scmp.eq.s32.totalorder %s20, 1
    %p211 = por %p209, %p210
    %p212 = scmp.ne.s32.totalorder %s203, %s204
    %p213 = scmp.eq.s32.totalorder %s20, 0
    %p214 = por %p212, %p213
    %p215 = scmp.ne.s32.totalorder %s203, %s204
    %p216 = scmp.eq.s32.totalorder %s21, 1
    %p217 = por %p215, %p216
    %p219 = scmp.ne.s32.totalorder %s204, %s218
    %p220 = scmp.eq.s32.totalorder %s21, 0
    %p221 = por %p219, %p220
    %s222 = ssub.s32 %s15, %s22
    %p223 = scmp.eq.s32.totalorder %s222, 0
    %s225 = sadd.s32 %s224, 1
    %s226 = scalar_select %p223, %s224, %s225
    %p229 = pneg %p223
    %p230 = scmp.eq.s32.totalorder %s15, 1
    %p231 = por %p229, %p230
    %p232 = scmp.ne.s32.totalorder %s224, %s227
    %p233 = scmp.eq.s32.totalorder %s15, 0
    %p234 = por %p232, %p233
    %p235 = scmp.ne.s32.totalorder %s224, %s227
    %p236 = scmp.eq.s32.totalorder %s20, 1
    %p237 = por %p235, %p236
    %p238 = scmp.ne.s32.totalorder %s227, %s228
    %p239 = scmp.eq.s32.totalorder %s20, 0
    %p240 = por %p238, %p239
    %p241 = scmp.ne.s32.totalorder %s227, %s228
    %p242 = scmp.eq.s32.totalorder %s21, 1
    %p243 = por %p241, %p242
    %p245 = scmp.ne.s32.totalorder %s228, %s244
    %p246 = scmp.eq.s32.totalorder %s21, 0
    %p247 = por %p245, %p246
    %p248 = scmp.le.s32.totalorder 1, %s15
    %p249 = scmp.lt.s32.totalorder %s15, 3
    %p250 = pnand %p248, %p249
    %p251 = pneg %p250
    // Predicated region
    $region9: #{tpu_custom_call.1} parent=5 // pred_check
      _
    $region10: #{tpu_custom_call.1} parent=5 // pred_check_branch
      %253 = sbr.rel (%p250) target = $region12
    $region11: #{tpu_custom_call.1} parent=5 // pred_region
      %s254 = ssub.s32 %s15, 1
      // Predicated region
      $region13: #{tpu_custom_call.1} parent=11 // pred_check
        %p255 = pneg %p62
      $region14: #{tpu_custom_call.1} parent=11 // pred_check_branch
        %257 = sbr.rel (%p255) target = $region16
      $region15: #{tpu_custom_call.1} parent=11 // pred_region
        _
      $region16: #{tpu_custom_call.1} parent=11 // pred_fallthru
        _
      // Predicated region
      $region17: #{tpu_custom_call.1} parent=11 // pred_check
        %p258 = pneg %p109
      $region18: #{tpu_custom_call.1} parent=11 // pred_check_branch
        %260 = sbr.rel (%p258) target = $region20
      $region19: #{tpu_custom_call.1} parent=11 // pred_region
        _
      $region20: #{tpu_custom_call.1} parent=11 // pred_fallthru
        _
      // Predicated region
      $region21: #{tpu_custom_call.1} parent=11 // pred_check
        %p261 = pneg %p130
      $region22: #{tpu_custom_call.1} parent=11 // pred_check_branch
        %263 = sbr.rel (%p261) target = $region24
      $region23: #{tpu_custom_call.1} parent=11 // pred_region
        _
      $region24: #{tpu_custom_call.1} parent=11 // pred_fallthru
        _
      // Predicated region
      $region25: #{tpu_custom_call.1} parent=11 // pred_check
        %p264 = pneg %p151
      $region26: #{tpu_custom_call.1} parent=11 // pred_check_branch
        %266 = sbr.rel (%p264) target = $region28
      $region27: #{tpu_custom_call.1} parent=11 // pred_region
        _
      $region28: #{tpu_custom_call.1} parent=11 // pred_fallthru
        _
      // Predicated region
      $region29: #{tpu_custom_call.1} parent=11 // pred_check
        %p267 = pneg %p172
      $region30: #{tpu_custom_call.1} parent=11 // pred_check_branch
        %269 = sbr.rel (%p267) target = $region32
      $region31: #{tpu_custom_call.1} parent=11 // pred_region
        _
      $region32: #{tpu_custom_call.1} parent=11 // pred_fallthru
        _
      // Predicated region
      $region33: #{tpu_custom_call.1} parent=11 // pred_check
        %p270 = pneg %p193
      $region34: #{tpu_custom_call.1} parent=11 // pred_check_branch
        %272 = sbr.rel (%p270) target = $region36
      $region35: #{tpu_custom_call.1} parent=11 // pred_region
        _
      $region36: #{tpu_custom_call.1} parent=11 // pred_fallthru
        _
      // Predicated region
      $region37: #{tpu_custom_call.1} parent=11 // pred_check
        %p273 = pneg %p214
      $region38: #{tpu_custom_call.1} parent=11 // pred_check_branch
        %275 = sbr.rel (%p273) target = $region40
      $region39: #{tpu_custom_call.1} parent=11 // pred_region
        _
      $region40: #{tpu_custom_call.1} parent=11 // pred_fallthru
        _
    $region12: #{tpu_custom_call.1} parent=5 // pred_fallthru
      _
    %p276 = scmp.lt.s32.totalorder %s15, 2
    // Predicated region
    $region41: #{tpu_custom_call.1} parent=5 // pred_check
      %p277 = pneg %p276
    $region42: #{tpu_custom_call.1} parent=5 // pred_check_branch
      %279 = sbr.rel (%p277) target = $region44
    $region43: #{tpu_custom_call.1} parent=5 // pred_region
      // Predicated region
      $region45: #{tpu_custom_call.1} parent=43 // pred_check
        %p280 = pneg %p35
      $region46: #{tpu_custom_call.1} parent=43 // pred_check_branch
        %282 = sbr.rel (%p280) target = $region48
      $region47: #{tpu_custom_call.1} parent=43 // pred_region
        %s283 = smul.u32 8, %s15
        %p284 = scmp.lt.s32.totalorder %s283, 15
        %s285 = scalar_select %p284, %s283, 15
        %s286 = scalar_lea.vmem %s0, %s285
        %s287 = smul.u32 8, %s15
      $region48: #{tpu_custom_call.1} parent=43 // pred_fallthru
        _
      // Predicated region
      $region49: #{tpu_custom_call.1} parent=43 // pred_check
        %p288 = pneg %p82
      $region50: #{tpu_custom_call.1} parent=43 // pred_check_branch
        %290 = sbr.rel (%p288) target = $region52
      $region51: #{tpu_custom_call.1} parent=43 // pred_region
        %p291 = scmp.lt.s32.totalorder %s15, 1
        %s292 = scalar_select %p291, %s15, 1
        %s293 = smul.addr %s292, 8
        %s294 = scalar_lea.vmem %s2, %s293
      $region52: #{tpu_custom_call.1} parent=43 // pred_fallthru
        _
    $region44: #{tpu_custom_call.1} parent=5 // pred_fallthru
      _
    %p295 = scmp.le.s32.totalorder 1, %s15
    %p296 = scmp.lt.s32.totalorder %s15, 3
    %p297 = pnand %p295, %p296
    %p298 = pneg %p297
    // Predicated region
    $region53: #{tpu_custom_call.1} parent=5 // pred_check
      _
    $region54: #{tpu_custom_call.1} parent=5 // pred_check_branch
      %300 = sbr.rel (%p297) target = $region56
    $region55: #{tpu_custom_call.1} parent=5 // pred_region
      %s301 = ssub.s32 %s15, 1
      %s302 = smul.u32 8, %s20
      %p303 = scmp.lt.s32.totalorder %s302, 15
      %s304 = scalar_select %p303, %s302, 15
      %s305 = scalar_lea.vmem %s0, %s304
      %p306 = pneg %p41
      %p307 = pneg %p38
      %p308 = pneg %p62
      %p309 = pneg %p59
      %p310 = scmp.lt.s32.totalorder %s20, 1
      %s311 = scalar_select %p310, %s20, 1
      %s312 = smul.addr %s311, 8
      %s313 = scalar_lea.vmem %s2, %s312
      %p314 = pneg %p88
      %p315 = pneg %p85
      %p316 = pneg %p109
      %p317 = pneg %p106
      %p318 = pneg %p130
      %p319 = pneg %p127
      %p320 = pneg %p151
      %p321 = pneg %p148
      %p322 = pneg %p172
      %p323 = pneg %p169
      %p324 = pneg %p193
      %p325 = pneg %p190
      %p326 = pneg %p214
      %p327 = pneg %p211
      %p328 = pneg %p240
      %p329 = pneg %p237
      %s330 = smul.u32 8, %s20
      %p331 = scmp.lt.s32.totalorder %s330, 15
      %s332 = scalar_select %p331, %s330, 15
      %s333 = smul.addr %s332, 16
      %s334 = smul.addr %s333, 2
      %s335 = scalar_lea.vmem %s9, %s334
      %s336 = smul.u32 8, %s20
      %p337 = scmp.lt.s32.totalorder %s336, 15
      %s338 = scalar_select %p337, %s336, 15
      %s339 = scalar_lea.vmem %s0, %s338
      %s340 = smul.u32 8, %s20
      %p341 = scmp.lt.s32.totalorder %s20, 1
      %s342 = scalar_select %p341, %s20, 1
      %s343 = smul.addr %s342, 8
      %s344 = scalar_lea.vmem %s2, %s343
      %s345 = smul.u32 8, %s20
      %p346 = scmp.lt.s32.totalorder %s345, 15
      %s347 = scalar_select %p346, %s345, 15
      %s348 = smul.addr %s347, 16
      %s349 = smul.addr %s348, 2
      %s350 = scalar_lea.vmem %s9, %s349
      %s351 = smul.u32 8, %s20
      %v353 = vld [vmem:[%s339] sm:$0x1]
      %v354 = vld [vmem:[%s339 + $0x1] sm:$0x1]
      %v355 = vld [vmem:[%s339 + $0x2] sm:$0x1]
      %v356 = vld [vmem:[%s339 + $0x3] sm:$0x1]
      %v357 = vld [vmem:[%s339 + $0x4] sm:$0x1]
      %v358 = vld [vmem:[%s339 + $0x5] sm:$0x1]
      %v359 = vld [vmem:[%s339 + $0x6] sm:$0x1]
      %v360 = vld [vmem:[%s339 + $0x7] sm:$0x1]
      %v361 = vld [vmem:[%s4] sm:$0xf]
      %v362 = vld [vmem:[%s4 + $0x4] sm:$0xf]
      %v363 = vld [vmem:[%s4 + $0x8] sm:$0xf]
      %v364 = vld [vmem:[%s4 + $0xc] sm:$0xf]
      %v365 = vld [vmem:[%s4 + $0x10] sm:$0xf]
      %v366 = vld [vmem:[%s4 + $0x14] sm:$0xf]
      %v367 = vld [vmem:[%s4 + $0x18] sm:$0xf]
      %v368 = vld [vmem:[%s4 + $0x1c] sm:$0xf]
      %v369 = vld [vmem:[%s4 + $0x20] sm:$0xf]
      %v370 = vld [vmem:[%s4 + $0x24] sm:$0xf]
      %v371 = vld [vmem:[%s4 + $0x28] sm:$0xf]
      %v372 = vld [vmem:[%s4 + $0x2c] sm:$0xf]
      %v373 = vld [vmem:[%s4 + $0x30] sm:$0xf]
      %v374 = vld [vmem:[%s4 + $0x34] sm:$0xf]
      %v375 = vld [vmem:[%s4 + $0x38] sm:$0xf]
      %v376 = vld [vmem:[%s4 + $0x3c] sm:$0xf]
      %v385 = vcombine.low %v353, %v354
      %v386 = vcombine.low %v355, %v356
      %v387 = vcombine.low %v357, %v358
      %v388 = vcombine.low %v359, %v360
      %v390 = vunpack.c.l.s4 1966171168
      %v391 = vunpack.c.0.s8 %v390
      %v392 = vlaneseq
      %v393 = vshrl.u32 %v392, 7
      %v394 = vsub.s32 %v391, %v393
      %v395 = vrot.slane %v385, %v394
      %v397 = vunpack.c.l.s4 1966171168
      %v398 = vunpack.c.0.s8 %v397
      %v399 = vlaneseq
      %v400 = vshrl.u32 %v399, 7
      %v401 = vsub.s32 %v398, %v400
      %v402 = vrot.slane %v386, %v401
      %v404 = vunpack.c.l.s4 1966171168
      %v405 = vunpack.c.0.s8 %v404
      %v406 = vlaneseq
      %v407 = vshrl.u32 %v406, 7
      %v408 = vsub.s32 %v405, %v407
      %v409 = vrot.slane %v387, %v408
      %v411 = vunpack.c.l.s4 1966171168
      %v412 = vunpack.c.0.s8 %v411
      %v413 = vlaneseq
      %v414 = vshrl.u32 %v413, 7
      %v415 = vsub.s32 %v412, %v414
      %v416 = vrot.slane %v388, %v415
      %v417 = vcombine.low %v395, %v402
      %v418 = vcombine.low %v409, %v416
      %v420 = vunpack.c.l.s4 1966171168
      %v421 = vunpack.c.0.s8 %v420
      %v422 = vlaneseq
      %v423 = vshrl.u32 %v422, 7
      %v424 = vsub.s32 %v421, %v423
      %v425 = vrot.slane %v417, %v424
      %v427 = vunpack.c.l.s4 1966171168
      %v428 = vunpack.c.0.s8 %v427
      %v429 = vlaneseq
      %v430 = vshrl.u32 %v429, 7
      %v431 = vsub.s32 %v428, %v430
      %v432 = vrot.slane %v418, %v431
      %v433 = vcombine.low %v425, %v432
      %v451 = vunpack.c.l.b16 %v361
      %v452 = vunpack.c.l.b16 %v362
      %v453 = vunpack.c.l.b16 %v363
      %v454 = vunpack.c.l.b16 %v364
      %v455 = vunpack.c.l.b16 %v365
      %v456 = vunpack.c.l.b16 %v366
      %v457 = vunpack.c.l.b16 %v367
      %v458 = vunpack.c.l.b16 %v368
      %v459 = vunpack.c.l.b16 %v369
      %v460 = vunpack.c.l.b16 %v370
      %v461 = vunpack.c.l.b16 %v371
      %v462 = vunpack.c.l.b16 %v372
      %v463 = vunpack.c.l.b16 %v373
      %v464 = vunpack.c.l.b16 %v374
      %v465 = vunpack.c.l.b16 %v375
      %v466 = vunpack.c.l.b16 %v376
      %v467 = vpack.c.b16 %v452, %v451
      %v468 = vpack.c.b16 %v454, %v453
      %v469 = vpack.c.b16 %v456, %v455
      %v470 = vpack.c.b16 %v458, %v457
      %v471 = vpack.c.b16 %v460, %v459
      %v472 = vpack.c.b16 %v462, %v461
      %v473 = vpack.c.b16 %v464, %v463
      %v474 = vpack.c.b16 %v466, %v465
      %483 = vmatprep.subr.bf16.mxu0 0
      %484 = vmatpush1.bf16.msra.mxu0 %v467
      %485 = vmatprep.subr.bf16.mxu0 0
      %486 = vmatpush1.bf16.msra.mxu0 %v468
      %487 = vmatprep.subr.bf16.mxu0 0
      %488 = vmatpush1.bf16.msra.mxu0 %v469
      %489 = vmatprep.subr.bf16.mxu0 0
      %490 = vmatpush1.bf16.msra.mxu0 %v470
      %491 = vmatprep.subr.bf16.mxu0 0
      %492 = vmatpush1.bf16.msra.mxu0 %v471
      %493 = vmatprep.subr.bf16.mxu0 0
      %494 = vmatpush1.bf16.msra.mxu0 %v472
      %495 = vmatprep.subr.bf16.mxu0 0
      %496 = vmatpush1.bf16.msra.mxu0 %v473
      %497 = vmatprep.subr.bf16.mxu0 0
      %498 = vmatpush1.bf16.msra.mxu0 %v474
      %499 = vmatprep.subr.bf16.mxu0 0
      %500 = vmatpush1.bf16.msra.mxu0 0
      %501 = vmatprep.subr.bf16.mxu0 0
      %502 = vmatpush1.bf16.msra.mxu0 0
      %503 = vmatprep.subr.bf16.mxu0 0
      %504 = vmatpush1.bf16.msra.mxu0 0
      %505 = vmatprep.subr.bf16.mxu0 0
      %506 = vmatpush1.bf16.msra.mxu0 0
      %507 = vmatprep.subr.bf16.mxu0 0
      %508 = vmatpush1.bf16.msra.mxu0 0
      %509 = vmatprep.subr.bf16.mxu0 0
      %510 = vmatpush1.bf16.msra.mxu0 0
      %511 = vmatprep.subr.bf16.mxu0 0
      %512 = vmatpush1.bf16.msra.mxu0 0
      %513 = vmatprep.subr.bf16.mxu0 0
      %514 = vmatpush1.bf16.msra.mxu0 0
      %515 = vmatprep.mubr.bf16.mxu0 0
      %516 = vmatmul.mubr.bf16.gmra.mrb[0].mxu0 %v433
      %v517 = vpop.f32.mrb[0].mxu0
      %v518 = vadd.f32 0.0, %v517
      %v519 = vpop.f32.mrb[0].mxu0
      %v520 = vpop.f32.mrb[0].mxu0
      %v521 = vadd.f32 0.0, %v520
      %v522 = vpop.f32.mrb[0].mxu0
      %523 = vdwg.mxu0
      %v526 = vcombine.high %v518, %v518
      %v528 = vunpack.c.l.s4 1983009808
      %v529 = vunpack.c.0.s8 %v528
      %v530 = vlaneseq
      %v531 = vshrl.u32 %v530, 7
      %v532 = vsub.s32 %v529, %v531
      %v533 = vrot.slane %v518, %v532
      %v535 = vunpack.c.l.s4 1983009808
      %v536 = vunpack.c.0.s8 %v535
      %v537 = vlaneseq
      %v538 = vshrl.u32 %v537, 7
      %v539 = vsub.s32 %v536, %v538
      %v540 = vrot.slane %v526, %v539
      %v541 = vcombine.high %v533, %v533
      %v542 = vcombine.high %v540, %v540
      %v543 = vcombine.high %v521, %v521
      %v545 = vunpack.c.l.s4 1983009808
      %v546 = vunpack.c.0.s8 %v545
      %v547 = vlaneseq
      %v548 = vshrl.u32 %v547, 7
      %v549 = vsub.s32 %v546, %v548
      %v550 = vrot.slane %v521, %v549
      %v552 = vunpack.c.l.s4 1983009808
      %v553 = vunpack.c.0.s8 %v552
      %v554 = vlaneseq
      %v555 = vshrl.u32 %v554, 7
      %v556 = vsub.s32 %v553, %v555
      %v557 = vrot.slane %v543, %v556
      %v558 = vcombine.high %v550, %v550
      %v559 = vcombine.high %v557, %v557
      %v568 = vld [vmem:[%s1] sm:$0x3]
      %v569 = vld [vmem:[%s1 + $0x2] sm:$0x3]
      %v570 = vld [vmem:[%s1 + $0x4] sm:$0x3]
      %v571 = vld [vmem:[%s1 + $0x6] sm:$0x3]
      %v572 = vld [vmem:[%s1 + $0x8] sm:$0x3]
      %v573 = vld [vmem:[%s1 + $0xa] sm:$0x3]
      %v574 = vld [vmem:[%s1 + $0xc] sm:$0x3]
      %v575 = vld [vmem:[%s1 + $0xe] sm:$0x3]
      %v576 = vld [vmem:[%s1 + $0x10] sm:$0x3]
      %v577 = vld [vmem:[%s1 + $0x12] sm:$0x3]
      %v578 = vld [vmem:[%s1 + $0x14] sm:$0x3]
      %v579 = vld [vmem:[%s1 + $0x16] sm:$0x3]
      %v580 = vld [vmem:[%s1 + $0x18] sm:$0x3]
      %v581 = vld [vmem:[%s1 + $0x1a] sm:$0x3]
      %v582 = vld [vmem:[%s1 + $0x1c] sm:$0x3]
      %v583 = vld [vmem:[%s1 + $0x1e] sm:$0x3]
      %v584 = vadd.f32 %v533, %v568
      %v585 = vadd.f32 %v533, %v569
      %v586 = vadd.f32 %v533, %v570
      %v587 = vadd.f32 %v533, %v571
      %v588 = vadd.f32 %v533, %v572
      %v589 = vadd.f32 %v533, %v573
      %v590 = vadd.f32 %v533, %v574
      %v591 = vadd.f32 %v533, %v575
      %v592 = vadd.f32 %v533, %v576
      %v593 = vadd.f32 %v533, %v577
      %v594 = vadd.f32 %v533, %v578
      %v595 = vadd.f32 %v533, %v579
      %v596 = vadd.f32 %v533, %v580
      %v597 = vadd.f32 %v533, %v581
      %v598 = vadd.f32 %v533, %v582
      %v599 = vadd.f32 %v533, %v583
      %v600 = vadd.f32 %v541, %v568
      %v601 = vadd.f32 %v541, %v569
      %v602 = vadd.f32 %v541, %v570
      %v603 = vadd.f32 %v541, %v571
      %v604 = vadd.f32 %v541, %v572
      %v605 = vadd.f32 %v541, %v573
      %v606 = vadd.f32 %v541, %v574
      %v607 = vadd.f32 %v541, %v575
      %v608 = vadd.f32 %v541, %v576
      %v609 = vadd.f32 %v541, %v577
      %v610 = vadd.f32 %v541, %v578
      %v611 = vadd.f32 %v541, %v579
      %v612 = vadd.f32 %v541, %v580
      %v613 = vadd.f32 %v541, %v581
      %v614 = vadd.f32 %v541, %v582
      %v615 = vadd.f32 %v541, %v583
      %v616 = vadd.f32 %v540, %v568
      %v617 = vadd.f32 %v540, %v569
      %v618 = vadd.f32 %v540, %v570
      %v619 = vadd.f32 %v540, %v571
      %v620 = vadd.f32 %v540, %v572
      %v621 = vadd.f32 %v540, %v573
      %v622 = vadd.f32 %v540, %v574
      %v623 = vadd.f32 %v540, %v575
      %v624 = vadd.f32 %v540, %v576
      %v625 = vadd.f32 %v540, %v577
      %v626 = vadd.f32 %v540, %v578
      %v627 = vadd.f32 %v540, %v579
      %v628 = vadd.f32 %v540, %v580
      %v629 = vadd.f32 %v540, %v581
      %v630 = vadd.f32 %v540, %v582
      %v631 = vadd.f32 %v540, %v583
      %v632 = vadd.f32 %v542, %v568
      %v633 = vadd.f32 %v542, %v569
      %v634 = vadd.f32 %v542, %v570
      %v635 = vadd.f32 %v542, %v571
      %v636 = vadd.f32 %v542, %v572
      %v637 = vadd.f32 %v542, %v573
      %v638 = vadd.f32 %v542, %v574
      %v639 = vadd.f32 %v542, %v575
      %v640 = vadd.f32 %v542, %v576
      %v641 = vadd.f32 %v542, %v577
      %v642 = vadd.f32 %v542, %v578
      %v643 = vadd.f32 %v542, %v579
      %v644 = vadd.f32 %v542, %v580
      %v645 = vadd.f32 %v542, %v581
      %v646 = vadd.f32 %v542, %v582
      %v647 = vadd.f32 %v542, %v583
      %v648 = vadd.f32 %v550, %v568
      %v649 = vadd.f32 %v550, %v569
      %v650 = vadd.f32 %v550, %v570
      %v651 = vadd.f32 %v550, %v571
      %v652 = vadd.f32 %v550, %v572
      %v653 = vadd.f32 %v550, %v573
      %v654 = vadd.f32 %v550, %v574
      %v655 = vadd.f32 %v550, %v575
      %v656 = vadd.f32 %v550, %v576
      %v657 = vadd.f32 %v550, %v577
      %v658 = vadd.f32 %v550, %v578
      %v659 = vadd.f32 %v550, %v579
      %v660 = vadd.f32 %v550, %v580
      %v661 = vadd.f32 %v550, %v581
      %v662 = vadd.f32 %v550, %v582
      %v663 = vadd.f32 %v550, %v583
      %v664 = vadd.f32 %v558, %v568
      %v665 = vadd.f32 %v558, %v569
      %v666 = vadd.f32 %v558, %v570
      %v667 = vadd.f32 %v558, %v571
      %v668 = vadd.f32 %v558, %v572
      %v669 = vadd.f32 %v558, %v573
      %v670 = vadd.f32 %v558, %v574
      %v671 = vadd.f32 %v558, %v575
      %v672 = vadd.f32 %v558, %v576
      %v673 = vadd.f32 %v558, %v577
      %v674 = vadd.f32 %v558, %v578
      %v675 = vadd.f32 %v558, %v579
      %v676 = vadd.f32 %v558, %v580
      %v677 = vadd.f32 %v558, %v581
      %v678 = vadd.f32 %v558, %v582
      %v679 = vadd.f32 %v558, %v583
      %v680 = vadd.f32 %v557, %v568
      %v681 = vadd.f32 %v557, %v569
      %v682 = vadd.f32 %v557, %v570
      %v683 = vadd.f32 %v557, %v571
      %v684 = vadd.f32 %v557, %v572
      %v685 = vadd.f32 %v557, %v573
      %v686 = vadd.f32 %v557, %v574
      %v687 = vadd.f32 %v557, %v575
      %v688 = vadd.f32 %v557, %v576
      %v689 = vadd.f32 %v557, %v577
      %v690 = vadd.f32 %v557, %v578
      %v691 = vadd.f32 %v557, %v579
      %v692 = vadd.f32 %v557, %v580
      %v693 = vadd.f32 %v557, %v581
      %v694 = vadd.f32 %v557, %v582
      %v695 = vadd.f32 %v557, %v583
      %v696 = vadd.f32 %v559, %v568
      %v697 = vadd.f32 %v559, %v569
      %v698 = vadd.f32 %v559, %v570
      %v699 = vadd.f32 %v559, %v571
      %v700 = vadd.f32 %v559, %v572
      %v701 = vadd.f32 %v559, %v573
      %v702 = vadd.f32 %v559, %v574
      %v703 = vadd.f32 %v559, %v575
      %v704 = vadd.f32 %v559, %v576
      %v705 = vadd.f32 %v559, %v577
      %v706 = vadd.f32 %v559, %v578
      %v707 = vadd.f32 %v559, %v579
      %v708 = vadd.f32 %v559, %v580
      %v709 = vadd.f32 %v559, %v581
      %v710 = vadd.f32 %v559, %v582
      %v711 = vadd.f32 %v559, %v583
      %vm712 = vcmask 254976
      %v713 = vsel %vm712, %v584, 0.0
      %714 = vadd.xlane.f32.xlu0 %v713
      %v715 = vpop.xlane.xlu0 %714
      %v716 = vsel %vm712, %v585, 0.0
      %717 = vadd.xlane.f32.xlu0 %v716
      %v718 = vpop.xlane.xlu0 %717
      %v719 = vsel %vm712, %v586, 0.0
      %720 = vadd.xlane.f32.xlu0 %v719
      %v721 = vpop.xlane.xlu0 %720
      %v722 = vsel %vm712, %v587, 0.0
      %723 = vadd.xlane.f32.xlu0 %v722
      %v724 = vpop.xlane.xlu0 %723
      %v725 = vsel %vm712, %v588, 0.0
      %726 = vadd.xlane.f32.xlu0 %v725
      %v727 = vpop.xlane.xlu0 %726
      %v728 = vsel %vm712, %v589, 0.0
      %729 = vadd.xlane.f32.xlu0 %v728
      %v730 = vpop.xlane.xlu0 %729
      %v731 = vsel %vm712, %v590, 0.0
      %732 = vadd.xlane.f32.xlu0 %v731
      %v733 = vpop.xlane.xlu0 %732
      %v734 = vsel %vm712, %v591, 0.0
      %735 = vadd.xlane.f32.xlu0 %v734
      %v736 = vpop.xlane.xlu0 %735
      %v737 = vsel %vm712, %v592, 0.0
      %738 = vadd.xlane.f32.xlu0 %v737
      %v739 = vpop.xlane.xlu0 %738
      %v740 = vsel %vm712, %v593, 0.0
      %741 = vadd.xlane.f32.xlu0 %v740
      %v742 = vpop.xlane.xlu0 %741
      %v743 = vsel %vm712, %v594, 0.0
      %744 = vadd.xlane.f32.xlu0 %v743
      %v745 = vpop.xlane.xlu0 %744
      %v746 = vsel %vm712, %v595, 0.0
      %747 = vadd.xlane.f32.xlu0 %v746
      %v748 = vpop.xlane.xlu0 %747
      %v749 = vsel %vm712, %v596, 0.0
      %750 = vadd.xlane.f32.xlu0 %v749
      %v751 = vpop.xlane.xlu0 %750
      %v752 = vsel %vm712, %v597, 0.0
      %753 = vadd.xlane.f32.xlu0 %v752
      %v754 = vpop.xlane.xlu0 %753
      %v755 = vsel %vm712, %v598, 0.0
      %756 = vadd.xlane.f32.xlu0 %v755
      %v757 = vpop.xlane.xlu0 %756
      %v758 = vsel %vm712, %v599, 0.0
      %759 = vadd.xlane.f32.xlu0 %v758
      %v760 = vpop.xlane.xlu0 %759
      %v761 = vsel %vm712, %v600, 0.0
      %762 = vadd.xlane.f32.xlu0 %v761
      %v763 = vpop.xlane.xlu0 %762
      %v764 = vsel %vm712, %v601, 0.0
      %765 = vadd.xlane.f32.xlu0 %v764
      %v766 = vpop.xlane.xlu0 %765
      %v767 = vsel %vm712, %v602, 0.0
      %768 = vadd.xlane.f32.xlu0 %v767
      %v769 = vpop.xlane.xlu0 %768
      %v770 = vsel %vm712, %v603, 0.0
      %771 = vadd.xlane.f32.xlu0 %v770
      %v772 = vpop.xlane.xlu0 %771
      %v773 = vsel %vm712, %v604, 0.0
      %774 = vadd.xlane.f32.xlu0 %v773
      %v775 = vpop.xlane.xlu0 %774
      %v776 = vsel %vm712, %v605, 0.0
      %777 = vadd.xlane.f32.xlu0 %v776
      %v778 = vpop.xlane.xlu0 %777
      %v779 = vsel %vm712, %v606, 0.0
      %780 = vadd.xlane.f32.xlu0 %v779
      %v781 = vpop.xlane.xlu0 %780
      %v782 = vsel %vm712, %v607, 0.0
      %783 = vadd.xlane.f32.xlu0 %v782
      %v784 = vpop.xlane.xlu0 %783
      %v785 = vsel %vm712, %v608, 0.0
      %786 = vadd.xlane.f32.xlu0 %v785
      %v787 = vpop.xlane.xlu0 %786
      %v788 = vsel %vm712, %v609, 0.0
      %789 = vadd.xlane.f32.xlu0 %v788
      %v790 = vpop.xlane.xlu0 %789
      %v791 = vsel %vm712, %v610, 0.0
      %792 = vadd.xlane.f32.xlu0 %v791
      %v793 = vpop.xlane.xlu0 %792
      %v794 = vsel %vm712, %v611, 0.0
      %795 = vadd.xlane.f32.xlu0 %v794
      %v796 = vpop.xlane.xlu0 %795
      %v797 = vsel %vm712, %v612, 0.0
      %798 = vadd.xlane.f32.xlu0 %v797
      %v799 = vpop.xlane.xlu0 %798
      %v800 = vsel %vm712, %v613, 0.0
      %801 = vadd.xlane.f32.xlu0 %v800
      %v802 = vpop.xlane.xlu0 %801
      %v803 = vsel %vm712, %v614, 0.0
      %804 = vadd.xlane.f32.xlu0 %v803
      %v805 = vpop.xlane.xlu0 %804
      %v806 = vsel %vm712, %v615, 0.0
      %807 = vadd.xlane.f32.xlu0 %v806
      %v808 = vpop.xlane.xlu0 %807
      %v809 = vsel %vm712, %v616, 0.0
      %810 = vadd.xlane.f32.xlu0 %v809
      %v811 = vpop.xlane.xlu0 %810
      %v812 = vsel %vm712, %v617, 0.0
      %813 = vadd.xlane.f32.xlu0 %v812
      %v814 = vpop.xlane.xlu0 %813
      %v815 = vsel %vm712, %v618, 0.0
      %816 = vadd.xlane.f32.xlu0 %v815
      %v817 = vpop.xlane.xlu0 %816
      %v818 = vsel %vm712, %v619, 0.0
      %819 = vadd.xlane.f32.xlu0 %v818
      %v820 = vpop.xlane.xlu0 %819
      %v821 = vsel %vm712, %v620, 0.0
      %822 = vadd.xlane.f32.xlu0 %v821
      %v823 = vpop.xlane.xlu0 %822
      %v824 = vsel %vm712, %v621, 0.0
      %825 = vadd.xlane.f32.xlu0 %v824
      %v826 = vpop.xlane.xlu0 %825
      %v827 = vsel %vm712, %v622, 0.0
      %828 = vadd.xlane.f32.xlu0 %v827
      %v829 = vpop.xlane.xlu0 %828
      %v830 = vsel %vm712, %v623, 0.0
      %831 = vadd.xlane.f32.xlu0 %v830
      %v832 = vpop.xlane.xlu0 %831
      %v833 = vsel %vm712, %v624, 0.0
      %834 = vadd.xlane.f32.xlu0 %v833
      %v835 = vpop.xlane.xlu0 %834
      %v836 = vsel %vm712, %v625, 0.0
      %837 = vadd.xlane.f32.xlu0 %v836
      %v838 = vpop.xlane.xlu0 %837
      %v839 = vsel %vm712, %v626, 0.0
      %840 = vadd.xlane.f32.xlu0 %v839
      %v841 = vpop.xlane.xlu0 %840
      %v842 = vsel %vm712, %v627, 0.0
      %843 = vadd.xlane.f32.xlu0 %v842
      %v844 = vpop.xlane.xlu0 %843
      %v845 = vsel %vm712, %v628, 0.0
      %846 = vadd.xlane.f32.xlu0 %v845
      %v847 = vpop.xlane.xlu0 %846
      %v848 = vsel %vm712, %v629, 0.0
      %849 = vadd.xlane.f32.xlu0 %v848
      %v850 = vpop.xlane.xlu0 %849
      %v851 = vsel %vm712, %v630, 0.0
      %852 = vadd.xlane.f32.xlu0 %v851
      %v853 = vpop.xlane.xlu0 %852
      %v854 = vsel %vm712, %v631, 0.0
      %855 = vadd.xlane.f32.xlu0 %v854
      %v856 = vpop.xlane.xlu0 %855
      %v857 = vsel %vm712, %v632, 0.0
      %858 = vadd.xlane.f32.xlu0 %v857
      %v859 = vpop.xlane.xlu0 %858
      %v860 = vsel %vm712, %v633, 0.0
      %861 = vadd.xlane.f32.xlu0 %v860
      %v862 = vpop.xlane.xlu0 %861
      %v863 = vsel %vm712, %v634, 0.0
      %864 = vadd.xlane.f32.xlu0 %v863
      %v865 = vpop.xlane.xlu0 %864
      %v866 = vsel %vm712, %v635, 0.0
      %867 = vadd.xlane.f32.xlu0 %v866
      %v868 = vpop.xlane.xlu0 %867
      %v869 = vsel %vm712, %v636, 0.0
      %870 = vadd.xlane.f32.xlu0 %v869
      %v871 = vpop.xlane.xlu0 %870
      %v872 = vsel %vm712, %v637, 0.0
      %873 = vadd.xlane.f32.xlu0 %v872
      %v874 = vpop.xlane.xlu0 %873
      %v875 = vsel %vm712, %v638, 0.0
      %876 = vadd.xlane.f32.xlu0 %v875
      %v877 = vpop.xlane.xlu0 %876
      %v878 = vsel %vm712, %v639, 0.0
      %879 = vadd.xlane.f32.xlu0 %v878
      %v880 = vpop.xlane.xlu0 %879
      %v881 = vsel %vm712, %v640, 0.0
      %882 = vadd.xlane.f32.xlu0 %v881
      %v883 = vpop.xlane.xlu0 %882
      %v884 = vsel %vm712, %v641, 0.0
      %885 = vadd.xlane.f32.xlu0 %v884
      %v886 = vpop.xlane.xlu0 %885
      %v887 = vsel %vm712, %v642, 0.0
      %888 = vadd.xlane.f32.xlu0 %v887
      %v889 = vpop.xlane.xlu0 %888
      %v890 = vsel %vm712, %v643, 0.0
      %891 = vadd.xlane.f32.xlu0 %v890
      %v892 = vpop.xlane.xlu0 %891
      %v893 = vsel %vm712, %v644, 0.0
      %894 = vadd.xlane.f32.xlu0 %v893
      %v895 = vpop.xlane.xlu0 %894
      %v896 = vsel %vm712, %v645, 0.0
      %897 = vadd.xlane.f32.xlu0 %v896
      %v898 = vpop.xlane.xlu0 %897
      %v899 = vsel %vm712, %v646, 0.0
      %900 = vadd.xlane.f32.xlu0 %v899
      %v901 = vpop.xlane.xlu0 %900
      %v902 = vsel %vm712, %v647, 0.0
      %903 = vadd.xlane.f32.xlu0 %v902
      %v904 = vpop.xlane.xlu0 %903
      %v905 = vsel %vm712, %v648, 0.0
      %906 = vadd.xlane.f32.xlu0 %v905
      %v907 = vpop.xlane.xlu0 %906
      %v908 = vsel %vm712, %v649, 0.0
      %909 = vadd.xlane.f32.xlu0 %v908
      %v910 = vpop.xlane.xlu0 %909
      %v911 = vsel %vm712, %v650, 0.0
      %912 = vadd.xlane.f32.xlu0 %v911
      %v913 = vpop.xlane.xlu0 %912
      %v914 = vsel %vm712, %v651, 0.0
      %915 = vadd.xlane.f32.xlu0 %v914
      %v916 = vpop.xlane.xlu0 %915
      %v917 = vsel %vm712, %v652, 0.0
      %918 = vadd.xlane.f32.xlu0 %v917
      %v919 = vpop.xlane.xlu0 %918
      %v920 = vsel %vm712, %v653, 0.0
      %921 = vadd.xlane.f32.xlu0 %v920
      %v922 = vpop.xlane.xlu0 %921
      %v923 = vsel %vm712, %v654, 0.0
      %924 = vadd.xlane.f32.xlu0 %v923
      %v925 = vpop.xlane.xlu0 %924
      %v926 = vsel %vm712, %v655, 0.0
      %927 = vadd.xlane.f32.xlu0 %v926
      %v928 = vpop.xlane.xlu0 %927
      %v929 = vsel %vm712, %v656, 0.0
      %930 = vadd.xlane.f32.xlu0 %v929
      %v931 = vpop.xlane.xlu0 %930
      %v932 = vsel %vm712, %v657, 0.0
      %933 = vadd.xlane.f32.xlu0 %v932
      %v934 = vpop.xlane.xlu0 %933
      %v935 = vsel %vm712, %v658, 0.0
      %936 = vadd.xlane.f32.xlu0 %v935
      %v937 = vpop.xlane.xlu0 %936
      %v938 = vsel %vm712, %v659, 0.0
      %939 = vadd.xlane.f32.xlu0 %v938
      %v940 = vpop.xlane.xlu0 %939
      %v941 = vsel %vm712, %v660, 0.0
      %942 = vadd.xlane.f32.xlu0 %v941
      %v943 = vpop.xlane.xlu0 %942
      %v944 = vsel %vm712, %v661, 0.0
      %945 = vadd.xlane.f32.xlu0 %v944
      %v946 = vpop.xlane.xlu0 %945
      %v947 = vsel %vm712, %v662, 0.0
      %948 = vadd.xlane.f32.xlu0 %v947
      %v949 = vpop.xlane.xlu0 %948
      %v950 = vsel %vm712, %v663, 0.0
      %951 = vadd.xlane.f32.xlu0 %v950
      %v952 = vpop.xlane.xlu0 %951
      %v953 = vsel %vm712, %v664, 0.0
      %954 = vadd.xlane.f32.xlu0 %v953
      %v955 = vpop.xlane.xlu0 %954
      %v956 = vsel %vm712, %v665, 0.0
      %957 = vadd.xlane.f32.xlu0 %v956
      %v958 = vpop.xlane.xlu0 %957
      %v959 = vsel %vm712, %v666, 0.0
      %960 = vadd.xlane.f32.xlu0 %v959
      %v961 = vpop.xlane.xlu0 %960
      %v962 = vsel %vm712, %v667, 0.0
      %963 = vadd.xlane.f32.xlu0 %v962
      %v964 = vpop.xlane.xlu0 %963
      %v965 = vsel %vm712, %v668, 0.0
      %966 = vadd.xlane.f32.xlu0 %v965
      %v967 = vpop.xlane.xlu0 %966
      %v968 = vsel %vm712, %v669, 0.0
      %969 = vadd.xlane.f32.xlu0 %v968
      %v970 = vpop.xlane.xlu0 %969
      %v971 = vsel %vm712, %v670, 0.0
      %972 = vadd.xlane.f32.xlu0 %v971
      %v973 = vpop.xlane.xlu0 %972
      %v974 = vsel %vm712, %v671, 0.0
      %975 = vadd.xlane.f32.xlu0 %v974
      %v976 = vpop.xlane.xlu0 %975
      %v977 = vsel %vm712, %v672, 0.0
      %978 = vadd.xlane.f32.xlu0 %v977
      %v979 = vpop.xlane.xlu0 %978
      %v980 = vsel %vm712, %v673, 0.0
      %981 = vadd.xlane.f32.xlu0 %v980
      %v982 = vpop.xlane.xlu0 %981
      %v983 = vsel %vm712, %v674, 0.0
      %984 = vadd.xlane.f32.xlu0 %v983
      %v985 = vpop.xlane.xlu0 %984
      %v986 = vsel %vm712, %v675, 0.0
      %987 = vadd.xlane.f32.xlu0 %v986
      %v988 = vpop.xlane.xlu0 %987
      %v989 = vsel %vm712, %v676, 0.0
      %990 = vadd.xlane.f32.xlu0 %v989
      %v991 = vpop.xlane.xlu0 %990
      %v992 = vsel %vm712, %v677, 0.0
      %993 = vadd.xlane.f32.xlu0 %v992
      %v994 = vpop.xlane.xlu0 %993
      %v995 = vsel %vm712, %v678, 0.0
      %996 = vadd.xlane.f32.xlu0 %v995
      %v997 = vpop.xlane.xlu0 %996
      %v998 = vsel %vm712, %v679, 0.0
      %999 = vadd.xlane.f32.xlu0 %v998
      %v1000 = vpop.xlane.xlu0 %999
      %v1001 = vsel %vm712, %v680, 0.0
      %1002 = vadd.xlane.f32.xlu0 %v1001
      %v1003 = vpop.xlane.xlu0 %1002
      %v1004 = vsel %vm712, %v681, 0.0
      %1005 = vadd.xlane.f32.xlu0 %v1004
      %v1006 = vpop.xlane.xlu0 %1005
      %v1007 = vsel %vm712, %v682, 0.0
      %1008 = vadd.xlane.f32.xlu0 %v1007
      %v1009 = vpop.xlane.xlu0 %1008
      %v1010 = vsel %vm712, %v683, 0.0
      %1011 = vadd.xlane.f32.xlu0 %v1010
      %v1012 = vpop.xlane.xlu0 %1011
      %v1013 = vsel %vm712, %v684, 0.0
      %1014 = vadd.xlane.f32.xlu0 %v1013
      %v1015 = vpop.xlane.xlu0 %1014
      %v1016 = vsel %vm712, %v685, 0.0
      %1017 = vadd.xlane.f32.xlu0 %v1016
      %v1018 = vpop.xlane.xlu0 %1017
      %v1019 = vsel %vm712, %v686, 0.0
      %1020 = vadd.xlane.f32.xlu0 %v1019
      %v1021 = vpop.xlane.xlu0 %1020
      %v1022 = vsel %vm712, %v687, 0.0
      %1023 = vadd.xlane.f32.xlu0 %v1022
      %v1024 = vpop.xlane.xlu0 %1023
      %v1025 = vsel %vm712, %v688, 0.0
      %1026 = vadd.xlane.f32.xlu0 %v1025
      %v1027 = vpop.xlane.xlu0 %1026
      %v1028 = vsel %vm712, %v689, 0.0
      %1029 = vadd.xlane.f32.xlu0 %v1028
      %v1030 = vpop.xlane.xlu0 %1029
      %v1031 = vsel %vm712, %v690, 0.0
      %1032 = vadd.xlane.f32.xlu0 %v1031
      %v1033 = vpop.xlane.xlu0 %1032
      %v1034 = vsel %vm712, %v691, 0.0
      %1035 = vadd.xlane.f32.xlu0 %v1034
      %v1036 = vpop.xlane.xlu0 %1035
      %v1037 = vsel %vm712, %v692, 0.0
      %1038 = vadd.xlane.f32.xlu0 %v1037
      %v1039 = vpop.xlane.xlu0 %1038
      %v1040 = vsel %vm712, %v693, 0.0
      %1041 = vadd.xlane.f32.xlu0 %v1040
      %v1042 = vpop.xlane.xlu0 %1041
      %v1043 = vsel %vm712, %v694, 0.0
      %1044 = vadd.xlane.f32.xlu0 %v1043
      %v1045 = vpop.xlane.xlu0 %1044
      %v1046 = vsel %vm712, %v695, 0.0
      %1047 = vadd.xlane.f32.xlu0 %v1046
      %v1048 = vpop.xlane.xlu0 %1047
      %v1049 = vsel %vm712, %v696, 0.0
      %1050 = vadd.xlane.f32.xlu0 %v1049
      %v1051 = vpop.xlane.xlu0 %1050
      %v1052 = vsel %vm712, %v697, 0.0
      %1053 = vadd.xlane.f32.xlu0 %v1052
      %v1054 = vpop.xlane.xlu0 %1053
      %v1055 = vsel %vm712, %v698, 0.0
      %1056 = vadd.xlane.f32.xlu0 %v1055
      %v1057 = vpop.xlane.xlu0 %1056
      %v1058 = vsel %vm712, %v699, 0.0
      %1059 = vadd.xlane.f32.xlu0 %v1058
      %v1060 = vpop.xlane.xlu0 %1059
      %v1061 = vsel %vm712, %v700, 0.0
      %1062 = vadd.xlane.f32.xlu0 %v1061
      %v1063 = vpop.xlane.xlu0 %1062
      %v1064 = vsel %vm712, %v701, 0.0
      %1065 = vadd.xlane.f32.xlu0 %v1064
      %v1066 = vpop.xlane.xlu0 %1065
      %v1067 = vsel %vm712, %v702, 0.0
      %1068 = vadd.xlane.f32.xlu0 %v1067
      %v1069 = vpop.xlane.xlu0 %1068
      %v1070 = vsel %vm712, %v703, 0.0
      %1071 = vadd.xlane.f32.xlu0 %v1070
      %v1072 = vpop.xlane.xlu0 %1071
      %v1073 = vsel %vm712, %v704, 0.0
      %1074 = vadd.xlane.f32.xlu0 %v1073
      %v1075 = vpop.xlane.xlu0 %1074
      %v1076 = vsel %vm712, %v705, 0.0
      %1077 = vadd.xlane.f32.xlu0 %v1076
      %v1078 = vpop.xlane.xlu0 %1077
      %v1079 = vsel %vm712, %v706, 0.0
      %1080 = vadd.xlane.f32.xlu0 %v1079
      %v1081 = vpop.xlane.xlu0 %1080
      %v1082 = vsel %vm712, %v707, 0.0
      %1083 = vadd.xlane.f32.xlu0 %v1082
      %v1084 = vpop.xlane.xlu0 %1083
      %v1085 = vsel %vm712, %v708, 0.0
      %1086 = vadd.xlane.f32.xlu0 %v1085
      %v1087 = vpop.xlane.xlu0 %1086
      %v1088 = vsel %vm712, %v709, 0.0
      %1089 = vadd.xlane.f32.xlu0 %v1088
      %v1090 = vpop.xlane.xlu0 %1089
      %v1091 = vsel %vm712, %v710, 0.0
      %1092 = vadd.xlane.f32.xlu0 %v1091
      %v1093 = vpop.xlane.xlu0 %1092
      %v1094 = vsel %vm712, %v711, 0.0
      %1095 = vadd.xlane.f32.xlu0 %v1094
      %v1096 = vpop.xlane.xlu0 %1095
      %v1097 = vrcp.pop 32.0
      %v1098 = vmul.f32 %v715, %v1097
      %v1099 = vmul.f32 %v718, %v1097
      %v1100 = vmul.f32 %v721, %v1097
      %v1101 = vmul.f32 %v724, %v1097
      %v1102 = vmul.f32 %v727, %v1097
      %v1103 = vmul.f32 %v730, %v1097
      %v1104 = vmul.f32 %v733, %v1097
      %v1105 = vmul.f32 %v736, %v1097
      %v1106 = vmul.f32 %v739, %v1097
      %v1107 = vmul.f32 %v742, %v1097
      %v1108 = vmul.f32 %v745, %v1097
      %v1109 = vmul.f32 %v748, %v1097
      %v1110 = vmul.f32 %v751, %v1097
      %v1111 = vmul.f32 %v754, %v1097
      %v1112 = vmul.f32 %v757, %v1097
      %v1113 = vmul.f32 %v760, %v1097
      %v1114 = vmul.f32 %v763, %v1097
      %v1115 = vmul.f32 %v766, %v1097
      %v1116 = vmul.f32 %v769, %v1097
      %v1117 = vmul.f32 %v772, %v1097
      %v1118 = vmul.f32 %v775, %v1097
      %v1119 = vmul.f32 %v778, %v1097
      %v1120 = vmul.f32 %v781, %v1097
      %v1121 = vmul.f32 %v784, %v1097
      %v1122 = vmul.f32 %v787, %v1097
      %v1123 = vmul.f32 %v790, %v1097
      %v1124 = vmul.f32 %v793, %v1097
      %v1125 = vmul.f32 %v796, %v1097
      %v1126 = vmul.f32 %v799, %v1097
      %v1127 = vmul.f32 %v802, %v1097
      %v1128 = vmul.f32 %v805, %v1097
      %v1129 = vmul.f32 %v808, %v1097
      %v1130 = vmul.f32 %v811, %v1097
      %v1131 = vmul.f32 %v814, %v1097
      %v1132 = vmul.f32 %v817, %v1097
      %v1133 = vmul.f32 %v820, %v1097
      %v1134 = vmul.f32 %v823, %v1097
      %v1135 = vmul.f32 %v826, %v1097
      %v1136 = vmul.f32 %v829, %v1097
      %v1137 = vmul.f32 %v832, %v1097
      %v1138 = vmul.f32 %v835, %v1097
      %v1139 = vmul.f32 %v838, %v1097
      %v1140 = vmul.f32 %v841, %v1097
      %v1141 = vmul.f32 %v844, %v1097
      %v1142 = vmul.f32 %v847, %v1097
      %v1143 = vmul.f32 %v850, %v1097
      %v1144 = vmul.f32 %v853, %v1097
      %v1145 = vmul.f32 %v856, %v1097
      %v1146 = vmul.f32 %v859, %v1097
      %v1147 = vmul.f32 %v862, %v1097
      %v1148 = vmul.f32 %v865, %v1097
      %v1149 = vmul.f32 %v868, %v1097
      %v1150 = vmul.f32 %v871, %v1097
      %v1151 = vmul.f32 %v874, %v1097
      %v1152 = vmul.f32 %v877, %v1097
      %v1153 = vmul.f32 %v880, %v1097
      %v1154 = vmul.f32 %v883, %v1097
      %v1155 = vmul.f32 %v886, %v1097
      %v1156 = vmul.f32 %v889, %v1097
      %v1157 = vmul.f32 %v892, %v1097
      %v1158 = vmul.f32 %v895, %v1097
      %v1159 = vmul.f32 %v898, %v1097
      %v1160 = vmul.f32 %v901, %v1097
      %v1161 = vmul.f32 %v904, %v1097
      %v1162 = vmul.f32 %v907, %v1097
      %v1163 = vmul.f32 %v910, %v1097
      %v1164 = vmul.f32 %v913, %v1097
      %v1165 = vmul.f32 %v916, %v1097
      %v1166 = vmul.f32 %v919, %v1097
      %v1167 = vmul.f32 %v922, %v1097
      %v1168 = vmul.f32 %v925, %v1097
      %v1169 = vmul.f32 %v928, %v1097
      %v1170 = vmul.f32 %v931, %v1097
      %v1171 = vmul.f32 %v934, %v1097
      %v1172 = vmul.f32 %v937, %v1097
      %v1173 = vmul.f32 %v940, %v1097
      %v1174 = vmul.f32 %v943, %v1097
      %v1175 = vmul.f32 %v946, %v1097
      %v1176 = vmul.f32 %v949, %v1097
      %v1177 = vmul.f32 %v952, %v1097
      %v1178 = vmul.f32 %v955, %v1097
      %v1179 = vmul.f32 %v958, %v1097
      %v1180 = vmul.f32 %v961, %v1097
      %v1181 = vmul.f32 %v964, %v1097
      %v1182 = vmul.f32 %v967, %v1097
      %v1183 = vmul.f32 %v970, %v1097
      %v1184 = vmul.f32 %v973, %v1097
      %v1185 = vmul.f32 %v976, %v1097
      %v1186 = vmul.f32 %v979, %v1097
      %v1187 = vmul.f32 %v982, %v1097
      %v1188 = vmul.f32 %v985, %v1097
      %v1189 = vmul.f32 %v988, %v1097
      %v1190 = vmul.f32 %v991, %v1097
      %v1191 = vmul.f32 %v994, %v1097
      %v1192 = vmul.f32 %v997, %v1097
      %v1193 = vmul.f32 %v1000, %v1097
      %v1194 = vmul.f32 %v1003, %v1097
      %v1195 = vmul.f32 %v1006, %v1097
      %v1196 = vmul.f32 %v1009, %v1097
      %v1197 = vmul.f32 %v1012, %v1097
      %v1198 = vmul.f32 %v1015, %v1097
      %v1199 = vmul.f32 %v1018, %v1097
      %v1200 = vmul.f32 %v1021, %v1097
      %v1201 = vmul.f32 %v1024, %v1097
      %v1202 = vmul.f32 %v1027, %v1097
      %v1203 = vmul.f32 %v1030, %v1097
      %v1204 = vmul.f32 %v1033, %v1097
      %v1205 = vmul.f32 %v1036, %v1097
      %v1206 = vmul.f32 %v1039, %v1097
      %v1207 = vmul.f32 %v1042, %v1097
      %v1208 = vmul.f32 %v1045, %v1097
      %v1209 = vmul.f32 %v1048, %v1097
      %v1210 = vmul.f32 %v1051, %v1097
      %v1211 = vmul.f32 %v1054, %v1097
      %v1212 = vmul.f32 %v1057, %v1097
      %v1213 = vmul.f32 %v1060, %v1097
      %v1214 = vmul.f32 %v1063, %v1097
      %v1215 = vmul.f32 %v1066, %v1097
      %v1216 = vmul.f32 %v1069, %v1097
      %v1217 = vmul.f32 %v1072, %v1097
      %v1218 = vmul.f32 %v1075, %v1097
      %v1219 = vmul.f32 %v1078, %v1097
      %v1220 = vmul.f32 %v1081, %v1097
      %v1221 = vmul.f32 %v1084, %v1097
      %v1222 = vmul.f32 %v1087, %v1097
      %v1223 = vmul.f32 %v1090, %v1097
      %v1224 = vmul.f32 %v1093, %v1097
      %v1225 = vmul.f32 %v1096, %v1097
      %v1226 = vsub.f32 %v584, %v1098
      %v1227 = vsub.f32 %v585, %v1099
      %v1228 = vsub.f32 %v586, %v1100
      %v1229 = vsub.f32 %v587, %v1101
      %v1230 = vsub.f32 %v588, %v1102
      %v1231 = vsub.f32 %v589, %v1103
      %v1232 = vsub.f32 %v590, %v1104
      %v1233 = vsub.f32 %v591, %v1105
      %v1234 = vsub.f32 %v592, %v1106
      %v1235 = vsub.f32 %v593, %v1107
      %v1236 = vsub.f32 %v594, %v1108
      %v1237 = vsub.f32 %v595, %v1109
      %v1238 = vsub.f32 %v596, %v1110
      %v1239 = vsub.f32 %v597, %v1111
      %v1240 = vsub.f32 %v598, %v1112
      %v1241 = vsub.f32 %v599, %v1113
      %v1242 = vsub.f32 %v600, %v1114
      %v1243 = vsub.f32 %v601, %v1115
      %v1244 = vsub.f32 %v602, %v1116
      %v1245 = vsub.f32 %v603, %v1117
      %v1246 = vsub.f32 %v604, %v1118
      %v1247 = vsub.f32 %v605, %v1119
      %v1248 = vsub.f32 %v606, %v1120
      %v1249 = vsub.f32 %v607, %v1121
      %v1250 = vsub.f32 %v608, %v1122
      %v1251 = vsub.f32 %v609, %v1123
      %v1252 = vsub.f32 %v610, %v1124
      %v1253 = vsub.f32 %v611, %v1125
      %v1254 = vsub.f32 %v612, %v1126
      %v1255 = vsub.f32 %v613, %v1127
      %v1256 = vsub.f32 %v614, %v1128
      %v1257 = vsub.f32 %v615, %v1129
      %v1258 = vsub.f32 %v616, %v1130
      %v1259 = vsub.f32 %v617, %v1131
      %v1260 = vsub.f32 %v618, %v1132
      %v1261 = vsub.f32 %v619, %v1133
      %v1262 = vsub.f32 %v620, %v1134
      %v1263 = vsub.f32 %v621, %v1135
      %v1264 = vsub.f32 %v622, %v1136
      %v1265 = vsub.f32 %v623, %v1137
      %v1266 = vsub.f32 %v624, %v1138
      %v1267 = vsub.f32 %v625, %v1139
      %v1268 = vsub.f32 %v626, %v1140
      %v1269 = vsub.f32 %v627, %v1141
      %v1270 = vsub.f32 %v628, %v1142
      %v1271 = vsub.f32 %v629, %v1143
      %v1272 = vsub.f32 %v630, %v1144
      %v1273 = vsub.f32 %v631, %v1145
      %v1274 = vsub.f32 %v632, %v1146
      %v1275 = vsub.f32 %v633, %v1147
      %v1276 = vsub.f32 %v634, %v1148
      %v1277 = vsub.f32 %v635, %v1149
      %v1278 = vsub.f32 %v636, %v1150
      %v1279 = vsub.f32 %v637, %v1151
      %v1280 = vsub.f32 %v638, %v1152
      %v1281 = vsub.f32 %v639, %v1153
      %v1282 = vsub.f32 %v640, %v1154
      %v1283 = vsub.f32 %v641, %v1155
      %v1284 = vsub.f32 %v642, %v1156
      %v1285 = vsub.f32 %v643, %v1157
      %v1286 = vsub.f32 %v644, %v1158
      %v1287 = vsub.f32 %v645, %v1159
      %v1288 = vsub.f32 %v646, %v1160
      %v1289 = vsub.f32 %v647, %v1161
      %v1290 = vsub.f32 %v648, %v1162
      %v1291 = vsub.f32 %v649, %v1163
      %v1292 = vsub.f32 %v650, %v1164
      %v1293 = vsub.f32 %v651, %v1165
      %v1294 = vsub.f32 %v652, %v1166
      %v1295 = vsub.f32 %v653, %v1167
      %v1296 = vsub.f32 %v654, %v1168
      %v1297 = vsub.f32 %v655, %v1169
      %v1298 = vsub.f32 %v656, %v1170
      %v1299 = vsub.f32 %v657, %v1171
      %v1300 = vsub.f32 %v658, %v1172
      %v1301 = vsub.f32 %v659, %v1173
      %v1302 = vsub.f32 %v660, %v1174
      %v1303 = vsub.f32 %v661, %v1175
      %v1304 = vsub.f32 %v662, %v1176
      %v1305 = vsub.f32 %v663, %v1177
      %v1306 = vsub.f32 %v664, %v1178
      %v1307 = vsub.f32 %v665, %v1179
      %v1308 = vsub.f32 %v666, %v1180
      %v1309 = vsub.f32 %v667, %v1181
      %v1310 = vsub.f32 %v668, %v1182
      %v1311 = vsub.f32 %v669, %v1183
      %v1312 = vsub.f32 %v670, %v1184
      %v1313 = vsub.f32 %v671, %v1185
      %v1314 = vsub.f32 %v672, %v1186
      %v1315 = vsub.f32 %v673, %v1187
      %v1316 = vsub.f32 %v674, %v1188
      %v1317 = vsub.f32 %v675, %v1189
      %v1318 = vsub.f32 %v676, %v1190
      %v1319 = vsub.f32 %v677, %v1191
      %v1320 = vsub.f32 %v678, %v1192
      %v1321 = vsub.f32 %v679, %v1193
      %v1322 = vsub.f32 %v680, %v1194
      %v1323 = vsub.f32 %v681, %v1195
      %v1324 = vsub.f32 %v682, %v1196
      %v1325 = vsub.f32 %v683, %v1197
      %v1326 = vsub.f32 %v684, %v1198
      %v1327 = vsub.f32 %v685, %v1199
      %v1328 = vsub.f32 %v686, %v1200
      %v1329 = vsub.f32 %v687, %v1201
      %v1330 = vsub.f32 %v688, %v1202
      %v1331 = vsub.f32 %v689, %v1203
      %v1332 = vsub.f32 %v690, %v1204
      %v1333 = vsub.f32 %v691, %v1205
      %v1334 = vsub.f32 %v692, %v1206
      %v1335 = vsub.f32 %v693, %v1207
      %v1336 = vsub.f32 %v694, %v1208
      %v1337 = vsub.f32 %v695, %v1209
      %v1338 = vsub.f32 %v696, %v1210
      %v1339 = vsub.f32 %v697, %v1211
      %v1340 = vsub.f32 %v698, %v1212
      %v1341 = vsub.f32 %v699, %v1213
      %v1342 = vsub.f32 %v700, %v1214
      %v1343 = vsub.f32 %v701, %v1215
      %v1344 = vsub.f32 %v702, %v1216
      %v1345 = vsub.f32 %v703, %v1217
      %v1346 = vsub.f32 %v704, %v1218
      %v1347 = vsub.f32 %v705, %v1219
      %v1348 = vsub.f32 %v706, %v1220
      %v1349 = vsub.f32 %v707, %v1221
      %v1350 = vsub.f32 %v708, %v1222
      %v1351 = vsub.f32 %v709, %v1223
      %v1352 = vsub.f32 %v710, %v1224
      %v1353 = vsub.f32 %v711, %v1225
      %v1354 = vmul.f32 %v1226, %v1226
      %v1355 = vmul.f32 %v1227, %v1227
      %v1356 = vmul.f32 %v1228, %v1228
      %v1357 = vmul.f32 %v1229, %v1229
      %v1358 = vmul.f32 %v1230, %v1230
      %v1359 = vmul.f32 %v1231, %v1231
      %v1360 = vmul.f32 %v1232, %v1232
      %v1361 = vmul.f32 %v1233, %v1233
      %v1362 = vmul.f32 %v1234, %v1234
      %v1363 = vmul.f32 %v1235, %v1235
      %v1364 = vmul.f32 %v1236, %v1236
      %v1365 = vmul.f32 %v1237, %v1237
      %v1366 = vmul.f32 %v1238, %v1238
      %v1367 = vmul.f32 %v1239, %v1239
      %v1368 = vmul.f32 %v1240, %v1240
      %v1369 = vmul.f32 %v1241, %v1241
      %v1370 = vmul.f32 %v1242, %v1242
      %v1371 = vmul.f32 %v1243, %v1243
      %v1372 = vmul.f32 %v1244, %v1244
      %v1373 = vmul.f32 %v1245, %v1245
      %v1374 = vmul.f32 %v1246, %v1246
      %v1375 = vmul.f32 %v1247, %v1247
      %v1376 = vmul.f32 %v1248, %v1248
      %v1377 = vmul.f32 %v1249, %v1249
      %v1378 = vmul.f32 %v1250, %v1250
      %v1379 = vmul.f32 %v1251, %v1251
      %v1380 = vmul.f32 %v1252, %v1252
      %v1381 = vmul.f32 %v1253, %v1253
      %v1382 = vmul.f32 %v1254, %v1254
      %v1383 = vmul.f32 %v1255, %v1255
      %v1384 = vmul.f32 %v1256, %v1256
      %v1385 = vmul.f32 %v1257, %v1257
      %v1386 = vmul.f32 %v1258, %v1258
      %v1387 = vmul.f32 %v1259, %v1259
      %v1388 = vmul.f32 %v1260, %v1260
      %v1389 = vmul.f32 %v1261, %v1261
      %v1390 = vmul.f32 %v1262, %v1262
      %v1391 = vmul.f32 %v1263, %v1263
      %v1392 = vmul.f32 %v1264, %v1264
      %v1393 = vmul.f32 %v1265, %v1265
      %v1394 = vmul.f32 %v1266, %v1266
      %v1395 = vmul.f32 %v1267, %v1267
      %v1396 = vmul.f32 %v1268, %v1268
      %v1397 = vmul.f32 %v1269, %v1269
      %v1398 = vmul.f32 %v1270, %v1270
      %v1399 = vmul.f32 %v1271, %v1271
      %v1400 = vmul.f32 %v1272, %v1272
      %v1401 = vmul.f32 %v1273, %v1273
      %v1402 = vmul.f32 %v1274, %v1274
      %v1403 = vmul.f32 %v1275, %v1275
      %v1404 = vmul.f32 %v1276, %v1276
      %v1405 = vmul.f32 %v1277, %v1277
      %v1406 = vmul.f32 %v1278, %v1278
      %v1407 = vmul.f32 %v1279, %v1279
      %v1408 = vmul.f32 %v1280, %v1280
      %v1409 = vmul.f32 %v1281, %v1281
      %v1410 = vmul.f32 %v1282, %v1282
      %v1411 = vmul.f32 %v1283, %v1283
      %v1412 = vmul.f32 %v1284, %v1284
      %v1413 = vmul.f32 %v1285, %v1285
      %v1414 = vmul.f32 %v1286, %v1286
      %v1415 = vmul.f32 %v1287, %v1287
      %v1416 = vmul.f32 %v1288, %v1288
      %v1417 = vmul.f32 %v1289, %v1289
      %v1418 = vmul.f32 %v1290, %v1290
      %v1419 = vmul.f32 %v1291, %v1291
      %v1420 = vmul.f32 %v1292, %v1292
      %v1421 = vmul.f32 %v1293, %v1293
      %v1422 = vmul.f32 %v1294, %v1294
      %v1423 = vmul.f32 %v1295, %v1295
      %v1424 = vmul.f32 %v1296, %v1296
      %v1425 = vmul.f32 %v1297, %v1297
      %v1426 = vmul.f32 %v1298, %v1298
      %v1427 = vmul.f32 %v1299, %v1299
      %v1428 = vmul.f32 %v1300, %v1300
      %v1429 = vmul.f32 %v1301, %v1301
      %v1430 = vmul.f32 %v1302, %v1302
      %v1431 = vmul.f32 %v1303, %v1303
      %v1432 = vmul.f32 %v1304, %v1304
      %v1433 = vmul.f32 %v1305, %v1305
      %v1434 = vmul.f32 %v1306, %v1306
      %v1435 = vmul.f32 %v1307, %v1307
      %v1436 = vmul.f32 %v1308, %v1308
      %v1437 = vmul.f32 %v1309, %v1309
      %v1438 = vmul.f32 %v1310, %v1310
      %v1439 = vmul.f32 %v1311, %v1311
      %v1440 = vmul.f32 %v1312, %v1312
      %v1441 = vmul.f32 %v1313, %v1313
      %v1442 = vmul.f32 %v1314, %v1314
      %v1443 = vmul.f32 %v1315, %v1315
      %v1444 = vmul.f32 %v1316, %v1316
      %v1445 = vmul.f32 %v1317, %v1317
      %v1446 = vmul.f32 %v1318, %v1318
      %v1447 = vmul.f32 %v1319, %v1319
      %v1448 = vmul.f32 %v1320, %v1320
      %v1449 = vmul.f32 %v1321, %v1321
      %v1450 = vmul.f32 %v1322, %v1322
      %v1451 = vmul.f32 %v1323, %v1323
      %v1452 = vmul.f32 %v1324, %v1324
      %v1453 = vmul.f32 %v1325, %v1325
      %v1454 = vmul.f32 %v1326, %v1326
      %v1455 = vmul.f32 %v1327, %v1327
      %v1456 = vmul.f32 %v1328, %v1328
      %v1457 = vmul.f32 %v1329, %v1329
      %v1458 = vmul.f32 %v1330, %v1330
      %v1459 = vmul.f32 %v1331, %v1331
      %v1460 = vmul.f32 %v1332, %v1332
      %v1461 = vmul.f32 %v1333, %v1333
      %v1462 = vmul.f32 %v1334, %v1334
      %v1463 = vmul.f32 %v1335, %v1335
      %v1464 = vmul.f32 %v1336, %v1336
      %v1465 = vmul.f32 %v1337, %v1337
      %v1466 = vmul.f32 %v1338, %v1338
      %v1467 = vmul.f32 %v1339, %v1339
      %v1468 = vmul.f32 %v1340, %v1340
      %v1469 = vmul.f32 %v1341, %v1341
      %v1470 = vmul.f32 %v1342, %v1342
      %v1471 = vmul.f32 %v1343, %v1343
      %v1472 = vmul.f32 %v1344, %v1344
      %v1473 = vmul.f32 %v1345, %v1345
      %v1474 = vmul.f32 %v1346, %v1346
      %v1475 = vmul.f32 %v1347, %v1347
      %v1476 = vmul.f32 %v1348, %v1348
      %v1477 = vmul.f32 %v1349, %v1349
      %v1478 = vmul.f32 %v1350, %v1350
      %v1479 = vmul.f32 %v1351, %v1351
      %v1480 = vmul.f32 %v1352, %v1352
      %v1481 = vmul.f32 %v1353, %v1353
      %v1482 = vsel %vm712, %v1354, 0.0
      %1483 = vadd.xlane.f32.xlu0 %v1482
      %v1484 = vpop.xlane.xlu0 %1483
      %v1485 = vsel %vm712, %v1355, 0.0
      %1486 = vadd.xlane.f32.xlu0 %v1485
      %v1487 = vpop.xlane.xlu0 %1486
      %v1488 = vsel %vm712, %v1356, 0.0
      %1489 = vadd.xlane.f32.xlu0 %v1488
      %v1490 = vpop.xlane.xlu0 %1489
      %v1491 = vsel %vm712, %v1357, 0.0
      %1492 = vadd.xlane.f32.xlu0 %v1491
      %v1493 = vpop.xlane.xlu0 %1492
      %v1494 = vsel %vm712, %v1358, 0.0
      %1495 = vadd.xlane.f32.xlu0 %v1494
      %v1496 = vpop.xlane.xlu0 %1495
      %v1497 = vsel %vm712, %v1359, 0.0
      %1498 = vadd.xlane.f32.xlu0 %v1497
      %v1499 = vpop.xlane.xlu0 %1498
      %v1500 = vsel %vm712, %v1360, 0.0
      %1501 = vadd.xlane.f32.xlu0 %v1500
      %v1502 = vpop.xlane.xlu0 %1501
      %v1503 = vsel %vm712, %v1361, 0.0
      %1504 = vadd.xlane.f32.xlu0 %v1503
      %v1505 = vpop.xlane.xlu0 %1504
      %v1506 = vsel %vm712, %v1362, 0.0
      %1507 = vadd.xlane.f32.xlu0 %v1506
      %v1508 = vpop.xlane.xlu0 %1507
      %v1509 = vsel %vm712, %v1363, 0.0
      %1510 = vadd.xlane.f32.xlu0 %v1509
      %v1511 = vpop.xlane.xlu0 %1510
      %v1512 = vsel %vm712, %v1364, 0.0
      %1513 = vadd.xlane.f32.xlu0 %v1512
      %v1514 = vpop.xlane.xlu0 %1513
      %v1515 = vsel %vm712, %v1365, 0.0
      %1516 = vadd.xlane.f32.xlu0 %v1515
      %v1517 = vpop.xlane.xlu0 %1516
      %v1518 = vsel %vm712, %v1366, 0.0
      %1519 = vadd.xlane.f32.xlu0 %v1518
      %v1520 = vpop.xlane.xlu0 %1519
      %v1521 = vsel %vm712, %v1367, 0.0
      %1522 = vadd.xlane.f32.xlu0 %v1521
      %v1523 = vpop.xlane.xlu0 %1522
      %v1524 = vsel %vm712, %v1368, 0.0
      %1525 = vadd.xlane.f32.xlu0 %v1524
      %v1526 = vpop.xlane.xlu0 %1525
      %v1527 = vsel %vm712, %v1369, 0.0
      %1528 = vadd.xlane.f32.xlu0 %v1527
      %v1529 = vpop.xlane.xlu0 %1528
      %v1530 = vsel %vm712, %v1370, 0.0
      %1531 = vadd.xlane.f32.xlu0 %v1530
      %v1532 = vpop.xlane.xlu0 %1531
      %v1533 = vsel %vm712, %v1371, 0.0
      %1534 = vadd.xlane.f32.xlu0 %v1533
      %v1535 = vpop.xlane.xlu0 %1534
      %v1536 = vsel %vm712, %v1372, 0.0
      %1537 = vadd.xlane.f32.xlu0 %v1536
      %v1538 = vpop.xlane.xlu0 %1537
      %v1539 = vsel %vm712, %v1373, 0.0
      %1540 = vadd.xlane.f32.xlu0 %v1539
      %v1541 = vpop.xlane.xlu0 %1540
      %v1542 = vsel %vm712, %v1374, 0.0
      %1543 = vadd.xlane.f32.xlu0 %v1542
      %v1544 = vpop.xlane.xlu0 %1543
      %v1545 = vsel %vm712, %v1375, 0.0
      %1546 = vadd.xlane.f32.xlu0 %v1545
      %v1547 = vpop.xlane.xlu0 %1546
      %v1548 = vsel %vm712, %v1376, 0.0
      %1549 = vadd.xlane.f32.xlu0 %v1548
      %v1550 = vpop.xlane.xlu0 %1549
      %v1551 = vsel %vm712, %v1377, 0.0
      %1552 = vadd.xlane.f32.xlu0 %v1551
      %v1553 = vpop.xlane.xlu0 %1552
      %v1554 = vsel %vm712, %v1378, 0.0
      %1555 = vadd.xlane.f32.xlu0 %v1554
      %v1556 = vpop.xlane.xlu0 %1555
      %v1557 = vsel %vm712, %v1379, 0.0
      %1558 = vadd.xlane.f32.xlu0 %v1557
      %v1559 = vpop.xlane.xlu0 %1558
      %v1560 = vsel %vm712, %v1380, 0.0
      %1561 = vadd.xlane.f32.xlu0 %v1560
      %v1562 = vpop.xlane.xlu0 %1561
      %v1563 = vsel %vm712, %v1381, 0.0
      %1564 = vadd.xlane.f32.xlu0 %v1563
      %v1565 = vpop.xlane.xlu0 %1564
      %v1566 = vsel %vm712, %v1382, 0.0
      %1567 = vadd.xlane.f32.xlu0 %v1566
      %v1568 = vpop.xlane.xlu0 %1567
      %v1569 = vsel %vm712, %v1383, 0.0
      %1570 = vadd.xlane.f32.xlu0 %v1569
      %v1571 = vpop.xlane.xlu0 %1570
      %v1572 = vsel %vm712, %v1384, 0.0
      %1573 = vadd.xlane.f32.xlu0 %v1572
      %v1574 = vpop.xlane.xlu0 %1573
      %v1575 = vsel %vm712, %v1385, 0.0
      %1576 = vadd.xlane.f32.xlu0 %v1575
      %v1577 = vpop.xlane.xlu0 %1576
      %v1578 = vsel %vm712, %v1386, 0.0
      %1579 = vadd.xlane.f32.xlu0 %v1578
      %v1580 = vpop.xlane.xlu0 %1579
      %v1581 = vsel %vm712, %v1387, 0.0
      %1582 = vadd.xlane.f32.xlu0 %v1581
      %v1583 = vpop.xlane.xlu0 %1582
      %v1584 = vsel %vm712, %v1388, 0.0
      %1585 = vadd.xlane.f32.xlu0 %v1584
      %v1586 = vpop.xlane.xlu0 %1585
      %v1587 = vsel %vm712, %v1389, 0.0
      %1588 = vadd.xlane.f32.xlu0 %v1587
      %v1589 = vpop.xlane.xlu0 %1588
      %v1590 = vsel %vm712, %v1390, 0.0
      %1591 = vadd.xlane.f32.xlu0 %v1590
      %v1592 = vpop.xlane.xlu0 %1591
      %v1593 = vsel %vm712, %v1391, 0.0
      %1594 = vadd.xlane.f32.xlu0 %v1593
      %v1595 = vpop.xlane.xlu0 %1594
      %v1596 = vsel %vm712, %v1392, 0.0
      %1597 = vadd.xlane.f32.xlu0 %v1596
      %v1598 = vpop.xlane.xlu0 %1597
      %v1599 = vsel %vm712, %v1393, 0.0
      %1600 = vadd.xlane.f32.xlu0 %v1599
      %v1601 = vpop.xlane.xlu0 %1600
      %v1602 = vsel %vm712, %v1394, 0.0
      %1603 = vadd.xlane.f32.xlu0 %v1602
      %v1604 = vpop.xlane.xlu0 %1603
      %v1605 = vsel %vm712, %v1395, 0.0
      %1606 = vadd.xlane.f32.xlu0 %v1605
      %v1607 = vpop.xlane.xlu0 %1606
      %v1608 = vsel %vm712, %v1396, 0.0
      %1609 = vadd.xlane.f32.xlu0 %v1608
      %v1610 = vpop.xlane.xlu0 %1609
      %v1611 = vsel %vm712, %v1397, 0.0
      %1612 = vadd.xlane.f32.xlu0 %v1611
      %v1613 = vpop.xlane.xlu0 %1612
      %v1614 = vsel %vm712, %v1398, 0.0
      %1615 = vadd.xlane.f32.xlu0 %v1614
      %v1616 = vpop.xlane.xlu0 %1615
      %v1617 = vsel %vm712, %v1399, 0.0
      %1618 = vadd.xlane.f32.xlu0 %v1617
      %v1619 = vpop.xlane.xlu0 %1618
      %v1620 = vsel %vm712, %v1400, 0.0
      %1621 = vadd.xlane.f32.xlu0 %v1620
      %v1622 = vpop.xlane.xlu0 %1621
      %v1623 = vsel %vm712, %v1401, 0.0
      %1624 = vadd.xlane.f32.xlu0 %v1623
      %v1625 = vpop.xlane.xlu0 %1624
      %v1626 = vsel %vm712, %v1402, 0.0
      %1627 = vadd.xlane.f32.xlu0 %v1626
      %v1628 = vpop.xlane.xlu0 %1627
      %v1629 = vsel %vm712, %v1403, 0.0
      %1630 = vadd.xlane.f32.xlu0 %v1629
      %v1631 = vpop.xlane.xlu0 %1630
      %v1632 = vsel %vm712, %v1404, 0.0
      %1633 = vadd.xlane.f32.xlu0 %v1632
      %v1634 = vpop.xlane.xlu0 %1633
      %v1635 = vsel %vm712, %v1405, 0.0
      %1636 = vadd.xlane.f32.xlu0 %v1635
      %v1637 = vpop.xlane.xlu0 %1636
      %v1638 = vsel %vm712, %v1406, 0.0
      %1639 = vadd.xlane.f32.xlu0 %v1638
      %v1640 = vpop.xlane.xlu0 %1639
      %v1641 = vsel %vm712, %v1407, 0.0
      %1642 = vadd.xlane.f32.xlu0 %v1641
      %v1643 = vpop.xlane.xlu0 %1642
      %v1644 = vsel %vm712, %v1408, 0.0
      %1645 = vadd.xlane.f32.xlu0 %v1644
      %v1646 = vpop.xlane.xlu0 %1645
      %v1647 = vsel %vm712, %v1409, 0.0
      %1648 = vadd.xlane.f32.xlu0 %v1647
      %v1649 = vpop.xlane.xlu0 %1648
      %v1650 = vsel %vm712, %v1410, 0.0
      %1651 = vadd.xlane.f32.xlu0 %v1650
      %v1652 = vpop.xlane.xlu0 %1651
      %v1653 = vsel %vm712, %v1411, 0.0
      %1654 = vadd.xlane.f32.xlu0 %v1653
      %v1655 = vpop.xlane.xlu0 %1654
      %v1656 = vsel %vm712, %v1412, 0.0
      %1657 = vadd.xlane.f32.xlu0 %v1656
      %v1658 = vpop.xlane.xlu0 %1657
      %v1659 = vsel %vm712, %v1413, 0.0
      %1660 = vadd.xlane.f32.xlu0 %v1659
      %v1661 = vpop.xlane.xlu0 %1660
      %v1662 = vsel %vm712, %v1414, 0.0
      %1663 = vadd.xlane.f32.xlu0 %v1662
      %v1664 = vpop.xlane.xlu0 %1663
      %v1665 = vsel %vm712, %v1415, 0.0
      %1666 = vadd.xlane.f32.xlu0 %v1665
      %v1667 = vpop.xlane.xlu0 %1666
      %v1668 = vsel %vm712, %v1416, 0.0
      %1669 = vadd.xlane.f32.xlu0 %v1668
      %v1670 = vpop.xlane.xlu0 %1669
      %v1671 = vsel %vm712, %v1417, 0.0
      %1672 = vadd.xlane.f32.xlu0 %v1671
      %v1673 = vpop.xlane.xlu0 %1672
      %v1674 = vsel %vm712, %v1418, 0.0
      %1675 = vadd.xlane.f32.xlu0 %v1674
      %v1676 = vpop.xlane.xlu0 %1675
      %v1677 = vsel %vm712, %v1419, 0.0
      %1678 = vadd.xlane.f32.xlu0 %v1677
      %v1679 = vpop.xlane.xlu0 %1678
      %v1680 = vsel %vm712, %v1420, 0.0
      %1681 = vadd.xlane.f32.xlu0 %v1680
      %v1682 = vpop.xlane.xlu0 %1681
      %v1683 = vsel %vm712, %v1421, 0.0
      %1684 = vadd.xlane.f32.xlu0 %v1683
      %v1685 = vpop.xlane.xlu0 %1684
      %v1686 = vsel %vm712, %v1422, 0.0
      %1687 = vadd.xlane.f32.xlu0 %v1686
      %v1688 = vpop.xlane.xlu0 %1687
      %v1689 = vsel %vm712, %v1423, 0.0
      %1690 = vadd.xlane.f32.xlu0 %v1689
      %v1691 = vpop.xlane.xlu0 %1690
      %v1692 = vsel %vm712, %v1424, 0.0
      %1693 = vadd.xlane.f32.xlu0 %v1692
      %v1694 = vpop.xlane.xlu0 %1693
      %v1695 = vsel %vm712, %v1425, 0.0
      %1696 = vadd.xlane.f32.xlu0 %v1695
      %v1697 = vpop.xlane.xlu0 %1696
      %v1698 = vsel %vm712, %v1426, 0.0
      %1699 = vadd.xlane.f32.xlu0 %v1698
      %v1700 = vpop.xlane.xlu0 %1699
      %v1701 = vsel %vm712, %v1427, 0.0
      %1702 = vadd.xlane.f32.xlu0 %v1701
      %v1703 = vpop.xlane.xlu0 %1702
      %v1704 = vsel %vm712, %v1428, 0.0
      %1705 = vadd.xlane.f32.xlu0 %v1704
      %v1706 = vpop.xlane.xlu0 %1705
      %v1707 = vsel %vm712, %v1429, 0.0
      %1708 = vadd.xlane.f32.xlu0 %v1707
      %v1709 = vpop.xlane.xlu0 %1708
      %v1710 = vsel %vm712, %v1430, 0.0
      %1711 = vadd.xlane.f32.xlu0 %v1710
      %v1712 = vpop.xlane.xlu0 %1711
      %v1713 = vsel %vm712, %v1431, 0.0
      %1714 = vadd.xlane.f32.xlu0 %v1713
      %v1715 = vpop.xlane.xlu0 %1714
      %v1716 = vsel %vm712, %v1432, 0.0
      %1717 = vadd.xlane.f32.xlu0 %v1716
      %v1718 = vpop.xlane.xlu0 %1717
      %v1719 = vsel %vm712, %v1433, 0.0
      %1720 = vadd.xlane.f32.xlu0 %v1719
      %v1721 = vpop.xlane.xlu0 %1720
      %v1722 = vsel %vm712, %v1434, 0.0
      %1723 = vadd.xlane.f32.xlu0 %v1722
      %v1724 = vpop.xlane.xlu0 %1723
      %v1725 = vsel %vm712, %v1435, 0.0
      %1726 = vadd.xlane.f32.xlu0 %v1725
      %v1727 = vpop.xlane.xlu0 %1726
      %v1728 = vsel %vm712, %v1436, 0.0
      %1729 = vadd.xlane.f32.xlu0 %v1728
      %v1730 = vpop.xlane.xlu0 %1729
      %v1731 = vsel %vm712, %v1437, 0.0
      %1732 = vadd.xlane.f32.xlu0 %v1731
      %v1733 = vpop.xlane.xlu0 %1732
      %v1734 = vsel %vm712, %v1438, 0.0
      %1735 = vadd.xlane.f32.xlu0 %v1734
      %v1736 = vpop.xlane.xlu0 %1735
      %v1737 = vsel %vm712, %v1439, 0.0
      %1738 = vadd.xlane.f32.xlu0 %v1737
      %v1739 = vpop.xlane.xlu0 %1738
      %v1740 = vsel %vm712, %v1440, 0.0
      %1741 = vadd.xlane.f32.xlu0 %v1740
      %v1742 = vpop.xlane.xlu0 %1741
      %v1743 = vsel %vm712, %v1441, 0.0
      %1744 = vadd.xlane.f32.xlu0 %v1743
      %v1745 = vpop.xlane.xlu0 %1744
      %v1746 = vsel %vm712, %v1442, 0.0
      %1747 = vadd.xlane.f32.xlu0 %v1746
      %v1748 = vpop.xlane.xlu0 %1747
      %v1749 = vsel %vm712, %v1443, 0.0
      %1750 = vadd.xlane.f32.xlu0 %v1749
      %v1751 = vpop.xlane.xlu0 %1750
      %v1752 = vsel %vm712, %v1444, 0.0
      %1753 = vadd.xlane.f32.xlu0 %v1752
      %v1754 = vpop.xlane.xlu0 %1753
      %v1755 = vsel %vm712, %v1445, 0.0
      %1756 = vadd.xlane.f32.xlu0 %v1755
      %v1757 = vpop.xlane.xlu0 %1756
      %v1758 = vsel %vm712, %v1446, 0.0
      %1759 = vadd.xlane.f32.xlu0 %v1758
      %v1760 = vpop.xlane.xlu0 %1759
      %v1761 = vsel %vm712, %v1447, 0.0
      %1762 = vadd.xlane.f32.xlu0 %v1761
      %v1763 = vpop.xlane.xlu0 %1762
      %v1764 = vsel %vm712, %v1448, 0.0
      %1765 = vadd.xlane.f32.xlu0 %v1764
      %v1766 = vpop.xlane.xlu0 %1765
      %v1767 = vsel %vm712, %v1449, 0.0
      %1768 = vadd.xlane.f32.xlu0 %v1767
      %v1769 = vpop.xlane.xlu0 %1768
      %v1770 = vsel %vm712, %v1450, 0.0
      %1771 = vadd.xlane.f32.xlu0 %v1770
      %v1772 = vpop.xlane.xlu0 %1771
      %v1773 = vsel %vm712, %v1451, 0.0
      %1774 = vadd.xlane.f32.xlu0 %v1773
      %v1775 = vpop.xlane.xlu0 %1774
      %v1776 = vsel %vm712, %v1452, 0.0
      %1777 = vadd.xlane.f32.xlu0 %v1776
      %v1778 = vpop.xlane.xlu0 %1777
      %v1779 = vsel %vm712, %v1453, 0.0
      %1780 = vadd.xlane.f32.xlu0 %v1779
      %v1781 = vpop.xlane.xlu0 %1780
      %v1782 = vsel %vm712, %v1454, 0.0
      %1783 = vadd.xlane.f32.xlu0 %v1782
      %v1784 = vpop.xlane.xlu0 %1783
      %v1785 = vsel %vm712, %v1455, 0.0
      %1786 = vadd.xlane.f32.xlu0 %v1785
      %v1787 = vpop.xlane.xlu0 %1786
      %v1788 = vsel %vm712, %v1456, 0.0
      %1789 = vadd.xlane.f32.xlu0 %v1788
      %v1790 = vpop.xlane.xlu0 %1789
      %v1791 = vsel %vm712, %v1457, 0.0
      %1792 = vadd.xlane.f32.xlu0 %v1791
      %v1793 = vpop.xlane.xlu0 %1792
      %v1794 = vsel %vm712, %v1458, 0.0
      %1795 = vadd.xlane.f32.xlu0 %v1794
      %v1796 = vpop.xlane.xlu0 %1795
      %v1797 = vsel %vm712, %v1459, 0.0
      %1798 = vadd.xlane.f32.xlu0 %v1797
      %v1799 = vpop.xlane.xlu0 %1798
      %v1800 = vsel %vm712, %v1460, 0.0
      %1801 = vadd.xlane.f32.xlu0 %v1800
      %v1802 = vpop.xlane.xlu0 %1801
      %v1803 = vsel %vm712, %v1461, 0.0
      %1804 = vadd.xlane.f32.xlu0 %v1803
      %v1805 = vpop.xlane.xlu0 %1804
      %v1806 = vsel %vm712, %v1462, 0.0
      %1807 = vadd.xlane.f32.xlu0 %v1806
      %v1808 = vpop.xlane.xlu0 %1807
      %v1809 = vsel %vm712, %v1463, 0.0
      %1810 = vadd.xlane.f32.xlu0 %v1809
      %v1811 = vpop.xlane.xlu0 %1810
      %v1812 = vsel %vm712, %v1464, 0.0
      %1813 = vadd.xlane.f32.xlu0 %v1812
      %v1814 = vpop.xlane.xlu0 %1813
      %v1815 = vsel %vm712, %v1465, 0.0
      %1816 = vadd.xlane.f32.xlu0 %v1815
      %v1817 = vpop.xlane.xlu0 %1816
      %v1818 = vsel %vm712, %v1466, 0.0
      %1819 = vadd.xlane.f32.xlu0 %v1818
      %v1820 = vpop.xlane.xlu0 %1819
      %v1821 = vsel %vm712, %v1467, 0.0
      %1822 = vadd.xlane.f32.xlu0 %v1821
      %v1823 = vpop.xlane.xlu0 %1822
      %v1824 = vsel %vm712, %v1468, 0.0
      %1825 = vadd.xlane.f32.xlu0 %v1824
      %v1826 = vpop.xlane.xlu0 %1825
      %v1827 = vsel %vm712, %v1469, 0.0
      %1828 = vadd.xlane.f32.xlu0 %v1827
      %v1829 = vpop.xlane.xlu0 %1828
      %v1830 = vsel %vm712, %v1470, 0.0
      %1831 = vadd.xlane.f32.xlu0 %v1830
      %v1832 = vpop.xlane.xlu0 %1831
      %v1833 = vsel %vm712, %v1471, 0.0
      %1834 = vadd.xlane.f32.xlu0 %v1833
      %v1835 = vpop.xlane.xlu0 %1834
      %v1836 = vsel %vm712, %v1472, 0.0
      %1837 = vadd.xlane.f32.xlu0 %v1836
      %v1838 = vpop.xlane.xlu0 %1837
      %v1839 = vsel %vm712, %v1473, 0.0
      %1840 = vadd.xlane.f32.xlu0 %v1839
      %v1841 = vpop.xlane.xlu0 %1840
      %v1842 = vsel %vm712, %v1474, 0.0
      %1843 = vadd.xlane.f32.xlu0 %v1842
      %v1844 = vpop.xlane.xlu0 %1843
      %v1845 = vsel %vm712, %v1475, 0.0
      %1846 = vadd.xlane.f32.xlu0 %v1845
      %v1847 = vpop.xlane.xlu0 %1846
      %v1848 = vsel %vm712, %v1476, 0.0
      %1849 = vadd.xlane.f32.xlu0 %v1848
      %v1850 = vpop.xlane.xlu0 %1849
      %v1851 = vsel %vm712, %v1477, 0.0
      %1852 = vadd.xlane.f32.xlu0 %v1851
      %v1853 = vpop.xlane.xlu0 %1852
      %v1854 = vsel %vm712, %v1478, 0.0
      %1855 = vadd.xlane.f32.xlu0 %v1854
      %v1856 = vpop.xlane.xlu0 %1855
      %v1857 = vsel %vm712, %v1479, 0.0
      %1858 = vadd.xlane.f32.xlu0 %v1857
      %v1859 = vpop.xlane.xlu0 %1858
      %v1860 = vsel %vm712, %v1480, 0.0
      %1861 = vadd.xlane.f32.xlu0 %v1860
      %v1862 = vpop.xlane.xlu0 %1861
      %v1863 = vsel %vm712, %v1481, 0.0
      %1864 = vadd.xlane.f32.xlu0 %v1863
      %v1865 = vpop.xlane.xlu0 %1864
      %v1866 = vmul.f32 %v1484, %v1097
      %v1867 = vmul.f32 %v1487, %v1097
      %v1868 = vmul.f32 %v1490, %v1097
      %v1869 = vmul.f32 %v1493, %v1097
      %v1870 = vmul.f32 %v1496, %v1097
      %v1871 = vmul.f32 %v1499, %v1097
      %v1872 = vmul.f32 %v1502, %v1097
      %v1873 = vmul.f32 %v1505, %v1097
      %v1874 = vmul.f32 %v1508, %v1097
      %v1875 = vmul.f32 %v1511, %v1097
      %v1876 = vmul.f32 %v1514, %v1097
      %v1877 = vmul.f32 %v1517, %v1097
      %v1878 = vmul.f32 %v1520, %v1097
      %v1879 = vmul.f32 %v1523, %v1097
      %v1880 = vmul.f32 %v1526, %v1097
      %v1881 = vmul.f32 %v1529, %v1097
      %v1882 = vmul.f32 %v1532, %v1097
      %v1883 = vmul.f32 %v1535, %v1097
      %v1884 = vmul.f32 %v1538, %v1097
      %v1885 = vmul.f32 %v1541, %v1097
      %v1886 = vmul.f32 %v1544, %v1097
      %v1887 = vmul.f32 %v1547, %v1097
      %v1888 = vmul.f32 %v1550, %v1097
      %v1889 = vmul.f32 %v1553, %v1097
      %v1890 = vmul.f32 %v1556, %v1097
      %v1891 = vmul.f32 %v1559, %v1097
      %v1892 = vmul.f32 %v1562, %v1097
      %v1893 = vmul.f32 %v1565, %v1097
      %v1894 = vmul.f32 %v1568, %v1097
      %v1895 = vmul.f32 %v1571, %v1097
      %v1896 = vmul.f32 %v1574, %v1097
      %v1897 = vmul.f32 %v1577, %v1097
      %v1898 = vmul.f32 %v1580, %v1097
      %v1899 = vmul.f32 %v1583, %v1097
      %v1900 = vmul.f32 %v1586, %v1097
      %v1901 = vmul.f32 %v1589, %v1097
      %v1902 = vmul.f32 %v1592, %v1097
      %v1903 = vmul.f32 %v1595, %v1097
      %v1904 = vmul.f32 %v1598, %v1097
      %v1905 = vmul.f32 %v1601, %v1097
      %v1906 = vmul.f32 %v1604, %v1097
      %v1907 = vmul.f32 %v1607, %v1097
      %v1908 = vmul.f32 %v1610, %v1097
      %v1909 = vmul.f32 %v1613, %v1097
      %v1910 = vmul.f32 %v1616, %v1097
      %v1911 = vmul.f32 %v1619, %v1097
      %v1912 = vmul.f32 %v1622, %v1097
      %v1913 = vmul.f32 %v1625, %v1097
      %v1914 = vmul.f32 %v1628, %v1097
      %v1915 = vmul.f32 %v1631, %v1097
      %v1916 = vmul.f32 %v1634, %v1097
      %v1917 = vmul.f32 %v1637, %v1097
      %v1918 = vmul.f32 %v1640, %v1097
      %v1919 = vmul.f32 %v1643, %v1097
      %v1920 = vmul.f32 %v1646, %v1097
      %v1921 = vmul.f32 %v1649, %v1097
      %v1922 = vmul.f32 %v1652, %v1097
      %v1923 = vmul.f32 %v1655, %v1097
      %v1924 = vmul.f32 %v1658, %v1097
      %v1925 = vmul.f32 %v1661, %v1097
      %v1926 = vmul.f32 %v1664, %v1097
      %v1927 = vmul.f32 %v1667, %v1097
      %v1928 = vmul.f32 %v1670, %v1097
      %v1929 = vmul.f32 %v1673, %v1097
      %v1930 = vmul.f32 %v1676, %v1097
      %v1931 = vmul.f32 %v1679, %v1097
      %v1932 = vmul.f32 %v1682, %v1097
      %v1933 = vmul.f32 %v1685, %v1097
      %v1934 = vmul.f32 %v1688, %v1097
      %v1935 = vmul.f32 %v1691, %v1097
      %v1936 = vmul.f32 %v1694, %v1097
      %v1937 = vmul.f32 %v1697, %v1097
      %v1938 = vmul.f32 %v1700, %v1097
      %v1939 = vmul.f32 %v1703, %v1097
      %v1940 = vmul.f32 %v1706, %v1097
      %v1941 = vmul.f32 %v1709, %v1097
      %v1942 = vmul.f32 %v1712, %v1097
      %v1943 = vmul.f32 %v1715, %v1097
      %v1944 = vmul.f32 %v1718, %v1097
      %v1945 = vmul.f32 %v1721, %v1097
      %v1946 = vmul.f32 %v1724, %v1097
      %v1947 = vmul.f32 %v1727, %v1097
      %v1948 = vmul.f32 %v1730, %v1097
      %v1949 = vmul.f32 %v1733, %v1097
      %v1950 = vmul.f32 %v1736, %v1097
      %v1951 = vmul.f32 %v1739, %v1097
      %v1952 = vmul.f32 %v1742, %v1097
      %v1953 = vmul.f32 %v1745, %v1097
      %v1954 = vmul.f32 %v1748, %v1097
      %v1955 = vmul.f32 %v1751, %v1097
      %v1956 = vmul.f32 %v1754, %v1097
      %v1957 = vmul.f32 %v1757, %v1097
      %v1958 = vmul.f32 %v1760, %v1097
      %v1959 = vmul.f32 %v1763, %v1097
      %v1960 = vmul.f32 %v1766, %v1097
      %v1961 = vmul.f32 %v1769, %v1097
      %v1962 = vmul.f32 %v1772, %v1097
      %v1963 = vmul.f32 %v1775, %v1097
      %v1964 = vmul.f32 %v1778, %v1097
      %v1965 = vmul.f32 %v1781, %v1097
      %v1966 = vmul.f32 %v1784, %v1097
      %v1967 = vmul.f32 %v1787, %v1097
      %v1968 = vmul.f32 %v1790, %v1097
      %v1969 = vmul.f32 %v1793, %v1097
      %v1970 = vmul.f32 %v1796, %v1097
      %v1971 = vmul.f32 %v1799, %v1097
      %v1972 = vmul.f32 %v1802, %v1097
      %v1973 = vmul.f32 %v1805, %v1097
      %v1974 = vmul.f32 %v1808, %v1097
      %v1975 = vmul.f32 %v1811, %v1097
      %v1976 = vmul.f32 %v1814, %v1097
      %v1977 = vmul.f32 %v1817, %v1097
      %v1978 = vmul.f32 %v1820, %v1097
      %v1979 = vmul.f32 %v1823, %v1097
      %v1980 = vmul.f32 %v1826, %v1097
      %v1981 = vmul.f32 %v1829, %v1097
      %v1982 = vmul.f32 %v1832, %v1097
      %v1983 = vmul.f32 %v1835, %v1097
      %v1984 = vmul.f32 %v1838, %v1097
      %v1985 = vmul.f32 %v1841, %v1097
      %v1986 = vmul.f32 %v1844, %v1097
      %v1987 = vmul.f32 %v1847, %v1097
      %v1988 = vmul.f32 %v1850, %v1097
      %v1989 = vmul.f32 %v1853, %v1097
      %v1990 = vmul.f32 %v1856, %v1097
      %v1991 = vmul.f32 %v1859, %v1097
      %v1992 = vmul.f32 %v1862, %v1097
      %v1993 = vmul.f32 %v1865, %v1097
      %v1994 = vadd.f32 %v1866, 1e-05
      %v1995 = vadd.f32 %v1867, 1e-05
      %v1996 = vadd.f32 %v1868, 1e-05
      %v1997 = vadd.f32 %v1869, 1e-05
      %v1998 = vadd.f32 %v1870, 1e-05
      %v1999 = vadd.f32 %v1871, 1e-05
      %v2000 = vadd.f32 %v1872, 1e-05
      %v2001 = vadd.f32 %v1873, 1e-05
      %v2002 = vadd.f32 %v1874, 1e-05
      %v2003 = vadd.f32 %v1875, 1e-05
      %v2004 = vadd.f32 %v1876, 1e-05
      %v2005 = vadd.f32 %v1877, 1e-05
      %v2006 = vadd.f32 %v1878, 1e-05
      %v2007 = vadd.f32 %v1879, 1e-05
      %v2008 = vadd.f32 %v1880, 1e-05
      %v2009 = vadd.f32 %v1881, 1e-05
      %v2010 = vadd.f32 %v1882, 1e-05
      %v2011 = vadd.f32 %v1883, 1e-05
      %v2012 = vadd.f32 %v1884, 1e-05
      %v2013 = vadd.f32 %v1885, 1e-05
      %v2014 = vadd.f32 %v1886, 1e-05
      %v2015 = vadd.f32 %v1887, 1e-05
      %v2016 = vadd.f32 %v1888, 1e-05
      %v2017 = vadd.f32 %v1889, 1e-05
      %v2018 = vadd.f32 %v1890, 1e-05
      %v2019 = vadd.f32 %v1891, 1e-05
      %v2020 = vadd.f32 %v1892, 1e-05
      %v2021 = vadd.f32 %v1893, 1e-05
      %v2022 = vadd.f32 %v1894, 1e-05
      %v2023 = vadd.f32 %v1895, 1e-05
      %v2024 = vadd.f32 %v1896, 1e-05
      %v2025 = vadd.f32 %v1897, 1e-05
      %v2026 = vadd.f32 %v1898, 1e-05
      %v2027 = vadd.f32 %v1899, 1e-05
      %v2028 = vadd.f32 %v1900, 1e-05
      %v2029 = vadd.f32 %v1901, 1e-05
      %v2030 = vadd.f32 %v1902, 1e-05
      %v2031 = vadd.f32 %v1903, 1e-05
      %v2032 = vadd.f32 %v1904, 1e-05
      %v2033 = vadd.f32 %v1905, 1e-05
      %v2034 = vadd.f32 %v1906, 1e-05
      %v2035 = vadd.f32 %v1907, 1e-05
      %v2036 = vadd.f32 %v1908, 1e-05
      %v2037 = vadd.f32 %v1909, 1e-05
      %v2038 = vadd.f32 %v1910, 1e-05
      %v2039 = vadd.f32 %v1911, 1e-05
      %v2040 = vadd.f32 %v1912, 1e-05
      %v2041 = vadd.f32 %v1913, 1e-05
      %v2042 = vadd.f32 %v1914, 1e-05
      %v2043 = vadd.f32 %v1915, 1e-05
      %v2044 = vadd.f32 %v1916, 1e-05
      %v2045 = vadd.f32 %v1917, 1e-05
      %v2046 = vadd.f32 %v1918, 1e-05
      %v2047 = vadd.f32 %v1919, 1e-05
      %v2048 = vadd.f32 %v1920, 1e-05
      %v2049 = vadd.f32 %v1921, 1e-05
      %v2050 = vadd.f32 %v1922, 1e-05
      %v2051 = vadd.f32 %v1923, 1e-05
      %v2052 = vadd.f32 %v1924, 1e-05
      %v2053 = vadd.f32 %v1925, 1e-05
      %v2054 = vadd.f32 %v1926, 1e-05
      %v2055 = vadd.f32 %v1927, 1e-05
      %v2056 = vadd.f32 %v1928, 1e-05
      %v2057 = vadd.f32 %v1929, 1e-05
      %v2058 = vadd.f32 %v1930, 1e-05
      %v2059 = vadd.f32 %v1931, 1e-05
      %v2060 = vadd.f32 %v1932, 1e-05
      %v2061 = vadd.f32 %v1933, 1e-05
      %v2062 = vadd.f32 %v1934, 1e-05
      %v2063 = vadd.f32 %v1935, 1e-05
      %v2064 = vadd.f32 %v1936, 1e-05
      %v2065 = vadd.f32 %v1937, 1e-05
      %v2066 = vadd.f32 %v1938, 1e-05
      %v2067 = vadd.f32 %v1939, 1e-05
      %v2068 = vadd.f32 %v1940, 1e-05
      %v2069 = vadd.f32 %v1941, 1e-05
      %v2070 = vadd.f32 %v1942, 1e-05
      %v2071 = vadd.f32 %v1943, 1e-05
      %v2072 = vadd.f32 %v1944, 1e-05
      %v2073 = vadd.f32 %v1945, 1e-05
      %v2074 = vadd.f32 %v1946, 1e-05
      %v2075 = vadd.f32 %v1947, 1e-05
      %v2076 = vadd.f32 %v1948, 1e-05
      %v2077 = vadd.f32 %v1949, 1e-05
      %v2078 = vadd.f32 %v1950, 1e-05
      %v2079 = vadd.f32 %v1951, 1e-05
      %v2080 = vadd.f32 %v1952, 1e-05
      %v2081 = vadd.f32 %v1953, 1e-05
      %v2082 = vadd.f32 %v1954, 1e-05
      %v2083 = vadd.f32 %v1955, 1e-05
      %v2084 = vadd.f32 %v1956, 1e-05
      %v2085 = vadd.f32 %v1957, 1e-05
      %v2086 = vadd.f32 %v1958, 1e-05
      %v2087 = vadd.f32 %v1959, 1e-05
      %v2088 = vadd.f32 %v1960, 1e-05
      %v2089 = vadd.f32 %v1961, 1e-05
      %v2090 = vadd.f32 %v1962, 1e-05
      %v2091 = vadd.f32 %v1963, 1e-05
      %v2092 = vadd.f32 %v1964, 1e-05
      %v2093 = vadd.f32 %v1965, 1e-05
      %v2094 = vadd.f32 %v1966, 1e-05
      %v2095 = vadd.f32 %v1967, 1e-05
      %v2096 = vadd.f32 %v1968, 1e-05
      %v2097 = vadd.f32 %v1969, 1e-05
      %v2098 = vadd.f32 %v1970, 1e-05
      %v2099 = vadd.f32 %v1971, 1e-05
      %v2100 = vadd.f32 %v1972, 1e-05
      %v2101 = vadd.f32 %v1973, 1e-05
      %v2102 = vadd.f32 %v1974, 1e-05
      %v2103 = vadd.f32 %v1975, 1e-05
      %v2104 = vadd.f32 %v1976, 1e-05
      %v2105 = vadd.f32 %v1977, 1e-05
      %v2106 = vadd.f32 %v1978, 1e-05
      %v2107 = vadd.f32 %v1979, 1e-05
      %v2108 = vadd.f32 %v1980, 1e-05
      %v2109 = vadd.f32 %v1981, 1e-05
      %v2110 = vadd.f32 %v1982, 1e-05
      %v2111 = vadd.f32 %v1983, 1e-05
      %v2112 = vadd.f32 %v1984, 1e-05
      %v2113 = vadd.f32 %v1985, 1e-05
      %v2114 = vadd.f32 %v1986, 1e-05
      %v2115 = vadd.f32 %v1987, 1e-05
      %v2116 = vadd.f32 %v1988, 1e-05
      %v2117 = vadd.f32 %v1989, 1e-05
      %v2118 = vadd.f32 %v1990, 1e-05
      %v2119 = vadd.f32 %v1991, 1e-05
      %v2120 = vadd.f32 %v1992, 1e-05
      %v2121 = vadd.f32 %v1993, 1e-05
      %v2122 = vrsqrt.pop %v1994
      %v2123 = vrsqrt.pop %v1995
      %v2124 = vrsqrt.pop %v1996
      %v2125 = vrsqrt.pop %v1997
      %v2126 = vrsqrt.pop %v1998
      %v2127 = vrsqrt.pop %v1999
      %v2128 = vrsqrt.pop %v2000
      %v2129 = vrsqrt.pop %v2001
      %v2130 = vrsqrt.pop %v2002
      %v2131 = vrsqrt.pop %v2003
      %v2132 = vrsqrt.pop %v2004
      %v2133 = vrsqrt.pop %v2005
      %v2134 = vrsqrt.pop %v2006
      %v2135 = vrsqrt.pop %v2007
      %v2136 = vrsqrt.pop %v2008
      %v2137 = vrsqrt.pop %v2009
      %v2138 = vrsqrt.pop %v2010
      %v2139 = vrsqrt.pop %v2011
      %v2140 = vrsqrt.pop %v2012
      %v2141 = vrsqrt.pop %v2013
      %v2142 = vrsqrt.pop %v2014
      %v2143 = vrsqrt.pop %v2015
      %v2144 = vrsqrt.pop %v2016
      %v2145 = vrsqrt.pop %v2017
      %v2146 = vrsqrt.pop %v2018
      %v2147 = vrsqrt.pop %v2019
      %v2148 = vrsqrt.pop %v2020
      %v2149 = vrsqrt.pop %v2021
      %v2150 = vrsqrt.pop %v2022
      %v2151 = vrsqrt.pop %v2023
      %v2152 = vrsqrt.pop %v2024
      %v2153 = vrsqrt.pop %v2025
      %v2154 = vrsqrt.pop %v2026
      %v2155 = vrsqrt.pop %v2027
      %v2156 = vrsqrt.pop %v2028
      %v2157 = vrsqrt.pop %v2029
      %v2158 = vrsqrt.pop %v2030
      %v2159 = vrsqrt.pop %v2031
      %v2160 = vrsqrt.pop %v2032
      %v2161 = vrsqrt.pop %v2033
      %v2162 = vrsqrt.pop %v2034
      %v2163 = vrsqrt.pop %v2035
      %v2164 = vrsqrt.pop %v2036
      %v2165 = vrsqrt.pop %v2037
      %v2166 = vrsqrt.pop %v2038
      %v2167 = vrsqrt.pop %v2039
      %v2168 = vrsqrt.pop %v2040
      %v2169 = vrsqrt.pop %v2041
      %v2170 = vrsqrt.pop %v2042
      %v2171 = vrsqrt.pop %v2043
      %v2172 = vrsqrt.pop %v2044
      %v2173 = vrsqrt.pop %v2045
      %v2174 = vrsqrt.pop %v2046
      %v2175 = vrsqrt.pop %v2047
      %v2176 = vrsqrt.pop %v2048
      %v2177 = vrsqrt.pop %v2049
      %v2178 = vrsqrt.pop %v2050
      %v2179 = vrsqrt.pop %v2051
      %v2180 = vrsqrt.pop %v2052
      %v2181 = vrsqrt.pop %v2053
      %v2182 = vrsqrt.pop %v2054
      %v2183 = vrsqrt.pop %v2055
      %v2184 = vrsqrt.pop %v2056
      %v2185 = vrsqrt.pop %v2057
      %v2186 = vrsqrt.pop %v2058
      %v2187 = vrsqrt.pop %v2059
      %v2188 = vrsqrt.pop %v2060
      %v2189 = vrsqrt.pop %v2061
      %v2190 = vrsqrt.pop %v2062
      %v2191 = vrsqrt.pop %v2063
      %v2192 = vrsqrt.pop %v2064
      %v2193 = vrsqrt.pop %v2065
      %v2194 = vrsqrt.pop %v2066
      %v2195 = vrsqrt.pop %v2067
      %v2196 = vrsqrt.pop %v2068
      %v2197 = vrsqrt.pop %v2069
      %v2198 = vrsqrt.pop %v2070
      %v2199 = vrsqrt.pop %v2071
      %v2200 = vrsqrt.pop %v2072
      %v2201 = vrsqrt.pop %v2073
      %v2202 = vrsqrt.pop %v2074
      %v2203 = vrsqrt.pop %v2075
      %v2204 = vrsqrt.pop %v2076
      %v2205 = vrsqrt.pop %v2077
      %v2206 = vrsqrt.pop %v2078
      %v2207 = vrsqrt.pop %v2079
      %v2208 = vrsqrt.pop %v2080
      %v2209 = vrsqrt.pop %v2081
      %v2210 = vrsqrt.pop %v2082
      %v2211 = vrsqrt.pop %v2083
      %v2212 = vrsqrt.pop %v2084
      %v2213 = vrsqrt.pop %v2085
      %v2214 = vrsqrt.pop %v2086
      %v2215 = vrsqrt.pop %v2087
      %v2216 = vrsqrt.pop %v2088
      %v2217 = vrsqrt.pop %v2089
      %v2218 = vrsqrt.pop %v2090
      %v2219 = vrsqrt.pop %v2091
      %v2220 = vrsqrt.pop %v2092
      %v2221 = vrsqrt.pop %v2093
      %v2222 = vrsqrt.pop %v2094
      %v2223 = vrsqrt.pop %v2095
      %v2224 = vrsqrt.pop %v2096
      %v2225 = vrsqrt.pop %v2097
      %v2226 = vrsqrt.pop %v2098
      %v2227 = vrsqrt.pop %v2099
      %v2228 = vrsqrt.pop %v2100
      %v2229 = vrsqrt.pop %v2101
      %v2230 = vrsqrt.pop %v2102
      %v2231 = vrsqrt.pop %v2103
      %v2232 = vrsqrt.pop %v2104
      %v2233 = vrsqrt.pop %v2105
      %v2234 = vrsqrt.pop %v2106
      %v2235 = vrsqrt.pop %v2107
      %v2236 = vrsqrt.pop %v2108
      %v2237 = vrsqrt.pop %v2109
      %v2238 = vrsqrt.pop %v2110
      %v2239 = vrsqrt.pop %v2111
      %v2240 = vrsqrt.pop %v2112
      %v2241 = vrsqrt.pop %v2113
      %v2242 = vrsqrt.pop %v2114
      %v2243 = vrsqrt.pop %v2115
      %v2244 = vrsqrt.pop %v2116
      %v2245 = vrsqrt.pop %v2117
      %v2246 = vrsqrt.pop %v2118
      %v2247 = vrsqrt.pop %v2119
      %v2248 = vrsqrt.pop %v2120
      %v2249 = vrsqrt.pop %v2121
      %v2250 = vmul.f32 %v1226, %v2122
      %v2251 = vmul.f32 %v1227, %v2123
      %v2252 = vmul.f32 %v1228, %v2124
      %v2253 = vmul.f32 %v1229, %v2125
      %v2254 = vmul.f32 %v1230, %v2126
      %v2255 = vmul.f32 %v1231, %v2127
      %v2256 = vmul.f32 %v1232, %v2128
      %v2257 = vmul.f32 %v1233, %v2129
      %v2258 = vmul.f32 %v1234, %v2130
      %v2259 = vmul.f32 %v1235, %v2131
      %v2260 = vmul.f32 %v1236, %v2132
      %v2261 = vmul.f32 %v1237, %v2133
      %v2262 = vmul.f32 %v1238, %v2134
      %v2263 = vmul.f32 %v1239, %v2135
      %v2264 = vmul.f32 %v1240, %v2136
      %v2265 = vmul.f32 %v1241, %v2137
      %v2266 = vmul.f32 %v1242, %v2138
      %v2267 = vmul.f32 %v1243, %v2139
      %v2268 = vmul.f32 %v1244, %v2140
      %v2269 = vmul.f32 %v1245, %v2141
      %v2270 = vmul.f32 %v1246, %v2142
      %v2271 = vmul.f32 %v1247, %v2143
      %v2272 = vmul.f32 %v1248, %v2144
      %v2273 = vmul.f32 %v1249, %v2145
      %v2274 = vmul.f32 %v1250, %v2146
      %v2275 = vmul.f32 %v1251, %v2147
      %v2276 = vmul.f32 %v1252, %v2148
      %v2277 = vmul.f32 %v1253, %v2149
      %v2278 = vmul.f32 %v1254, %v2150
      %v2279 = vmul.f32 %v1255, %v2151
      %v2280 = vmul.f32 %v1256, %v2152
      %v2281 = vmul.f32 %v1257, %v2153
      %v2282 = vmul.f32 %v1258, %v2154
      %v2283 = vmul.f32 %v1259, %v2155
      %v2284 = vmul.f32 %v1260, %v2156
      %v2285 = vmul.f32 %v1261, %v2157
      %v2286 = vmul.f32 %v1262, %v2158
      %v2287 = vmul.f32 %v1263, %v2159
      %v2288 = vmul.f32 %v1264, %v2160
      %v2289 = vmul.f32 %v1265, %v2161
      %v2290 = vmul.f32 %v1266, %v2162
      %v2291 = vmul.f32 %v1267, %v2163
      %v2292 = vmul.f32 %v1268, %v2164
      %v2293 = vmul.f32 %v1269, %v2165
      %v2294 = vmul.f32 %v1270, %v2166
      %v2295 = vmul.f32 %v1271, %v2167
      %v2296 = vmul.f32 %v1272, %v2168
      %v2297 = vmul.f32 %v1273, %v2169
      %v2298 = vmul.f32 %v1274, %v2170
      %v2299 = vmul.f32 %v1275, %v2171
      %v2300 = vmul.f32 %v1276, %v2172
      %v2301 = vmul.f32 %v1277, %v2173
      %v2302 = vmul.f32 %v1278, %v2174
      %v2303 = vmul.f32 %v1279, %v2175
      %v2304 = vmul.f32 %v1280, %v2176
      %v2305 = vmul.f32 %v1281, %v2177
      %v2306 = vmul.f32 %v1282, %v2178
      %v2307 = vmul.f32 %v1283, %v2179
      %v2308 = vmul.f32 %v1284, %v2180
      %v2309 = vmul.f32 %v1285, %v2181
      %v2310 = vmul.f32 %v1286, %v2182
      %v2311 = vmul.f32 %v1287, %v2183
      %v2312 = vmul.f32 %v1288, %v2184
      %v2313 = vmul.f32 %v1289, %v2185
      %v2314 = vmul.f32 %v1290, %v2186
      %v2315 = vmul.f32 %v1291, %v2187
      %v2316 = vmul.f32 %v1292, %v2188
      %v2317 = vmul.f32 %v1293, %v2189
      %v2318 = vmul.f32 %v1294, %v2190
      %v2319 = vmul.f32 %v1295, %v2191
      %v2320 = vmul.f32 %v1296, %v2192
      %v2321 = vmul.f32 %v1297, %v2193
      %v2322 = vmul.f32 %v1298, %v2194
      %v2323 = vmul.f32 %v1299, %v2195
      %v2324 = vmul.f32 %v1300, %v2196
      %v2325 = vmul.f32 %v1301, %v2197
      %v2326 = vmul.f32 %v1302, %v2198
      %v2327 = vmul.f32 %v1303, %v2199
      %v2328 = vmul.f32 %v1304, %v2200
      %v2329 = vmul.f32 %v1305, %v2201
      %v2330 = vmul.f32 %v1306, %v2202
      %v2331 = vmul.f32 %v1307, %v2203
      %v2332 = vmul.f32 %v1308, %v2204
      %v2333 = vmul.f32 %v1309, %v2205
      %v2334 = vmul.f32 %v1310, %v2206
      %v2335 = vmul.f32 %v1311, %v2207
      %v2336 = vmul.f32 %v1312, %v2208
      %v2337 = vmul.f32 %v1313, %v2209
      %v2338 = vmul.f32 %v1314, %v2210
      %v2339 = vmul.f32 %v1315, %v2211
      %v2340 = vmul.f32 %v1316, %v2212
      %v2341 = vmul.f32 %v1317, %v2213
      %v2342 = vmul.f32 %v1318, %v2214
      %v2343 = vmul.f32 %v1319, %v2215
      %v2344 = vmul.f32 %v1320, %v2216
      %v2345 = vmul.f32 %v1321, %v2217
      %v2346 = vmul.f32 %v1322, %v2218
      %v2347 = vmul.f32 %v1323, %v2219
      %v2348 = vmul.f32 %v1324, %v2220
      %v2349 = vmul.f32 %v1325, %v2221
      %v2350 = vmul.f32 %v1326, %v2222
      %v2351 = vmul.f32 %v1327, %v2223
      %v2352 = vmul.f32 %v1328, %v2224
      %v2353 = vmul.f32 %v1329, %v2225
      %v2354 = vmul.f32 %v1330, %v2226
      %v2355 = vmul.f32 %v1331, %v2227
      %v2356 = vmul.f32 %v1332, %v2228
      %v2357 = vmul.f32 %v1333, %v2229
      %v2358 = vmul.f32 %v1334, %v2230
      %v2359 = vmul.f32 %v1335, %v2231
      %v2360 = vmul.f32 %v1336, %v2232
      %v2361 = vmul.f32 %v1337, %v2233
      %v2362 = vmul.f32 %v1338, %v2234
      %v2363 = vmul.f32 %v1339, %v2235
      %v2364 = vmul.f32 %v1340, %v2236
      %v2365 = vmul.f32 %v1341, %v2237
      %v2366 = vmul.f32 %v1342, %v2238
      %v2367 = vmul.f32 %v1343, %v2239
      %v2368 = vmul.f32 %v1344, %v2240
      %v2369 = vmul.f32 %v1345, %v2241
      %v2370 = vmul.f32 %v1346, %v2242
      %v2371 = vmul.f32 %v1347, %v2243
      %v2372 = vmul.f32 %v1348, %v2244
      %v2373 = vmul.f32 %v1349, %v2245
      %v2374 = vmul.f32 %v1350, %v2246
      %v2375 = vmul.f32 %v1351, %v2247
      %v2376 = vmul.f32 %v1352, %v2248
      %v2377 = vmul.f32 %v1353, %v2249
      %v2378 = vld [vmem:[%s5] sm:$0x1]
      %v2380 = vlaneseq
      %v2381 = vshrl.u32 %v2380, 7
      %v2382 = vsub.s32 0, %v2381
      %v2383 = vrot.slane %v2378, %v2382
      %v2385 = vmul.f32 %v2250, %v2383
      %v2386 = vmul.f32 %v2251, %v2383
      %v2387 = vmul.f32 %v2252, %v2383
      %v2388 = vmul.f32 %v2253, %v2383
      %v2389 = vmul.f32 %v2254, %v2383
      %v2390 = vmul.f32 %v2255, %v2383
      %v2391 = vmul.f32 %v2256, %v2383
      %v2392 = vmul.f32 %v2257, %v2383
      %v2393 = vmul.f32 %v2258, %v2383
      %v2394 = vmul.f32 %v2259, %v2383
      %v2395 = vmul.f32 %v2260, %v2383
      %v2396 = vmul.f32 %v2261, %v2383
      %v2397 = vmul.f32 %v2262, %v2383
      %v2398 = vmul.f32 %v2263, %v2383
      %v2399 = vmul.f32 %v2264, %v2383
      %v2400 = vmul.f32 %v2265, %v2383
      %v2401 = vmul.f32 %v2266, %v2383
      %v2402 = vmul.f32 %v2267, %v2383
      %v2403 = vmul.f32 %v2268, %v2383
      %v2404 = vmul.f32 %v2269, %v2383
      %v2405 = vmul.f32 %v2270, %v2383
      %v2406 = vmul.f32 %v2271, %v2383
      %v2407 = vmul.f32 %v2272, %v2383
      %v2408 = vmul.f32 %v2273, %v2383
      %v2409 = vmul.f32 %v2274, %v2383
      %v2410 = vmul.f32 %v2275, %v2383
      %v2411 = vmul.f32 %v2276, %v2383
      %v2412 = vmul.f32 %v2277, %v2383
      %v2413 = vmul.f32 %v2278, %v2383
      %v2414 = vmul.f32 %v2279, %v2383
      %v2415 = vmul.f32 %v2280, %v2383
      %v2416 = vmul.f32 %v2281, %v2383
      %v2417 = vmul.f32 %v2282, %v2383
      %v2418 = vmul.f32 %v2283, %v2383
      %v2419 = vmul.f32 %v2284, %v2383
      %v2420 = vmul.f32 %v2285, %v2383
      %v2421 = vmul.f32 %v2286, %v2383
      %v2422 = vmul.f32 %v2287, %v2383
      %v2423 = vmul.f32 %v2288, %v2383
      %v2424 = vmul.f32 %v2289, %v2383
      %v2425 = vmul.f32 %v2290, %v2383
      %v2426 = vmul.f32 %v2291, %v2383
      %v2427 = vmul.f32 %v2292, %v2383
      %v2428 = vmul.f32 %v2293, %v2383
      %v2429 = vmul.f32 %v2294, %v2383
      %v2430 = vmul.f32 %v2295, %v2383
      %v2431 = vmul.f32 %v2296, %v2383
      %v2432 = vmul.f32 %v2297, %v2383
      %v2433 = vmul.f32 %v2298, %v2383
      %v2434 = vmul.f32 %v2299, %v2383
      %v2435 = vmul.f32 %v2300, %v2383
      %v2436 = vmul.f32 %v2301, %v2383
      %v2437 = vmul.f32 %v2302, %v2383
      %v2438 = vmul.f32 %v2303, %v2383
      %v2439 = vmul.f32 %v2304, %v2383
      %v2440 = vmul.f32 %v2305, %v2383
      %v2441 = vmul.f32 %v2306, %v2383
      %v2442 = vmul.f32 %v2307, %v2383
      %v2443 = vmul.f32 %v2308, %v2383
      %v2444 = vmul.f32 %v2309, %v2383
      %v2445 = vmul.f32 %v2310, %v2383
      %v2446 = vmul.f32 %v2311, %v2383
      %v2447 = vmul.f32 %v2312, %v2383
      %v2448 = vmul.f32 %v2313, %v2383
      %v2449 = vmul.f32 %v2314, %v2383
      %v2450 = vmul.f32 %v2315, %v2383
      %v2451 = vmul.f32 %v2316, %v2383
      %v2452 = vmul.f32 %v2317, %v2383
      %v2453 = vmul.f32 %v2318, %v2383
      %v2454 = vmul.f32 %v2319, %v2383
      %v2455 = vmul.f32 %v2320, %v2383
      %v2456 = vmul.f32 %v2321, %v2383
      %v2457 = vmul.f32 %v2322, %v2383
      %v2458 = vmul.f32 %v2323, %v2383
      %v2459 = vmul.f32 %v2324, %v2383
      %v2460 = vmul.f32 %v2325, %v2383
      %v2461 = vmul.f32 %v2326, %v2383
      %v2462 = vmul.f32 %v2327, %v2383
      %v2463 = vmul.f32 %v2328, %v2383
      %v2464 = vmul.f32 %v2329, %v2383
      %v2465 = vmul.f32 %v2330, %v2383
      %v2466 = vmul.f32 %v2331, %v2383
      %v2467 = vmul.f32 %v2332, %v2383
      %v2468 = vmul.f32 %v2333, %v2383
      %v2469 = vmul.f32 %v2334, %v2383
      %v2470 = vmul.f32 %v2335, %v2383
      %v2471 = vmul.f32 %v2336, %v2383
      %v2472 = vmul.f32 %v2337, %v2383
      %v2473 = vmul.f32 %v2338, %v2383
      %v2474 = vmul.f32 %v2339, %v2383
      %v2475 = vmul.f32 %v2340, %v2383
      %v2476 = vmul.f32 %v2341, %v2383
      %v2477 = vmul.f32 %v2342, %v2383
      %v2478 = vmul.f32 %v2343, %v2383
      %v2479 = vmul.f32 %v2344, %v2383
      %v2480 = vmul.f32 %v2345, %v2383
      %v2481 = vmul.f32 %v2346, %v2383
      %v2482 = vmul.f32 %v2347, %v2383
      %v2483 = vmul.f32 %v2348, %v2383
      %v2484 = vmul.f32 %v2349, %v2383
      %v2485 = vmul.f32 %v2350, %v2383
      %v2486 = vmul.f32 %v2351, %v2383
      %v2487 = vmul.f32 %v2352, %v2383
      %v2488 = vmul.f32 %v2353, %v2383
      %v2489 = vmul.f32 %v2354, %v2383
      %v2490 = vmul.f32 %v2355, %v2383
      %v2491 = vmul.f32 %v2356, %v2383
      %v2492 = vmul.f32 %v2357, %v2383
      %v2493 = vmul.f32 %v2358, %v2383
      %v2494 = vmul.f32 %v2359, %v2383
      %v2495 = vmul.f32 %v2360, %v2383
      %v2496 = vmul.f32 %v2361, %v2383
      %v2497 = vmul.f32 %v2362, %v2383
      %v2498 = vmul.f32 %v2363, %v2383
      %v2499 = vmul.f32 %v2364, %v2383
      %v2500 = vmul.f32 %v2365, %v2383
      %v2501 = vmul.f32 %v2366, %v2383
      %v2502 = vmul.f32 %v2367, %v2383
      %v2503 = vmul.f32 %v2368, %v2383
      %v2504 = vmul.f32 %v2369, %v2383
      %v2505 = vmul.f32 %v2370, %v2383
      %v2506 = vmul.f32 %v2371, %v2383
      %v2507 = vmul.f32 %v2372, %v2383
      %v2508 = vmul.f32 %v2373, %v2383
      %v2509 = vmul.f32 %v2374, %v2383
      %v2510 = vmul.f32 %v2375, %v2383
      %v2511 = vmul.f32 %v2376, %v2383
      %v2512 = vmul.f32 %v2377, %v2383
      %v2513 = vld [vmem:[%s6] sm:$0x1]
      %v2515 = vlaneseq
      %v2516 = vshrl.u32 %v2515, 7
      %v2517 = vsub.s32 0, %v2516
      %v2518 = vrot.slane %v2513, %v2517
      %v2520 = vadd.f32 %v2385, %v2518
      %v2521 = vadd.f32 %v2386, %v2518
      %v2522 = vadd.f32 %v2387, %v2518
      %v2523 = vadd.f32 %v2388, %v2518
      %v2524 = vadd.f32 %v2389, %v2518
      %v2525 = vadd.f32 %v2390, %v2518
      %v2526 = vadd.f32 %v2391, %v2518
      %v2527 = vadd.f32 %v2392, %v2518
      %v2528 = vadd.f32 %v2393, %v2518
      %v2529 = vadd.f32 %v2394, %v2518
      %v2530 = vadd.f32 %v2395, %v2518
      %v2531 = vadd.f32 %v2396, %v2518
      %v2532 = vadd.f32 %v2397, %v2518
      %v2533 = vadd.f32 %v2398, %v2518
      %v2534 = vadd.f32 %v2399, %v2518
      %v2535 = vadd.f32 %v2400, %v2518
      %v2536 = vadd.f32 %v2401, %v2518
      %v2537 = vadd.f32 %v2402, %v2518
      %v2538 = vadd.f32 %v2403, %v2518
      %v2539 = vadd.f32 %v2404, %v2518
      %v2540 = vadd.f32 %v2405, %v2518
      %v2541 = vadd.f32 %v2406, %v2518
      %v2542 = vadd.f32 %v2407, %v2518
      %v2543 = vadd.f32 %v2408, %v2518
      %v2544 = vadd.f32 %v2409, %v2518
      %v2545 = vadd.f32 %v2410, %v2518
      %v2546 = vadd.f32 %v2411, %v2518
      %v2547 = vadd.f32 %v2412, %v2518
      %v2548 = vadd.f32 %v2413, %v2518
      %v2549 = vadd.f32 %v2414, %v2518
      %v2550 = vadd.f32 %v2415, %v2518
      %v2551 = vadd.f32 %v2416, %v2518
      %v2552 = vadd.f32 %v2417, %v2518
      %v2553 = vadd.f32 %v2418, %v2518
      %v2554 = vadd.f32 %v2419, %v2518
      %v2555 = vadd.f32 %v2420, %v2518
      %v2556 = vadd.f32 %v2421, %v2518
      %v2557 = vadd.f32 %v2422, %v2518
      %v2558 = vadd.f32 %v2423, %v2518
      %v2559 = vadd.f32 %v2424, %v2518
      %v2560 = vadd.f32 %v2425, %v2518
      %v2561 = vadd.f32 %v2426, %v2518
      %v2562 = vadd.f32 %v2427, %v2518
      %v2563 = vadd.f32 %v2428, %v2518
      %v2564 = vadd.f32 %v2429, %v2518
      %v2565 = vadd.f32 %v2430, %v2518
      %v2566 = vadd.f32 %v2431, %v2518
      %v2567 = vadd.f32 %v2432, %v2518
      %v2568 = vadd.f32 %v2433, %v2518
      %v2569 = vadd.f32 %v2434, %v2518
      %v2570 = vadd.f32 %v2435, %v2518
      %v2571 = vadd.f32 %v2436, %v2518
      %v2572 = vadd.f32 %v2437, %v2518
      %v2573 = vadd.f32 %v2438, %v2518
      %v2574 = vadd.f32 %v2439, %v2518
      %v2575 = vadd.f32 %v2440, %v2518
      %v2576 = vadd.f32 %v2441, %v2518
      %v2577 = vadd.f32 %v2442, %v2518
      %v2578 = vadd.f32 %v2443, %v2518
      %v2579 = vadd.f32 %v2444, %v2518
      %v2580 = vadd.f32 %v2445, %v2518
      %v2581 = vadd.f32 %v2446, %v2518
      %v2582 = vadd.f32 %v2447, %v2518
      %v2583 = vadd.f32 %v2448, %v2518
      %v2584 = vadd.f32 %v2449, %v2518
      %v2585 = vadd.f32 %v2450, %v2518
      %v2586 = vadd.f32 %v2451, %v2518
      %v2587 = vadd.f32 %v2452, %v2518
      %v2588 = vadd.f32 %v2453, %v2518
      %v2589 = vadd.f32 %v2454, %v2518
      %v2590 = vadd.f32 %v2455, %v2518
      %v2591 = vadd.f32 %v2456, %v2518
      %v2592 = vadd.f32 %v2457, %v2518
      %v2593 = vadd.f32 %v2458, %v2518
      %v2594 = vadd.f32 %v2459, %v2518
      %v2595 = vadd.f32 %v2460, %v2518
      %v2596 = vadd.f32 %v2461, %v2518
      %v2597 = vadd.f32 %v2462, %v2518
      %v2598 = vadd.f32 %v2463, %v2518
      %v2599 = vadd.f32 %v2464, %v2518
      %v2600 = vadd.f32 %v2465, %v2518
      %v2601 = vadd.f32 %v2466, %v2518
      %v2602 = vadd.f32 %v2467, %v2518
      %v2603 = vadd.f32 %v2468, %v2518
      %v2604 = vadd.f32 %v2469, %v2518
      %v2605 = vadd.f32 %v2470, %v2518
      %v2606 = vadd.f32 %v2471, %v2518
      %v2607 = vadd.f32 %v2472, %v2518
      %v2608 = vadd.f32 %v2473, %v2518
      %v2609 = vadd.f32 %v2474, %v2518
      %v2610 = vadd.f32 %v2475, %v2518
      %v2611 = vadd.f32 %v2476, %v2518
      %v2612 = vadd.f32 %v2477, %v2518
      %v2613 = vadd.f32 %v2478, %v2518
      %v2614 = vadd.f32 %v2479, %v2518
      %v2615 = vadd.f32 %v2480, %v2518
      %v2616 = vadd.f32 %v2481, %v2518
      %v2617 = vadd.f32 %v2482, %v2518
      %v2618 = vadd.f32 %v2483, %v2518
      %v2619 = vadd.f32 %v2484, %v2518
      %v2620 = vadd.f32 %v2485, %v2518
      %v2621 = vadd.f32 %v2486, %v2518
      %v2622 = vadd.f32 %v2487, %v2518
      %v2623 = vadd.f32 %v2488, %v2518
      %v2624 = vadd.f32 %v2489, %v2518
      %v2625 = vadd.f32 %v2490, %v2518
      %v2626 = vadd.f32 %v2491, %v2518
      %v2627 = vadd.f32 %v2492, %v2518
      %v2628 = vadd.f32 %v2493, %v2518
      %v2629 = vadd.f32 %v2494, %v2518
      %v2630 = vadd.f32 %v2495, %v2518
      %v2631 = vadd.f32 %v2496, %v2518
      %v2632 = vadd.f32 %v2497, %v2518
      %v2633 = vadd.f32 %v2498, %v2518
      %v2634 = vadd.f32 %v2499, %v2518
      %v2635 = vadd.f32 %v2500, %v2518
      %v2636 = vadd.f32 %v2501, %v2518
      %v2637 = vadd.f32 %v2502, %v2518
      %v2638 = vadd.f32 %v2503, %v2518
      %v2639 = vadd.f32 %v2504, %v2518
      %v2640 = vadd.f32 %v2505, %v2518
      %v2641 = vadd.f32 %v2506, %v2518
      %v2642 = vadd.f32 %v2507, %v2518
      %v2643 = vadd.f32 %v2508, %v2518
      %v2644 = vadd.f32 %v2509, %v2518
      %v2645 = vadd.f32 %v2510, %v2518
      %v2646 = vadd.f32 %v2511, %v2518
      %v2647 = vadd.f32 %v2512, %v2518
      %vm2648 = vcmp.gt.f32.partialorder %v2520, 0.0
      %vm2649 = vcmp.gt.f32.partialorder %v2521, 0.0
      %vm2650 = vcmp.gt.f32.partialorder %v2522, 0.0
      %vm2651 = vcmp.gt.f32.partialorder %v2523, 0.0
      %vm2652 = vcmp.gt.f32.partialorder %v2524, 0.0
      %vm2653 = vcmp.gt.f32.partialorder %v2525, 0.0
      %vm2654 = vcmp.gt.f32.partialorder %v2526, 0.0
      %vm2655 = vcmp.gt.f32.partialorder %v2527, 0.0
      %vm2656 = vcmp.gt.f32.partialorder %v2528, 0.0
      %vm2657 = vcmp.gt.f32.partialorder %v2529, 0.0
      %vm2658 = vcmp.gt.f32.partialorder %v2530, 0.0
      %vm2659 = vcmp.gt.f32.partialorder %v2531, 0.0
      %vm2660 = vcmp.gt.f32.partialorder %v2532, 0.0
      %vm2661 = vcmp.gt.f32.partialorder %v2533, 0.0
      %vm2662 = vcmp.gt.f32.partialorder %v2534, 0.0
      %vm2663 = vcmp.gt.f32.partialorder %v2535, 0.0
      %vm2664 = vcmp.gt.f32.partialorder %v2536, 0.0
      %vm2665 = vcmp.gt.f32.partialorder %v2537, 0.0
      %vm2666 = vcmp.gt.f32.partialorder %v2538, 0.0
      %vm2667 = vcmp.gt.f32.partialorder %v2539, 0.0
      %vm2668 = vcmp.gt.f32.partialorder %v2540, 0.0
      %vm2669 = vcmp.gt.f32.partialorder %v2541, 0.0
      %vm2670 = vcmp.gt.f32.partialorder %v2542, 0.0
      %vm2671 = vcmp.gt.f32.partialorder %v2543, 0.0
      %vm2672 = vcmp.gt.f32.partialorder %v2544, 0.0
      %vm2673 = vcmp.gt.f32.partialorder %v2545, 0.0
      %vm2674 = vcmp.gt.f32.partialorder %v2546, 0.0
      %vm2675 = vcmp.gt.f32.partialorder %v2547, 0.0
      %vm2676 = vcmp.gt.f32.partialorder %v2548, 0.0
      %vm2677 = vcmp.gt.f32.partialorder %v2549, 0.0
      %vm2678 = vcmp.gt.f32.partialorder %v2550, 0.0
      %vm2679 = vcmp.gt.f32.partialorder %v2551, 0.0
      %vm2680 = vcmp.gt.f32.partialorder %v2552, 0.0
      %vm2681 = vcmp.gt.f32.partialorder %v2553, 0.0
      %vm2682 = vcmp.gt.f32.partialorder %v2554, 0.0
      %vm2683 = vcmp.gt.f32.partialorder %v2555, 0.0
      %vm2684 = vcmp.gt.f32.partialorder %v2556, 0.0
      %vm2685 = vcmp.gt.f32.partialorder %v2557, 0.0
      %vm2686 = vcmp.gt.f32.partialorder %v2558, 0.0
      %vm2687 = vcmp.gt.f32.partialorder %v2559, 0.0
      %vm2688 = vcmp.gt.f32.partialorder %v2560, 0.0
      %vm2689 = vcmp.gt.f32.partialorder %v2561, 0.0
      %vm2690 = vcmp.gt.f32.partialorder %v2562, 0.0
      %vm2691 = vcmp.gt.f32.partialorder %v2563, 0.0
      %vm2692 = vcmp.gt.f32.partialorder %v2564, 0.0
      %vm2693 = vcmp.gt.f32.partialorder %v2565, 0.0
      %vm2694 = vcmp.gt.f32.partialorder %v2566, 0.0
      %vm2695 = vcmp.gt.f32.partialorder %v2567, 0.0
      %vm2696 = vcmp.gt.f32.partialorder %v2568, 0.0
      %vm2697 = vcmp.gt.f32.partialorder %v2569, 0.0
      %vm2698 = vcmp.gt.f32.partialorder %v2570, 0.0
      %vm2699 = vcmp.gt.f32.partialorder %v2571, 0.0
      %vm2700 = vcmp.gt.f32.partialorder %v2572, 0.0
      %vm2701 = vcmp.gt.f32.partialorder %v2573, 0.0
      %vm2702 = vcmp.gt.f32.partialorder %v2574, 0.0
      %vm2703 = vcmp.gt.f32.partialorder %v2575, 0.0
      %vm2704 = vcmp.gt.f32.partialorder %v2576, 0.0
      %vm2705 = vcmp.gt.f32.partialorder %v2577, 0.0
      %vm2706 = vcmp.gt.f32.partialorder %v2578, 0.0
      %vm2707 = vcmp.gt.f32.partialorder %v2579, 0.0
      %vm2708 = vcmp.gt.f32.partialorder %v2580, 0.0
      %vm2709 = vcmp.gt.f32.partialorder %v2581, 0.0
      %vm2710 = vcmp.gt.f32.partialorder %v2582, 0.0
      %vm2711 = vcmp.gt.f32.partialorder %v2583, 0.0
      %vm2712 = vcmp.gt.f32.partialorder %v2584, 0.0
      %vm2713 = vcmp.gt.f32.partialorder %v2585, 0.0
      %vm2714 = vcmp.gt.f32.partialorder %v2586, 0.0
      %vm2715 = vcmp.gt.f32.partialorder %v2587, 0.0
      %vm2716 = vcmp.gt.f32.partialorder %v2588, 0.0
      %vm2717 = vcmp.gt.f32.partialorder %v2589, 0.0
      %vm2718 = vcmp.gt.f32.partialorder %v2590, 0.0
      %vm2719 = vcmp.gt.f32.partialorder %v2591, 0.0
      %vm2720 = vcmp.gt.f32.partialorder %v2592, 0.0
      %vm2721 = vcmp.gt.f32.partialorder %v2593, 0.0
      %vm2722 = vcmp.gt.f32.partialorder %v2594, 0.0
      %vm2723 = vcmp.gt.f32.partialorder %v2595, 0.0
      %vm2724 = vcmp.gt.f32.partialorder %v2596, 0.0
      %vm2725 = vcmp.gt.f32.partialorder %v2597, 0.0
      %vm2726 = vcmp.gt.f32.partialorder %v2598, 0.0
      %vm2727 = vcmp.gt.f32.partialorder %v2599, 0.0
      %vm2728 = vcmp.gt.f32.partialorder %v2600, 0.0
      %vm2729 = vcmp.gt.f32.partialorder %v2601, 0.0
      %vm2730 = vcmp.gt.f32.partialorder %v2602, 0.0
      %vm2731 = vcmp.gt.f32.partialorder %v2603, 0.0
      %vm2732 = vcmp.gt.f32.partialorder %v2604, 0.0
      %vm2733 = vcmp.gt.f32.partialorder %v2605, 0.0
      %vm2734 = vcmp.gt.f32.partialorder %v2606, 0.0
      %vm2735 = vcmp.gt.f32.partialorder %v2607, 0.0
      %vm2736 = vcmp.gt.f32.partialorder %v2608, 0.0
      %vm2737 = vcmp.gt.f32.partialorder %v2609, 0.0
      %vm2738 = vcmp.gt.f32.partialorder %v2610, 0.0
      %vm2739 = vcmp.gt.f32.partialorder %v2611, 0.0
      %vm2740 = vcmp.gt.f32.partialorder %v2612, 0.0
      %vm2741 = vcmp.gt.f32.partialorder %v2613, 0.0
      %vm2742 = vcmp.gt.f32.partialorder %v2614, 0.0
      %vm2743 = vcmp.gt.f32.partialorder %v2615, 0.0
      %vm2744 = vcmp.gt.f32.partialorder %v2616, 0.0
      %vm2745 = vcmp.gt.f32.partialorder %v2617, 0.0
      %vm2746 = vcmp.gt.f32.partialorder %v2618, 0.0
      %vm2747 = vcmp.gt.f32.partialorder %v2619, 0.0
      %vm2748 = vcmp.gt.f32.partialorder %v2620, 0.0
      %vm2749 = vcmp.gt.f32.partialorder %v2621, 0.0
      %vm2750 = vcmp.gt.f32.partialorder %v2622, 0.0
      %vm2751 = vcmp.gt.f32.partialorder %v2623, 0.0
      %vm2752 = vcmp.gt.f32.partialorder %v2624, 0.0
      %vm2753 = vcmp.gt.f32.partialorder %v2625, 0.0
      %vm2754 = vcmp.gt.f32.partialorder %v2626, 0.0
      %vm2755 = vcmp.gt.f32.partialorder %v2627, 0.0
      %vm2756 = vcmp.gt.f32.partialorder %v2628, 0.0
      %vm2757 = vcmp.gt.f32.partialorder %v2629, 0.0
      %vm2758 = vcmp.gt.f32.partialorder %v2630, 0.0
      %vm2759 = vcmp.gt.f32.partialorder %v2631, 0.0
      %vm2760 = vcmp.gt.f32.partialorder %v2632, 0.0
      %vm2761 = vcmp.gt.f32.partialorder %v2633, 0.0
      %vm2762 = vcmp.gt.f32.partialorder %v2634, 0.0
      %vm2763 = vcmp.gt.f32.partialorder %v2635, 0.0
      %vm2764 = vcmp.gt.f32.partialorder %v2636, 0.0
      %vm2765 = vcmp.gt.f32.partialorder %v2637, 0.0
      %vm2766 = vcmp.gt.f32.partialorder %v2638, 0.0
      %vm2767 = vcmp.gt.f32.partialorder %v2639, 0.0
      %vm2768 = vcmp.gt.f32.partialorder %v2640, 0.0
      %vm2769 = vcmp.gt.f32.partialorder %v2641, 0.0
      %vm2770 = vcmp.gt.f32.partialorder %v2642, 0.0
      %vm2771 = vcmp.gt.f32.partialorder %v2643, 0.0
      %vm2772 = vcmp.gt.f32.partialorder %v2644, 0.0
      %vm2773 = vcmp.gt.f32.partialorder %v2645, 0.0
      %vm2774 = vcmp.gt.f32.partialorder %v2646, 0.0
      %vm2775 = vcmp.gt.f32.partialorder %v2647, 0.0
      %v2776 = vmin.f32 %v2520, 0.0
      %v2777 = vmin.f32 %v2521, 0.0
      %v2778 = vmin.f32 %v2522, 0.0
      %v2779 = vmin.f32 %v2523, 0.0
      %v2780 = vmin.f32 %v2524, 0.0
      %v2781 = vmin.f32 %v2525, 0.0
      %v2782 = vmin.f32 %v2526, 0.0
      %v2783 = vmin.f32 %v2527, 0.0
      %v2784 = vmin.f32 %v2528, 0.0
      %v2785 = vmin.f32 %v2529, 0.0
      %v2786 = vmin.f32 %v2530, 0.0
      %v2787 = vmin.f32 %v2531, 0.0
      %v2788 = vmin.f32 %v2532, 0.0
      %v2789 = vmin.f32 %v2533, 0.0
      %v2790 = vmin.f32 %v2534, 0.0
      %v2791 = vmin.f32 %v2535, 0.0
      %v2792 = vmin.f32 %v2536, 0.0
      %v2793 = vmin.f32 %v2537, 0.0
      %v2794 = vmin.f32 %v2538, 0.0
      %v2795 = vmin.f32 %v2539, 0.0
      %v2796 = vmin.f32 %v2540, 0.0
      %v2797 = vmin.f32 %v2541, 0.0
      %v2798 = vmin.f32 %v2542, 0.0
      %v2799 = vmin.f32 %v2543, 0.0
      %v2800 = vmin.f32 %v2544, 0.0
      %v2801 = vmin.f32 %v2545, 0.0
      %v2802 = vmin.f32 %v2546, 0.0
      %v2803 = vmin.f32 %v2547, 0.0
      %v2804 = vmin.f32 %v2548, 0.0
      %v2805 = vmin.f32 %v2549, 0.0
      %v2806 = vmin.f32 %v2550, 0.0
      %v2807 = vmin.f32 %v2551, 0.0
      %v2808 = vmin.f32 %v2552, 0.0
      %v2809 = vmin.f32 %v2553, 0.0
      %v2810 = vmin.f32 %v2554, 0.0
      %v2811 = vmin.f32 %v2555, 0.0
      %v2812 = vmin.f32 %v2556, 0.0
      %v2813 = vmin.f32 %v2557, 0.0
      %v2814 = vmin.f32 %v2558, 0.0
      %v2815 = vmin.f32 %v2559, 0.0
      %v2816 = vmin.f32 %v2560, 0.0
      %v2817 = vmin.f32 %v2561, 0.0
      %v2818 = vmin.f32 %v2562, 0.0
      %v2819 = vmin.f32 %v2563, 0.0
      %v2820 = vmin.f32 %v2564, 0.0
      %v2821 = vmin.f32 %v2565, 0.0
      %v2822 = vmin.f32 %v2566, 0.0
      %v2823 = vmin.f32 %v2567, 0.0
      %v2824 = vmin.f32 %v2568, 0.0
      %v2825 = vmin.f32 %v2569, 0.0
      %v2826 = vmin.f32 %v2570, 0.0
      %v2827 = vmin.f32 %v2571, 0.0
      %v2828 = vmin.f32 %v2572, 0.0
      %v2829 = vmin.f32 %v2573, 0.0
      %v2830 = vmin.f32 %v2574, 0.0
      %v2831 = vmin.f32 %v2575, 0.0
      %v2832 = vmin.f32 %v2576, 0.0
      %v2833 = vmin.f32 %v2577, 0.0
      %v2834 = vmin.f32 %v2578, 0.0
      %v2835 = vmin.f32 %v2579, 0.0
      %v2836 = vmin.f32 %v2580, 0.0
      %v2837 = vmin.f32 %v2581, 0.0
      %v2838 = vmin.f32 %v2582, 0.0
      %v2839 = vmin.f32 %v2583, 0.0
      %v2840 = vmin.f32 %v2584, 0.0
      %v2841 = vmin.f32 %v2585, 0.0
      %v2842 = vmin.f32 %v2586, 0.0
      %v2843 = vmin.f32 %v2587, 0.0
      %v2844 = vmin.f32 %v2588, 0.0
      %v2845 = vmin.f32 %v2589, 0.0
      %v2846 = vmin.f32 %v2590, 0.0
      %v2847 = vmin.f32 %v2591, 0.0
      %v2848 = vmin.f32 %v2592, 0.0
      %v2849 = vmin.f32 %v2593, 0.0
      %v2850 = vmin.f32 %v2594, 0.0
      %v2851 = vmin.f32 %v2595, 0.0
      %v2852 = vmin.f32 %v2596, 0.0
      %v2853 = vmin.f32 %v2597, 0.0
      %v2854 = vmin.f32 %v2598, 0.0
      %v2855 = vmin.f32 %v2599, 0.0
      %v2856 = vmin.f32 %v2600, 0.0
      %v2857 = vmin.f32 %v2601, 0.0
      %v2858 = vmin.f32 %v2602, 0.0
      %v2859 = vmin.f32 %v2603, 0.0
      %v2860 = vmin.f32 %v2604, 0.0
      %v2861 = vmin.f32 %v2605, 0.0
      %v2862 = vmin.f32 %v2606, 0.0
      %v2863 = vmin.f32 %v2607, 0.0
      %v2864 = vmin.f32 %v2608, 0.0
      %v2865 = vmin.f32 %v2609, 0.0
      %v2866 = vmin.f32 %v2610, 0.0
      %v2867 = vmin.f32 %v2611, 0.0
      %v2868 = vmin.f32 %v2612, 0.0
      %v2869 = vmin.f32 %v2613, 0.0
      %v2870 = vmin.f32 %v2614, 0.0
      %v2871 = vmin.f32 %v2615, 0.0
      %v2872 = vmin.f32 %v2616, 0.0
      %v2873 = vmin.f32 %v2617, 0.0
      %v2874 = vmin.f32 %v2618, 0.0
      %v2875 = vmin.f32 %v2619, 0.0
      %v2876 = vmin.f32 %v2620, 0.0
      %v2877 = vmin.f32 %v2621, 0.0
      %v2878 = vmin.f32 %v2622, 0.0
      %v2879 = vmin.f32 %v2623, 0.0
      %v2880 = vmin.f32 %v2624, 0.0
      %v2881 = vmin.f32 %v2625, 0.0
      %v2882 = vmin.f32 %v2626, 0.0
      %v2883 = vmin.f32 %v2627, 0.0
      %v2884 = vmin.f32 %v2628, 0.0
      %v2885 = vmin.f32 %v2629, 0.0
      %v2886 = vmin.f32 %v2630, 0.0
      %v2887 = vmin.f32 %v2631, 0.0
      %v2888 = vmin.f32 %v2632, 0.0
      %v2889 = vmin.f32 %v2633, 0.0
      %v2890 = vmin.f32 %v2634, 0.0
      %v2891 = vmin.f32 %v2635, 0.0
      %v2892 = vmin.f32 %v2636, 0.0
      %v2893 = vmin.f32 %v2637, 0.0
      %v2894 = vmin.f32 %v2638, 0.0
      %v2895 = vmin.f32 %v2639, 0.0
      %v2896 = vmin.f32 %v2640, 0.0
      %v2897 = vmin.f32 %v2641, 0.0
      %v2898 = vmin.f32 %v2642, 0.0
      %v2899 = vmin.f32 %v2643, 0.0
      %v2900 = vmin.f32 %v2644, 0.0
      %v2901 = vmin.f32 %v2645, 0.0
      %v2902 = vmin.f32 %v2646, 0.0
      %v2903 = vmin.f32 %v2647, 0.0
      %v2904 = vmul.f32 %v2776, 1.442695
      %v2905 = vpow.pop %v2904
      %v2906 = vmul.f32 %v2777, 1.442695
      %v2907 = vpow.pop %v2906
      %v2908 = vmul.f32 %v2778, 1.442695
      %v2909 = vpow.pop %v2908
      %v2910 = vmul.f32 %v2779, 1.442695
      %v2911 = vpow.pop %v2910
      %v2912 = vmul.f32 %v2780, 1.442695
      %v2913 = vpow.pop %v2912
      %v2914 = vmul.f32 %v2781, 1.442695
      %v2915 = vpow.pop %v2914
      %v2916 = vmul.f32 %v2782, 1.442695
      %v2917 = vpow.pop %v2916
      %v2918 = vmul.f32 %v2783, 1.442695
      %v2919 = vpow.pop %v2918
      %v2920 = vmul.f32 %v2784, 1.442695
      %v2921 = vpow.pop %v2920
      %v2922 = vmul.f32 %v2785, 1.442695
      %v2923 = vpow.pop %v2922
      %v2924 = vmul.f32 %v2786, 1.442695
      %v2925 = vpow.pop %v2924
      %v2926 = vmul.f32 %v2787, 1.442695
      %v2927 = vpow.pop %v2926
      %v2928 = vmul.f32 %v2788, 1.442695
      %v2929 = vpow.pop %v2928
      %v2930 = vmul.f32 %v2789, 1.442695
      %v2931 = vpow.pop %v2930
      %v2932 = vmul.f32 %v2790, 1.442695
      %v2933 = vpow.pop %v2932
      %v2934 = vmul.f32 %v2791, 1.442695
      %v2935 = vpow.pop %v2934
      %v2936 = vmul.f32 %v2792, 1.442695
      %v2937 = vpow.pop %v2936
      %v2938 = vmul.f32 %v2793, 1.442695
      %v2939 = vpow.pop %v2938
      %v2940 = vmul.f32 %v2794, 1.442695
      %v2941 = vpow.pop %v2940
      %v2942 = vmul.f32 %v2795, 1.442695
      %v2943 = vpow.pop %v2942
      %v2944 = vmul.f32 %v2796, 1.442695
      %v2945 = vpow.pop %v2944
      %v2946 = vmul.f32 %v2797, 1.442695
      %v2947 = vpow.pop %v2946
      %v2948 = vmul.f32 %v2798, 1.442695
      %v2949 = vpow.pop %v2948
      %v2950 = vmul.f32 %v2799, 1.442695
      %v2951 = vpow.pop %v2950
      %v2952 = vmul.f32 %v2800, 1.442695
      %v2953 = vpow.pop %v2952
      %v2954 = vmul.f32 %v2801, 1.442695
      %v2955 = vpow.pop %v2954
      %v2956 = vmul.f32 %v2802, 1.442695
      %v2957 = vpow.pop %v2956
      %v2958 = vmul.f32 %v2803, 1.442695
      %v2959 = vpow.pop %v2958
      %v2960 = vmul.f32 %v2804, 1.442695
      %v2961 = vpow.pop %v2960
      %v2962 = vmul.f32 %v2805, 1.442695
      %v2963 = vpow.pop %v2962
      %v2964 = vmul.f32 %v2806, 1.442695
      %v2965 = vpow.pop %v2964
      %v2966 = vmul.f32 %v2807, 1.442695
      %v2967 = vpow.pop %v2966
      %v2968 = vmul.f32 %v2808, 1.442695
      %v2969 = vpow.pop %v2968
      %v2970 = vmul.f32 %v2809, 1.442695
      %v2971 = vpow.pop %v2970
      %v2972 = vmul.f32 %v2810, 1.442695
      %v2973 = vpow.pop %v2972
      %v2974 = vmul.f32 %v2811, 1.442695
      %v2975 = vpow.pop %v2974
      %v2976 = vmul.f32 %v2812, 1.442695
      %v2977 = vpow.pop %v2976
      %v2978 = vmul.f32 %v2813, 1.442695
      %v2979 = vpow.pop %v2978
      %v2980 = vmul.f32 %v2814, 1.442695
      %v2981 = vpow.pop %v2980
      %v2982 = vmul.f32 %v2815, 1.442695
      %v2983 = vpow.pop %v2982
      %v2984 = vmul.f32 %v2816, 1.442695
      %v2985 = vpow.pop %v2984
      %v2986 = vmul.f32 %v2817, 1.442695
      %v2987 = vpow.pop %v2986
      %v2988 = vmul.f32 %v2818, 1.442695
      %v2989 = vpow.pop %v2988
      %v2990 = vmul.f32 %v2819, 1.442695
      %v2991 = vpow.pop %v2990
      %v2992 = vmul.f32 %v2820, 1.442695
      %v2993 = vpow.pop %v2992
      %v2994 = vmul.f32 %v2821, 1.442695
      %v2995 = vpow.pop %v2994
      %v2996 = vmul.f32 %v2822, 1.442695
      %v2997 = vpow.pop %v2996
      %v2998 = vmul.f32 %v2823, 1.442695
      %v2999 = vpow.pop %v2998
      %v3000 = vmul.f32 %v2824, 1.442695
      %v3001 = vpow.pop %v3000
      %v3002 = vmul.f32 %v2825, 1.442695
      %v3003 = vpow.pop %v3002
      %v3004 = vmul.f32 %v2826, 1.442695
      %v3005 = vpow.pop %v3004
      %v3006 = vmul.f32 %v2827, 1.442695
      %v3007 = vpow.pop %v3006
      %v3008 = vmul.f32 %v2828, 1.442695
      %v3009 = vpow.pop %v3008
      %v3010 = vmul.f32 %v2829, 1.442695
      %v3011 = vpow.pop %v3010
      %v3012 = vmul.f32 %v2830, 1.442695
      %v3013 = vpow.pop %v3012
      %v3014 = vmul.f32 %v2831, 1.442695
      %v3015 = vpow.pop %v3014
      %v3016 = vmul.f32 %v2832, 1.442695
      %v3017 = vpow.pop %v3016
      %v3018 = vmul.f32 %v2833, 1.442695
      %v3019 = vpow.pop %v3018
      %v3020 = vmul.f32 %v2834, 1.442695
      %v3021 = vpow.pop %v3020
      %v3022 = vmul.f32 %v2835, 1.442695
      %v3023 = vpow.pop %v3022
      %v3024 = vmul.f32 %v2836, 1.442695
      %v3025 = vpow.pop %v3024
      %v3026 = vmul.f32 %v2837, 1.442695
      %v3027 = vpow.pop %v3026
      %v3028 = vmul.f32 %v2838, 1.442695
      %v3029 = vpow.pop %v3028
      %v3030 = vmul.f32 %v2839, 1.442695
      %v3031 = vpow.pop %v3030
      %v3032 = vmul.f32 %v2840, 1.442695
      %v3033 = vpow.pop %v3032
      %v3034 = vmul.f32 %v2841, 1.442695
      %v3035 = vpow.pop %v3034
      %v3036 = vmul.f32 %v2842, 1.442695
      %v3037 = vpow.pop %v3036
      %v3038 = vmul.f32 %v2843, 1.442695
      %v3039 = vpow.pop %v3038
      %v3040 = vmul.f32 %v2844, 1.442695
      %v3041 = vpow.pop %v3040
      %v3042 = vmul.f32 %v2845, 1.442695
      %v3043 = vpow.pop %v3042
      %v3044 = vmul.f32 %v2846, 1.442695
      %v3045 = vpow.pop %v3044
      %v3046 = vmul.f32 %v2847, 1.442695
      %v3047 = vpow.pop %v3046
      %v3048 = vmul.f32 %v2848, 1.442695
      %v3049 = vpow.pop %v3048
      %v3050 = vmul.f32 %v2849, 1.442695
      %v3051 = vpow.pop %v3050
      %v3052 = vmul.f32 %v2850, 1.442695
      %v3053 = vpow.pop %v3052
      %v3054 = vmul.f32 %v2851, 1.442695
      %v3055 = vpow.pop %v3054
      %v3056 = vmul.f32 %v2852, 1.442695
      %v3057 = vpow.pop %v3056
      %v3058 = vmul.f32 %v2853, 1.442695
      %v3059 = vpow.pop %v3058
      %v3060 = vmul.f32 %v2854, 1.442695
      %v3061 = vpow.pop %v3060
      %v3062 = vmul.f32 %v2855, 1.442695
      %v3063 = vpow.pop %v3062
      %v3064 = vmul.f32 %v2856, 1.442695
      %v3065 = vpow.pop %v3064
      %v3066 = vmul.f32 %v2857, 1.442695
      %v3067 = vpow.pop %v3066
      %v3068 = vmul.f32 %v2858, 1.442695
      %v3069 = vpow.pop %v3068
      %v3070 = vmul.f32 %v2859, 1.442695
      %v3071 = vpow.pop %v3070
      %v3072 = vmul.f32 %v2860, 1.442695
      %v3073 = vpow.pop %v3072
      %v3074 = vmul.f32 %v2861, 1.442695
      %v3075 = vpow.pop %v3074
      %v3076 = vmul.f32 %v2862, 1.442695
      %v3077 = vpow.pop %v3076
      %v3078 = vmul.f32 %v2863, 1.442695
      %v3079 = vpow.pop %v3078
      %v3080 = vmul.f32 %v2864, 1.442695
      %v3081 = vpow.pop %v3080
      %v3082 = vmul.f32 %v2865, 1.442695
      %v3083 = vpow.pop %v3082
      %v3084 = vmul.f32 %v2866, 1.442695
      %v3085 = vpow.pop %v3084
      %v3086 = vmul.f32 %v2867, 1.442695
      %v3087 = vpow.pop %v3086
      %v3088 = vmul.f32 %v2868, 1.442695
      %v3089 = vpow.pop %v3088
      %v3090 = vmul.f32 %v2869, 1.442695
      %v3091 = vpow.pop %v3090
      %v3092 = vmul.f32 %v2870, 1.442695
      %v3093 = vpow.pop %v3092
      %v3094 = vmul.f32 %v2871, 1.442695
      %v3095 = vpow.pop %v3094
      %v3096 = vmul.f32 %v2872, 1.442695
      %v3097 = vpow.pop %v3096
      %v3098 = vmul.f32 %v2873, 1.442695
      %v3099 = vpow.pop %v3098
      %v3100 = vmul.f32 %v2874, 1.442695
      %v3101 = vpow.pop %v3100
      %v3102 = vmul.f32 %v2875, 1.442695
      %v3103 = vpow.pop %v3102
      %v3104 = vmul.f32 %v2876, 1.442695
      %v3105 = vpow.pop %v3104
      %v3106 = vmul.f32 %v2877, 1.442695
      %v3107 = vpow.pop %v3106
      %v3108 = vmul.f32 %v2878, 1.442695
      %v3109 = vpow.pop %v3108
      %v3110 = vmul.f32 %v2879, 1.442695
      %v3111 = vpow.pop %v3110
      %v3112 = vmul.f32 %v2880, 1.442695
      %v3113 = vpow.pop %v3112
      %v3114 = vmul.f32 %v2881, 1.442695
      %v3115 = vpow.pop %v3114
      %v3116 = vmul.f32 %v2882, 1.442695
      %v3117 = vpow.pop %v3116
      %v3118 = vmul.f32 %v2883, 1.442695
      %v3119 = vpow.pop %v3118
      %v3120 = vmul.f32 %v2884, 1.442695
      %v3121 = vpow.pop %v3120
      %v3122 = vmul.f32 %v2885, 1.442695
      %v3123 = vpow.pop %v3122
      %v3124 = vmul.f32 %v2886, 1.442695
      %v3125 = vpow.pop %v3124
      %v3126 = vmul.f32 %v2887, 1.442695
      %v3127 = vpow.pop %v3126
      %v3128 = vmul.f32 %v2888, 1.442695
      %v3129 = vpow.pop %v3128
      %v3130 = vmul.f32 %v2889, 1.442695
      %v3131 = vpow.pop %v3130
      %v3132 = vmul.f32 %v2890, 1.442695
      %v3133 = vpow.pop %v3132
      %v3134 = vmul.f32 %v2891, 1.442695
      %v3135 = vpow.pop %v3134
      %v3136 = vmul.f32 %v2892, 1.442695
      %v3137 = vpow.pop %v3136
      %v3138 = vmul.f32 %v2893, 1.442695
      %v3139 = vpow.pop %v3138
      %v3140 = vmul.f32 %v2894, 1.442695
      %v3141 = vpow.pop %v3140
      %v3142 = vmul.f32 %v2895, 1.442695
      %v3143 = vpow.pop %v3142
      %v3144 = vmul.f32 %v2896, 1.442695
      %v3145 = vpow.pop %v3144
      %v3146 = vmul.f32 %v2897, 1.442695
      %v3147 = vpow.pop %v3146
      %v3148 = vmul.f32 %v2898, 1.442695
      %v3149 = vpow.pop %v3148
      %v3150 = vmul.f32 %v2899, 1.442695
      %v3151 = vpow.pop %v3150
      %v3152 = vmul.f32 %v2900, 1.442695
      %v3153 = vpow.pop %v3152
      %v3154 = vmul.f32 %v2901, 1.442695
      %v3155 = vpow.pop %v3154
      %v3156 = vmul.f32 %v2902, 1.442695
      %v3157 = vpow.pop %v3156
      %v3158 = vmul.f32 %v2903, 1.442695
      %v3159 = vpow.pop %v3158
      %v3160 = vsub.f32 %v2905, 1.0
      %v3161 = vsub.f32 %v2907, 1.0
      %v3162 = vsub.f32 %v2909, 1.0
      %v3163 = vsub.f32 %v2911, 1.0
      %v3164 = vsub.f32 %v2913, 1.0
      %v3165 = vsub.f32 %v2915, 1.0
      %v3166 = vsub.f32 %v2917, 1.0
      %v3167 = vsub.f32 %v2919, 1.0
      %v3168 = vsub.f32 %v2921, 1.0
      %v3169 = vsub.f32 %v2923, 1.0
      %v3170 = vsub.f32 %v2925, 1.0
      %v3171 = vsub.f32 %v2927, 1.0
      %v3172 = vsub.f32 %v2929, 1.0
      %v3173 = vsub.f32 %v2931, 1.0
      %v3174 = vsub.f32 %v2933, 1.0
      %v3175 = vsub.f32 %v2935, 1.0
      %v3176 = vsub.f32 %v2937, 1.0
      %v3177 = vsub.f32 %v2939, 1.0
      %v3178 = vsub.f32 %v2941, 1.0
      %v3179 = vsub.f32 %v2943, 1.0
      %v3180 = vsub.f32 %v2945, 1.0
      %v3181 = vsub.f32 %v2947, 1.0
      %v3182 = vsub.f32 %v2949, 1.0
      %v3183 = vsub.f32 %v2951, 1.0
      %v3184 = vsub.f32 %v2953, 1.0
      %v3185 = vsub.f32 %v2955, 1.0
      %v3186 = vsub.f32 %v2957, 1.0
      %v3187 = vsub.f32 %v2959, 1.0
      %v3188 = vsub.f32 %v2961, 1.0
      %v3189 = vsub.f32 %v2963, 1.0
      %v3190 = vsub.f32 %v2965, 1.0
      %v3191 = vsub.f32 %v2967, 1.0
      %v3192 = vsub.f32 %v2969, 1.0
      %v3193 = vsub.f32 %v2971, 1.0
      %v3194 = vsub.f32 %v2973, 1.0
      %v3195 = vsub.f32 %v2975, 1.0
      %v3196 = vsub.f32 %v2977, 1.0
      %v3197 = vsub.f32 %v2979, 1.0
      %v3198 = vsub.f32 %v2981, 1.0
      %v3199 = vsub.f32 %v2983, 1.0
      %v3200 = vsub.f32 %v2985, 1.0
      %v3201 = vsub.f32 %v2987, 1.0
      %v3202 = vsub.f32 %v2989, 1.0
      %v3203 = vsub.f32 %v2991, 1.0
      %v3204 = vsub.f32 %v2993, 1.0
      %v3205 = vsub.f32 %v2995, 1.0
      %v3206 = vsub.f32 %v2997, 1.0
      %v3207 = vsub.f32 %v2999, 1.0
      %v3208 = vsub.f32 %v3001, 1.0
      %v3209 = vsub.f32 %v3003, 1.0
      %v3210 = vsub.f32 %v3005, 1.0
      %v3211 = vsub.f32 %v3007, 1.0
      %v3212 = vsub.f32 %v3009, 1.0
      %v3213 = vsub.f32 %v3011, 1.0
      %v3214 = vsub.f32 %v3013, 1.0
      %v3215 = vsub.f32 %v3015, 1.0
      %v3216 = vsub.f32 %v3017, 1.0
      %v3217 = vsub.f32 %v3019, 1.0
      %v3218 = vsub.f32 %v3021, 1.0
      %v3219 = vsub.f32 %v3023, 1.0
      %v3220 = vsub.f32 %v3025, 1.0
      %v3221 = vsub.f32 %v3027, 1.0
      %v3222 = vsub.f32 %v3029, 1.0
      %v3223 = vsub.f32 %v3031, 1.0
      %v3224 = vsub.f32 %v3033, 1.0
      %v3225 = vsub.f32 %v3035, 1.0
      %v3226 = vsub.f32 %v3037, 1.0
      %v3227 = vsub.f32 %v3039, 1.0
      %v3228 = vsub.f32 %v3041, 1.0
      %v3229 = vsub.f32 %v3043, 1.0
      %v3230 = vsub.f32 %v3045, 1.0
      %v3231 = vsub.f32 %v3047, 1.0
      %v3232 = vsub.f32 %v3049, 1.0
      %v3233 = vsub.f32 %v3051, 1.0
      %v3234 = vsub.f32 %v3053, 1.0
      %v3235 = vsub.f32 %v3055, 1.0
      %v3236 = vsub.f32 %v3057, 1.0
      %v3237 = vsub.f32 %v3059, 1.0
      %v3238 = vsub.f32 %v3061, 1.0
      %v3239 = vsub.f32 %v3063, 1.0
      %v3240 = vsub.f32 %v3065, 1.0
      %v3241 = vsub.f32 %v3067, 1.0
      %v3242 = vsub.f32 %v3069, 1.0
      %v3243 = vsub.f32 %v3071, 1.0
      %v3244 = vsub.f32 %v3073, 1.0
      %v3245 = vsub.f32 %v3075, 1.0
      %v3246 = vsub.f32 %v3077, 1.0
      %v3247 = vsub.f32 %v3079, 1.0
      %v3248 = vsub.f32 %v3081, 1.0
      %v3249 = vsub.f32 %v3083, 1.0
      %v3250 = vsub.f32 %v3085, 1.0
      %v3251 = vsub.f32 %v3087, 1.0
      %v3252 = vsub.f32 %v3089, 1.0
      %v3253 = vsub.f32 %v3091, 1.0
      %v3254 = vsub.f32 %v3093, 1.0
      %v3255 = vsub.f32 %v3095, 1.0
      %v3256 = vsub.f32 %v3097, 1.0
      %v3257 = vsub.f32 %v3099, 1.0
      %v3258 = vsub.f32 %v3101, 1.0
      %v3259 = vsub.f32 %v3103, 1.0
      %v3260 = vsub.f32 %v3105, 1.0
      %v3261 = vsub.f32 %v3107, 1.0
      %v3262 = vsub.f32 %v3109, 1.0
      %v3263 = vsub.f32 %v3111, 1.0
      %v3264 = vsub.f32 %v3113, 1.0
      %v3265 = vsub.f32 %v3115, 1.0
      %v3266 = vsub.f32 %v3117, 1.0
      %v3267 = vsub.f32 %v3119, 1.0
      %v3268 = vsub.f32 %v3121, 1.0
      %v3269 = vsub.f32 %v3123, 1.0
      %v3270 = vsub.f32 %v3125, 1.0
      %v3271 = vsub.f32 %v3127, 1.0
      %v3272 = vsub.f32 %v3129, 1.0
      %v3273 = vsub.f32 %v3131, 1.0
      %v3274 = vsub.f32 %v3133, 1.0
      %v3275 = vsub.f32 %v3135, 1.0
      %v3276 = vsub.f32 %v3137, 1.0
      %v3277 = vsub.f32 %v3139, 1.0
      %v3278 = vsub.f32 %v3141, 1.0
      %v3279 = vsub.f32 %v3143, 1.0
      %v3280 = vsub.f32 %v3145, 1.0
      %v3281 = vsub.f32 %v3147, 1.0
      %v3282 = vsub.f32 %v3149, 1.0
      %v3283 = vsub.f32 %v3151, 1.0
      %v3284 = vsub.f32 %v3153, 1.0
      %v3285 = vsub.f32 %v3155, 1.0
      %v3286 = vsub.f32 %v3157, 1.0
      %v3287 = vsub.f32 %v3159, 1.0
      %v3288 = vsel %vm2648, %v2520, %v3160
      %v3289 = vsel %vm2649, %v2521, %v3161
      %v3290 = vsel %vm2650, %v2522, %v3162
      %v3291 = vsel %vm2651, %v2523, %v3163
      %v3292 = vsel %vm2652, %v2524, %v3164
      %v3293 = vsel %vm2653, %v2525, %v3165
      %v3294 = vsel %vm2654, %v2526, %v3166
      %v3295 = vsel %vm2655, %v2527, %v3167
      %v3296 = vsel %vm2656, %v2528, %v3168
      %v3297 = vsel %vm2657, %v2529, %v3169
      %v3298 = vsel %vm2658, %v2530, %v3170
      %v3299 = vsel %vm2659, %v2531, %v3171
      %v3300 = vsel %vm2660, %v2532, %v3172
      %v3301 = vsel %vm2661, %v2533, %v3173
      %v3302 = vsel %vm2662, %v2534, %v3174
      %v3303 = vsel %vm2663, %v2535, %v3175
      %v3304 = vsel %vm2664, %v2536, %v3176
      %v3305 = vsel %vm2665, %v2537, %v3177
      %v3306 = vsel %vm2666, %v2538, %v3178
      %v3307 = vsel %vm2667, %v2539, %v3179
      %v3308 = vsel %vm2668, %v2540, %v3180
      %v3309 = vsel %vm2669, %v2541, %v3181
      %v3310 = vsel %vm2670, %v2542, %v3182
      %v3311 = vsel %vm2671, %v2543, %v3183
      %v3312 = vsel %vm2672, %v2544, %v3184
      %v3313 = vsel %vm2673, %v2545, %v3185
      %v3314 = vsel %vm2674, %v2546, %v3186
      %v3315 = vsel %vm2675, %v2547, %v3187
      %v3316 = vsel %vm2676, %v2548, %v3188
      %v3317 = vsel %vm2677, %v2549, %v3189
      %v3318 = vsel %vm2678, %v2550, %v3190
      %v3319 = vsel %vm2679, %v2551, %v3191
      %v3320 = vsel %vm2680, %v2552, %v3192
      %v3321 = vsel %vm2681, %v2553, %v3193
      %v3322 = vsel %vm2682, %v2554, %v3194
      %v3323 = vsel %vm2683, %v2555, %v3195
      %v3324 = vsel %vm2684, %v2556, %v3196
      %v3325 = vsel %vm2685, %v2557, %v3197
      %v3326 = vsel %vm2686, %v2558, %v3198
      %v3327 = vsel %vm2687, %v2559, %v3199
      %v3328 = vsel %vm2688, %v2560, %v3200
      %v3329 = vsel %vm2689, %v2561, %v3201
      %v3330 = vsel %vm2690, %v2562, %v3202
      %v3331 = vsel %vm2691, %v2563, %v3203
      %v3332 = vsel %vm2692, %v2564, %v3204
      %v3333 = vsel %vm2693, %v2565, %v3205
      %v3334 = vsel %vm2694, %v2566, %v3206
      %v3335 = vsel %vm2695, %v2567, %v3207
      %v3336 = vsel %vm2696, %v2568, %v3208
      %v3337 = vsel %vm2697, %v2569, %v3209
      %v3338 = vsel %vm2698, %v2570, %v3210
      %v3339 = vsel %vm2699, %v2571, %v3211
      %v3340 = vsel %vm2700, %v2572, %v3212
      %v3341 = vsel %vm2701, %v2573, %v3213
      %v3342 = vsel %vm2702, %v2574, %v3214
      %v3343 = vsel %vm2703, %v2575, %v3215
      %v3344 = vsel %vm2704, %v2576, %v3216
      %v3345 = vsel %vm2705, %v2577, %v3217
      %v3346 = vsel %vm2706, %v2578, %v3218
      %v3347 = vsel %vm2707, %v2579, %v3219
      %v3348 = vsel %vm2708, %v2580, %v3220
      %v3349 = vsel %vm2709, %v2581, %v3221
      %v3350 = vsel %vm2710, %v2582, %v3222
      %v3351 = vsel %vm2711, %v2583, %v3223
      %v3352 = vsel %vm2712, %v2584, %v3224
      %v3353 = vsel %vm2713, %v2585, %v3225
      %v3354 = vsel %vm2714, %v2586, %v3226
      %v3355 = vsel %vm2715, %v2587, %v3227
      %v3356 = vsel %vm2716, %v2588, %v3228
      %v3357 = vsel %vm2717, %v2589, %v3229
      %v3358 = vsel %vm2718, %v2590, %v3230
      %v3359 = vsel %vm2719, %v2591, %v3231
      %v3360 = vsel %vm2720, %v2592, %v3232
      %v3361 = vsel %vm2721, %v2593, %v3233
      %v3362 = vsel %vm2722, %v2594, %v3234
      %v3363 = vsel %vm2723, %v2595, %v3235
      %v3364 = vsel %vm2724, %v2596, %v3236
      %v3365 = vsel %vm2725, %v2597, %v3237
      %v3366 = vsel %vm2726, %v2598, %v3238
      %v3367 = vsel %vm2727, %v2599, %v3239
      %v3368 = vsel %vm2728, %v2600, %v3240
      %v3369 = vsel %vm2729, %v2601, %v3241
      %v3370 = vsel %vm2730, %v2602, %v3242
      %v3371 = vsel %vm2731, %v2603, %v3243
      %v3372 = vsel %vm2732, %v2604, %v3244
      %v3373 = vsel %vm2733, %v2605, %v3245
      %v3374 = vsel %vm2734, %v2606, %v3246
      %v3375 = vsel %vm2735, %v2607, %v3247
      %v3376 = vsel %vm2736, %v2608, %v3248
      %v3377 = vsel %vm2737, %v2609, %v3249
      %v3378 = vsel %vm2738, %v2610, %v3250
      %v3379 = vsel %vm2739, %v2611, %v3251
      %v3380 = vsel %vm2740, %v2612, %v3252
      %v3381 = vsel %vm2741, %v2613, %v3253
      %v3382 = vsel %vm2742, %v2614, %v3254
      %v3383 = vsel %vm2743, %v2615, %v3255
      %v3384 = vsel %vm2744, %v2616, %v3256
      %v3385 = vsel %vm2745, %v2617, %v3257
      %v3386 = vsel %vm2746, %v2618, %v3258
      %v3387 = vsel %vm2747, %v2619, %v3259
      %v3388 = vsel %vm2748, %v2620, %v3260
      %v3389 = vsel %vm2749, %v2621, %v3261
      %v3390 = vsel %vm2750, %v2622, %v3262
      %v3391 = vsel %vm2751, %v2623, %v3263
      %v3392 = vsel %vm2752, %v2624, %v3264
      %v3393 = vsel %vm2753, %v2625, %v3265
      %v3394 = vsel %vm2754, %v2626, %v3266
      %v3395 = vsel %vm2755, %v2627, %v3267
      %v3396 = vsel %vm2756, %v2628, %v3268
      %v3397 = vsel %vm2757, %v2629, %v3269
      %v3398 = vsel %vm2758, %v2630, %v3270
      %v3399 = vsel %vm2759, %v2631, %v3271
      %v3400 = vsel %vm2760, %v2632, %v3272
      %v3401 = vsel %vm2761, %v2633, %v3273
      %v3402 = vsel %vm2762, %v2634, %v3274
      %v3403 = vsel %vm2763, %v2635, %v3275
      %v3404 = vsel %vm2764, %v2636, %v3276
      %v3405 = vsel %vm2765, %v2637, %v3277
      %v3406 = vsel %vm2766, %v2638, %v3278
      %v3407 = vsel %vm2767, %v2639, %v3279
      %v3408 = vsel %vm2768, %v2640, %v3280
      %v3409 = vsel %vm2769, %v2641, %v3281
      %v3410 = vsel %vm2770, %v2642, %v3282
      %v3411 = vsel %vm2771, %v2643, %v3283
      %v3412 = vsel %vm2772, %v2644, %v3284
      %v3413 = vsel %vm2773, %v2645, %v3285
      %v3414 = vsel %vm2774, %v2646, %v3286
      %v3415 = vsel %vm2775, %v2647, %v3287
      %v3544 = vcombine.low %v3288, %v3289
      %v3545 = vcombine.low %v3290, %v3291
      %v3547 = vunpack.c.l.s4 1983009808
      %v3548 = vunpack.c.0.s8 %v3547
      %v3549 = vlaneseq
      %v3550 = vshrl.u32 %v3549, 7
      %v3551 = vsub.s32 %v3548, %v3550
      %v3552 = vrot.slane %v3544, %v3551
      %v3554 = vunpack.c.l.s4 1983009808
      %v3555 = vunpack.c.0.s8 %v3554
      %v3556 = vlaneseq
      %v3557 = vshrl.u32 %v3556, 7
      %v3558 = vsub.s32 %v3555, %v3557
      %v3559 = vrot.slane %v3545, %v3558
      %v3560 = vcombine.low %v3552, %v3559
      %v3561 = vcombine.low %v3292, %v3293
      %v3562 = vcombine.low %v3294, %v3295
      %v3564 = vunpack.c.l.s4 1983009808
      %v3565 = vunpack.c.0.s8 %v3564
      %v3566 = vlaneseq
      %v3567 = vshrl.u32 %v3566, 7
      %v3568 = vsub.s32 %v3565, %v3567
      %v3569 = vrot.slane %v3561, %v3568
      %v3571 = vunpack.c.l.s4 1983009808
      %v3572 = vunpack.c.0.s8 %v3571
      %v3573 = vlaneseq
      %v3574 = vshrl.u32 %v3573, 7
      %v3575 = vsub.s32 %v3572, %v3574
      %v3576 = vrot.slane %v3562, %v3575
      %v3577 = vcombine.low %v3569, %v3576
      %v3578 = vcombine.low %v3296, %v3297
      %v3579 = vcombine.low %v3298, %v3299
      %v3581 = vunpack.c.l.s4 1983009808
      %v3582 = vunpack.c.0.s8 %v3581
      %v3583 = vlaneseq
      %v3584 = vshrl.u32 %v3583, 7
      %v3585 = vsub.s32 %v3582, %v3584
      %v3586 = vrot.slane %v3578, %v3585
      %v3588 = vunpack.c.l.s4 1983009808
      %v3589 = vunpack.c.0.s8 %v3588
      %v3590 = vlaneseq
      %v3591 = vshrl.u32 %v3590, 7
      %v3592 = vsub.s32 %v3589, %v3591
      %v3593 = vrot.slane %v3579, %v3592
      %v3594 = vcombine.low %v3586, %v3593
      %v3595 = vcombine.low %v3300, %v3301
      %v3596 = vcombine.low %v3302, %v3303
      %v3598 = vunpack.c.l.s4 1983009808
      %v3599 = vunpack.c.0.s8 %v3598
      %v3600 = vlaneseq
      %v3601 = vshrl.u32 %v3600, 7
      %v3602 = vsub.s32 %v3599, %v3601
      %v3603 = vrot.slane %v3595, %v3602
      %v3605 = vunpack.c.l.s4 1983009808
      %v3606 = vunpack.c.0.s8 %v3605
      %v3607 = vlaneseq
      %v3608 = vshrl.u32 %v3607, 7
      %v3609 = vsub.s32 %v3606, %v3608
      %v3610 = vrot.slane %v3596, %v3609
      %v3611 = vcombine.low %v3603, %v3610
      %v3612 = vcombine.low %v3304, %v3305
      %v3613 = vcombine.low %v3306, %v3307
      %v3615 = vunpack.c.l.s4 1983009808
      %v3616 = vunpack.c.0.s8 %v3615
      %v3617 = vlaneseq
      %v3618 = vshrl.u32 %v3617, 7
      %v3619 = vsub.s32 %v3616, %v3618
      %v3620 = vrot.slane %v3612, %v3619
      %v3622 = vunpack.c.l.s4 1983009808
      %v3623 = vunpack.c.0.s8 %v3622
      %v3624 = vlaneseq
      %v3625 = vshrl.u32 %v3624, 7
      %v3626 = vsub.s32 %v3623, %v3625
      %v3627 = vrot.slane %v3613, %v3626
      %v3628 = vcombine.low %v3620, %v3627
      %v3629 = vcombine.low %v3308, %v3309
      %v3630 = vcombine.low %v3310, %v3311
      %v3632 = vunpack.c.l.s4 1983009808
      %v3633 = vunpack.c.0.s8 %v3632
      %v3634 = vlaneseq
      %v3635 = vshrl.u32 %v3634, 7
      %v3636 = vsub.s32 %v3633, %v3635
      %v3637 = vrot.slane %v3629, %v3636
      %v3639 = vunpack.c.l.s4 1983009808
      %v3640 = vunpack.c.0.s8 %v3639
      %v3641 = vlaneseq
      %v3642 = vshrl.u32 %v3641, 7
      %v3643 = vsub.s32 %v3640, %v3642
      %v3644 = vrot.slane %v3630, %v3643
      %v3645 = vcombine.low %v3637, %v3644
      %v3646 = vcombine.low %v3312, %v3313
      %v3647 = vcombine.low %v3314, %v3315
      %v3649 = vunpack.c.l.s4 1983009808
      %v3650 = vunpack.c.0.s8 %v3649
      %v3651 = vlaneseq
      %v3652 = vshrl.u32 %v3651, 7
      %v3653 = vsub.s32 %v3650, %v3652
      %v3654 = vrot.slane %v3646, %v3653
      %v3656 = vunpack.c.l.s4 1983009808
      %v3657 = vunpack.c.0.s8 %v3656
      %v3658 = vlaneseq
      %v3659 = vshrl.u32 %v3658, 7
      %v3660 = vsub.s32 %v3657, %v3659
      %v3661 = vrot.slane %v3647, %v3660
      %v3662 = vcombine.low %v3654, %v3661
      %v3663 = vcombine.low %v3316, %v3317
      %v3664 = vcombine.low %v3318, %v3319
      %v3666 = vunpack.c.l.s4 1983009808
      %v3667 = vunpack.c.0.s8 %v3666
      %v3668 = vlaneseq
      %v3669 = vshrl.u32 %v3668, 7
      %v3670 = vsub.s32 %v3667, %v3669
      %v3671 = vrot.slane %v3663, %v3670
      %v3673 = vunpack.c.l.s4 1983009808
      %v3674 = vunpack.c.0.s8 %v3673
      %v3675 = vlaneseq
      %v3676 = vshrl.u32 %v3675, 7
      %v3677 = vsub.s32 %v3674, %v3676
      %v3678 = vrot.slane %v3664, %v3677
      %v3679 = vcombine.low %v3671, %v3678
      %v3680 = vcombine.low %v3320, %v3321
      %v3681 = vcombine.low %v3322, %v3323
      %v3683 = vunpack.c.l.s4 1983009808
      %v3684 = vunpack.c.0.s8 %v3683
      %v3685 = vlaneseq
      %v3686 = vshrl.u32 %v3685, 7
      %v3687 = vsub.s32 %v3684, %v3686
      %v3688 = vrot.slane %v3680, %v3687
      %v3690 = vunpack.c.l.s4 1983009808
      %v3691 = vunpack.c.0.s8 %v3690
      %v3692 = vlaneseq
      %v3693 = vshrl.u32 %v3692, 7
      %v3694 = vsub.s32 %v3691, %v3693
      %v3695 = vrot.slane %v3681, %v3694
      %v3696 = vcombine.low %v3688, %v3695
      %v3697 = vcombine.low %v3324, %v3325
      %v3698 = vcombine.low %v3326, %v3327
      %v3700 = vunpack.c.l.s4 1983009808
      %v3701 = vunpack.c.0.s8 %v3700
      %v3702 = vlaneseq
      %v3703 = vshrl.u32 %v3702, 7
      %v3704 = vsub.s32 %v3701, %v3703
      %v3705 = vrot.slane %v3697, %v3704
      %v3707 = vunpack.c.l.s4 1983009808
      %v3708 = vunpack.c.0.s8 %v3707
      %v3709 = vlaneseq
      %v3710 = vshrl.u32 %v3709, 7
      %v3711 = vsub.s32 %v3708, %v3710
      %v3712 = vrot.slane %v3698, %v3711
      %v3713 = vcombine.low %v3705, %v3712
      %v3714 = vcombine.low %v3328, %v3329
      %v3715 = vcombine.low %v3330, %v3331
      %v3717 = vunpack.c.l.s4 1983009808
      %v3718 = vunpack.c.0.s8 %v3717
      %v3719 = vlaneseq
      %v3720 = vshrl.u32 %v3719, 7
      %v3721 = vsub.s32 %v3718, %v3720
      %v3722 = vrot.slane %v3714, %v3721
      %v3724 = vunpack.c.l.s4 1983009808
      %v3725 = vunpack.c.0.s8 %v3724
      %v3726 = vlaneseq
      %v3727 = vshrl.u32 %v3726, 7
      %v3728 = vsub.s32 %v3725, %v3727
      %v3729 = vrot.slane %v3715, %v3728
      %v3730 = vcombine.low %v3722, %v3729
      %v3731 = vcombine.low %v3332, %v3333
      %v3732 = vcombine.low %v3334, %v3335
      %v3734 = vunpack.c.l.s4 1983009808
      %v3735 = vunpack.c.0.s8 %v3734
      %v3736 = vlaneseq
      %v3737 = vshrl.u32 %v3736, 7
      %v3738 = vsub.s32 %v3735, %v3737
      %v3739 = vrot.slane %v3731, %v3738
      %v3741 = vunpack.c.l.s4 1983009808
      %v3742 = vunpack.c.0.s8 %v3741
      %v3743 = vlaneseq
      %v3744 = vshrl.u32 %v3743, 7
      %v3745 = vsub.s32 %v3742, %v3744
      %v3746 = vrot.slane %v3732, %v3745
      %v3747 = vcombine.low %v3739, %v3746
      %v3748 = vcombine.low %v3336, %v3337
      %v3749 = vcombine.low %v3338, %v3339
      %v3751 = vunpack.c.l.s4 1983009808
      %v3752 = vunpack.c.0.s8 %v3751
      %v3753 = vlaneseq
      %v3754 = vshrl.u32 %v3753, 7
      %v3755 = vsub.s32 %v3752, %v3754
      %v3756 = vrot.slane %v3748, %v3755
      %v3758 = vunpack.c.l.s4 1983009808
      %v3759 = vunpack.c.0.s8 %v3758
      %v3760 = vlaneseq
      %v3761 = vshrl.u32 %v3760, 7
      %v3762 = vsub.s32 %v3759, %v3761
      %v3763 = vrot.slane %v3749, %v3762
      %v3764 = vcombine.low %v3756, %v3763
      %v3765 = vcombine.low %v3340, %v3341
      %v3766 = vcombine.low %v3342, %v3343
      %v3768 = vunpack.c.l.s4 1983009808
      %v3769 = vunpack.c.0.s8 %v3768
      %v3770 = vlaneseq
      %v3771 = vshrl.u32 %v3770, 7
      %v3772 = vsub.s32 %v3769, %v3771
      %v3773 = vrot.slane %v3765, %v3772
      %v3775 = vunpack.c.l.s4 1983009808
      %v3776 = vunpack.c.0.s8 %v3775
      %v3777 = vlaneseq
      %v3778 = vshrl.u32 %v3777, 7
      %v3779 = vsub.s32 %v3776, %v3778
      %v3780 = vrot.slane %v3766, %v3779
      %v3781 = vcombine.low %v3773, %v3780
      %v3782 = vcombine.low %v3344, %v3345
      %v3783 = vcombine.low %v3346, %v3347
      %v3785 = vunpack.c.l.s4 1983009808
      %v3786 = vunpack.c.0.s8 %v3785
      %v3787 = vlaneseq
      %v3788 = vshrl.u32 %v3787, 7
      %v3789 = vsub.s32 %v3786, %v3788
      %v3790 = vrot.slane %v3782, %v3789
      %v3792 = vunpack.c.l.s4 1983009808
      %v3793 = vunpack.c.0.s8 %v3792
      %v3794 = vlaneseq
      %v3795 = vshrl.u32 %v3794, 7
      %v3796 = vsub.s32 %v3793, %v3795
      %v3797 = vrot.slane %v3783, %v3796
      %v3798 = vcombine.low %v3790, %v3797
      %v3799 = vcombine.low %v3348, %v3349
      %v3800 = vcombine.low %v3350, %v3351
      %v3802 = vunpack.c.l.s4 1983009808
      %v3803 = vunpack.c.0.s8 %v3802
      %v3804 = vlaneseq
      %v3805 = vshrl.u32 %v3804, 7
      %v3806 = vsub.s32 %v3803, %v3805
      %v3807 = vrot.slane %v3799, %v3806
      %v3809 = vunpack.c.l.s4 1983009808
      %v3810 = vunpack.c.0.s8 %v3809
      %v3811 = vlaneseq
      %v3812 = vshrl.u32 %v3811, 7
      %v3813 = vsub.s32 %v3810, %v3812
      %v3814 = vrot.slane %v3800, %v3813
      %v3815 = vcombine.low %v3807, %v3814
      %v3816 = vcombine.low %v3352, %v3353
      %v3817 = vcombine.low %v3354, %v3355
      %v3819 = vunpack.c.l.s4 1983009808
      %v3820 = vunpack.c.0.s8 %v3819
      %v3821 = vlaneseq
      %v3822 = vshrl.u32 %v3821, 7
      %v3823 = vsub.s32 %v3820, %v3822
      %v3824 = vrot.slane %v3816, %v3823
      %v3826 = vunpack.c.l.s4 1983009808
      %v3827 = vunpack.c.0.s8 %v3826
      %v3828 = vlaneseq
      %v3829 = vshrl.u32 %v3828, 7
      %v3830 = vsub.s32 %v3827, %v3829
      %v3831 = vrot.slane %v3817, %v3830
      %v3832 = vcombine.low %v3824, %v3831
      %v3833 = vcombine.low %v3356, %v3357
      %v3834 = vcombine.low %v3358, %v3359
      %v3836 = vunpack.c.l.s4 1983009808
      %v3837 = vunpack.c.0.s8 %v3836
      %v3838 = vlaneseq
      %v3839 = vshrl.u32 %v3838, 7
      %v3840 = vsub.s32 %v3837, %v3839
      %v3841 = vrot.slane %v3833, %v3840
      %v3843 = vunpack.c.l.s4 1983009808
      %v3844 = vunpack.c.0.s8 %v3843
      %v3845 = vlaneseq
      %v3846 = vshrl.u32 %v3845, 7
      %v3847 = vsub.s32 %v3844, %v3846
      %v3848 = vrot.slane %v3834, %v3847
      %v3849 = vcombine.low %v3841, %v3848
      %v3850 = vcombine.low %v3360, %v3361
      %v3851 = vcombine.low %v3362, %v3363
      %v3853 = vunpack.c.l.s4 1983009808
      %v3854 = vunpack.c.0.s8 %v3853
      %v3855 = vlaneseq
      %v3856 = vshrl.u32 %v3855, 7
      %v3857 = vsub.s32 %v3854, %v3856
      %v3858 = vrot.slane %v3850, %v3857
      %v3860 = vunpack.c.l.s4 1983009808
      %v3861 = vunpack.c.0.s8 %v3860
      %v3862 = vlaneseq
      %v3863 = vshrl.u32 %v3862, 7
      %v3864 = vsub.s32 %v3861, %v3863
      %v3865 = vrot.slane %v3851, %v3864
      %v3866 = vcombine.low %v3858, %v3865
      %v3867 = vcombine.low %v3364, %v3365
      %v3868 = vcombine.low %v3366, %v3367
      %v3870 = vunpack.c.l.s4 1983009808
      %v3871 = vunpack.c.0.s8 %v3870
      %v3872 = vlaneseq
      %v3873 = vshrl.u32 %v3872, 7
      %v3874 = vsub.s32 %v3871, %v3873
      %v3875 = vrot.slane %v3867, %v3874
      %v3877 = vunpack.c.l.s4 1983009808
      %v3878 = vunpack.c.0.s8 %v3877
      %v3879 = vlaneseq
      %v3880 = vshrl.u32 %v3879, 7
      %v3881 = vsub.s32 %v3878, %v3880
      %v3882 = vrot.slane %v3868, %v3881
      %v3883 = vcombine.low %v3875, %v3882
      %v3884 = vcombine.low %v3368, %v3369
      %v3885 = vcombine.low %v3370, %v3371
      %v3887 = vunpack.c.l.s4 1983009808
      %v3888 = vunpack.c.0.s8 %v3887
      %v3889 = vlaneseq
      %v3890 = vshrl.u32 %v3889, 7
      %v3891 = vsub.s32 %v3888, %v3890
      %v3892 = vrot.slane %v3884, %v3891
      %v3894 = vunpack.c.l.s4 1983009808
      %v3895 = vunpack.c.0.s8 %v3894
      %v3896 = vlaneseq
      %v3897 = vshrl.u32 %v3896, 7
      %v3898 = vsub.s32 %v3895, %v3897
      %v3899 = vrot.slane %v3885, %v3898
      %v3900 = vcombine.low %v3892, %v3899
      %v3901 = vcombine.low %v3372, %v3373
      %v3902 = vcombine.low %v3374, %v3375
      %v3904 = vunpack.c.l.s4 1983009808
      %v3905 = vunpack.c.0.s8 %v3904
      %v3906 = vlaneseq
      %v3907 = vshrl.u32 %v3906, 7
      %v3908 = vsub.s32 %v3905, %v3907
      %v3909 = vrot.slane %v3901, %v3908
      %v3911 = vunpack.c.l.s4 1983009808
      %v3912 = vunpack.c.0.s8 %v3911
      %v3913 = vlaneseq
      %v3914 = vshrl.u32 %v3913, 7
      %v3915 = vsub.s32 %v3912, %v3914
      %v3916 = vrot.slane %v3902, %v3915
      %v3917 = vcombine.low %v3909, %v3916
      %v3918 = vcombine.low %v3376, %v3377
      %v3919 = vcombine.low %v3378, %v3379
      %v3921 = vunpack.c.l.s4 1983009808
      %v3922 = vunpack.c.0.s8 %v3921
      %v3923 = vlaneseq
      %v3924 = vshrl.u32 %v3923, 7
      %v3925 = vsub.s32 %v3922, %v3924
      %v3926 = vrot.slane %v3918, %v3925
      %v3928 = vunpack.c.l.s4 1983009808
      %v3929 = vunpack.c.0.s8 %v3928
      %v3930 = vlaneseq
      %v3931 = vshrl.u32 %v3930, 7
      %v3932 = vsub.s32 %v3929, %v3931
      %v3933 = vrot.slane %v3919, %v3932
      %v3934 = vcombine.low %v3926, %v3933
      %v3935 = vcombine.low %v3380, %v3381
      %v3936 = vcombine.low %v3382, %v3383
      %v3938 = vunpack.c.l.s4 1983009808
      %v3939 = vunpack.c.0.s8 %v3938
      %v3940 = vlaneseq
      %v3941 = vshrl.u32 %v3940, 7
      %v3942 = vsub.s32 %v3939, %v3941
      %v3943 = vrot.slane %v3935, %v3942
      %v3945 = vunpack.c.l.s4 1983009808
      %v3946 = vunpack.c.0.s8 %v3945
      %v3947 = vlaneseq
      %v3948 = vshrl.u32 %v3947, 7
      %v3949 = vsub.s32 %v3946, %v3948
      %v3950 = vrot.slane %v3936, %v3949
      %v3951 = vcombine.low %v3943, %v3950
      %v3952 = vcombine.low %v3384, %v3385
      %v3953 = vcombine.low %v3386, %v3387
      %v3955 = vunpack.c.l.s4 1983009808
      %v3956 = vunpack.c.0.s8 %v3955
      %v3957 = vlaneseq
      %v3958 = vshrl.u32 %v3957, 7
      %v3959 = vsub.s32 %v3956, %v3958
      %v3960 = vrot.slane %v3952, %v3959
      %v3962 = vunpack.c.l.s4 1983009808
      %v3963 = vunpack.c.0.s8 %v3962
      %v3964 = vlaneseq
      %v3965 = vshrl.u32 %v3964, 7
      %v3966 = vsub.s32 %v3963, %v3965
      %v3967 = vrot.slane %v3953, %v3966
      %v3968 = vcombine.low %v3960, %v3967
      %v3969 = vcombine.low %v3388, %v3389
      %v3970 = vcombine.low %v3390, %v3391
      %v3972 = vunpack.c.l.s4 1983009808
      %v3973 = vunpack.c.0.s8 %v3972
      %v3974 = vlaneseq
      %v3975 = vshrl.u32 %v3974, 7
      %v3976 = vsub.s32 %v3973, %v3975
      %v3977 = vrot.slane %v3969, %v3976
      %v3979 = vunpack.c.l.s4 1983009808
      %v3980 = vunpack.c.0.s8 %v3979
      %v3981 = vlaneseq
      %v3982 = vshrl.u32 %v3981, 7
      %v3983 = vsub.s32 %v3980, %v3982
      %v3984 = vrot.slane %v3970, %v3983
      %v3985 = vcombine.low %v3977, %v3984
      %v3986 = vcombine.low %v3392, %v3393
      %v3987 = vcombine.low %v3394, %v3395
      %v3989 = vunpack.c.l.s4 1983009808
      %v3990 = vunpack.c.0.s8 %v3989
      %v3991 = vlaneseq
      %v3992 = vshrl.u32 %v3991, 7
      %v3993 = vsub.s32 %v3990, %v3992
      %v3994 = vrot.slane %v3986, %v3993
      %v3996 = vunpack.c.l.s4 1983009808
      %v3997 = vunpack.c.0.s8 %v3996
      %v3998 = vlaneseq
      %v3999 = vshrl.u32 %v3998, 7
      %v4000 = vsub.s32 %v3997, %v3999
      %v4001 = vrot.slane %v3987, %v4000
      %v4002 = vcombine.low %v3994, %v4001
      %v4003 = vcombine.low %v3396, %v3397
      %v4004 = vcombine.low %v3398, %v3399
      %v4006 = vunpack.c.l.s4 1983009808
      %v4007 = vunpack.c.0.s8 %v4006
      %v4008 = vlaneseq
      %v4009 = vshrl.u32 %v4008, 7
      %v4010 = vsub.s32 %v4007, %v4009
      %v4011 = vrot.slane %v4003, %v4010
      %v4013 = vunpack.c.l.s4 1983009808
      %v4014 = vunpack.c.0.s8 %v4013
      %v4015 = vlaneseq
      %v4016 = vshrl.u32 %v4015, 7
      %v4017 = vsub.s32 %v4014, %v4016
      %v4018 = vrot.slane %v4004, %v4017
      %v4019 = vcombine.low %v4011, %v4018
      %v4020 = vcombine.low %v3400, %v3401
      %v4021 = vcombine.low %v3402, %v3403
      %v4023 = vunpack.c.l.s4 1983009808
      %v4024 = vunpack.c.0.s8 %v4023
      %v4025 = vlaneseq
      %v4026 = vshrl.u32 %v4025, 7
      %v4027 = vsub.s32 %v4024, %v4026
      %v4028 = vrot.slane %v4020, %v4027
      %v4030 = vunpack.c.l.s4 1983009808
      %v4031 = vunpack.c.0.s8 %v4030
      %v4032 = vlaneseq
      %v4033 = vshrl.u32 %v4032, 7
      %v4034 = vsub.s32 %v4031, %v4033
      %v4035 = vrot.slane %v4021, %v4034
      %v4036 = vcombine.low %v4028, %v4035
      %v4037 = vcombine.low %v3404, %v3405
      %v4038 = vcombine.low %v3406, %v3407
      %v4040 = vunpack.c.l.s4 1983009808
      %v4041 = vunpack.c.0.s8 %v4040
      %v4042 = vlaneseq
      %v4043 = vshrl.u32 %v4042, 7
      %v4044 = vsub.s32 %v4041, %v4043
      %v4045 = vrot.slane %v4037, %v4044
      %v4047 = vunpack.c.l.s4 1983009808
      %v4048 = vunpack.c.0.s8 %v4047
      %v4049 = vlaneseq
      %v4050 = vshrl.u32 %v4049, 7
      %v4051 = vsub.s32 %v4048, %v4050
      %v4052 = vrot.slane %v4038, %v4051
      %v4053 = vcombine.low %v4045, %v4052
      %v4054 = vcombine.low %v3408, %v3409
      %v4055 = vcombine.low %v3410, %v3411
      %v4057 = vunpack.c.l.s4 1983009808
      %v4058 = vunpack.c.0.s8 %v4057
      %v4059 = vlaneseq
      %v4060 = vshrl.u32 %v4059, 7
      %v4061 = vsub.s32 %v4058, %v4060
      %v4062 = vrot.slane %v4054, %v4061
      %v4064 = vunpack.c.l.s4 1983009808
      %v4065 = vunpack.c.0.s8 %v4064
      %v4066 = vlaneseq
      %v4067 = vshrl.u32 %v4066, 7
      %v4068 = vsub.s32 %v4065, %v4067
      %v4069 = vrot.slane %v4055, %v4068
      %v4070 = vcombine.low %v4062, %v4069
      %v4071 = vcombine.low %v3412, %v3413
      %v4072 = vcombine.low %v3414, %v3415
      %v4074 = vunpack.c.l.s4 1983009808
      %v4075 = vunpack.c.0.s8 %v4074
      %v4076 = vlaneseq
      %v4077 = vshrl.u32 %v4076, 7
      %v4078 = vsub.s32 %v4075, %v4077
      %v4079 = vrot.slane %v4071, %v4078
      %v4081 = vunpack.c.l.s4 1983009808
      %v4082 = vunpack.c.0.s8 %v4081
      %v4083 = vlaneseq
      %v4084 = vshrl.u32 %v4083, 7
      %v4085 = vsub.s32 %v4082, %v4084
      %v4086 = vrot.slane %v4072, %v4085
      %v4087 = vcombine.low %v4079, %v4086
      %v4120 = vpack.c.bf16 %v3577, %v3560
      %v4121 = vpack.c.bf16 %v3611, %v3594
      %v4122 = vpack.c.bf16 %v3645, %v3628
      %v4123 = vpack.c.bf16 %v3679, %v3662
      %v4124 = vpack.c.bf16 %v3713, %v3696
      %v4125 = vpack.c.bf16 %v3747, %v3730
      %v4126 = vpack.c.bf16 %v3781, %v3764
      %v4127 = vpack.c.bf16 %v3815, %v3798
      %v4128 = vpack.c.bf16 %v3849, %v3832
      %v4129 = vpack.c.bf16 %v3883, %v3866
      %v4130 = vpack.c.bf16 %v3917, %v3900
      %v4131 = vpack.c.bf16 %v3951, %v3934
      %v4132 = vpack.c.bf16 %v3985, %v3968
      %v4133 = vpack.c.bf16 %v4019, %v4002
      %v4134 = vpack.c.bf16 %v4053, %v4036
      %v4135 = vpack.c.bf16 %v4087, %v4070
      %v4136 = vld [vmem:[%s7] sm:$0xf]
      %v4137 = vld [vmem:[%s7 + $0x4] sm:$0xf]
      %v4138 = vld [vmem:[%s7 + $0x8] sm:$0xf]
      %v4139 = vld [vmem:[%s7 + $0xc] sm:$0xf]
      %v4140 = vld [vmem:[%s8] sm:$0x1]
      %v4142 = vlaneseq
      %v4143 = vshrl.u32 %v4142, 7
      %v4144 = vsub.s32 0, %v4143
      %v4145 = vrot.slane %v4140, %v4144
      %v4151 = vunpack.c.l.b16 %v4136
      %v4152 = vunpack.c.l.b16 %v4137
      %v4153 = vunpack.c.l.b16 %v4138
      %v4154 = vunpack.c.l.b16 %v4139
      %v4155 = vpack.c.b16 %v4152, %v4151
      %v4156 = vpack.c.b16 %v4154, %v4153
      %vm4159 = vcmask 261120
      %v4161 = vsel %vm4159, %v4120, 0
      %v4164 = vsel %vm4159, %v4121, 0
      %v4167 = vsel %vm4159, %v4122, 0
      %v4170 = vsel %vm4159, %v4123, 0
      %v4173 = vsel %vm4159, %v4124, 0
      %v4176 = vsel %vm4159, %v4125, 0
      %v4179 = vsel %vm4159, %v4126, 0
      %v4182 = vsel %vm4159, %v4127, 0
      %v4185 = vsel %vm4159, %v4128, 0
      %v4188 = vsel %vm4159, %v4129, 0
      %v4191 = vsel %vm4159, %v4130, 0
      %v4194 = vsel %vm4159, %v4131, 0
      %v4197 = vsel %vm4159, %v4132, 0
      %v4200 = vsel %vm4159, %v4133, 0
      %v4203 = vsel %vm4159, %v4134, 0
      %v4206 = vsel %vm4159, %v4135, 0
      %4208 = vmatprep.subr.bf16.mxu0 0
      %4209 = vmatpush1.bf16.msra.mxu0 %v4155
      %4210 = vmatprep.subr.bf16.mxu0 0
      %4211 = vmatpush1.bf16.msra.mxu0 %v4156
      %4212 = vmatprep.subr.bf16.mxu0 0
      %4213 = vmatpush1.bf16.msra.mxu0 0
      %4214 = vmatprep.subr.bf16.mxu0 0
      %4215 = vmatpush1.bf16.msra.mxu0 0
      %4216 = vmatprep.subr.bf16.mxu0 0
      %4217 = vmatpush1.bf16.msra.mxu0 0
      %4218 = vmatprep.subr.bf16.mxu0 0
      %4219 = vmatpush1.bf16.msra.mxu0 0
      %4220 = vmatprep.subr.bf16.mxu0 0
      %4221 = vmatpush1.bf16.msra.mxu0 0
      %4222 = vmatprep.subr.bf16.mxu0 0
      %4223 = vmatpush1.bf16.msra.mxu0 0
      %4224 = vmatprep.subr.bf16.mxu0 0
      %4225 = vmatpush1.bf16.msra.mxu0 0
      %4226 = vmatprep.subr.bf16.mxu0 0
      %4227 = vmatpush1.bf16.msra.mxu0 0
      %4228 = vmatprep.subr.bf16.mxu0 0
      %4229 = vmatpush1.bf16.msra.mxu0 0
      %4230 = vmatprep.subr.bf16.mxu0 0
      %4231 = vmatpush1.bf16.msra.mxu0 0
      %4232 = vmatprep.subr.bf16.mxu0 0
      %4233 = vmatpush1.bf16.msra.mxu0 0
      %4234 = vmatprep.subr.bf16.mxu0 0
      %4235 = vmatpush1.bf16.msra.mxu0 0
      %4236 = vmatprep.subr.bf16.mxu0 0
      %4237 = vmatpush1.bf16.msra.mxu0 0
      %4238 = vmatprep.subr.bf16.mxu0 0
      %4239 = vmatpush1.bf16.msra.mxu0 0
      %4240 = vmatprep.mubr.bf16.mxu0 0
      %4241 = vmatmul.mubr.bf16.gmra.mrb[0].mxu0 %v4161
      %v4242 = vpop.f32.mrb[0].mxu0
      %v4243 = vadd.f32 %v4145, %v4242
      %v4244 = vpop.f32.mrb[0].mxu0
      %v4245 = vpop.f32.mrb[0].mxu0
      %v4246 = vadd.f32 %v4145, %v4245
      %v4247 = vpop.f32.mrb[0].mxu0
      %4248 = vmatprep.mubr.bf16.mxu0 0
      %4249 = vmatmul.mubr.bf16.gmra.mrb[0].mxu0 %v4164
      %v4250 = vpop.f32.mrb[0].mxu0
      %v4251 = vadd.f32 %v4145, %v4250
      %v4252 = vpop.f32.mrb[0].mxu0
      %v4253 = vpop.f32.mrb[0].mxu0
      %v4254 = vadd.f32 %v4145, %v4253
      %v4255 = vpop.f32.mrb[0].mxu0
      %4256 = vmatprep.mubr.bf16.mxu0 0
      %4257 = vmatmul.mubr.bf16.gmra.mrb[0].mxu0 %v4167
      %v4258 = vpop.f32.mrb[0].mxu0
      %v4259 = vadd.f32 %v4145, %v4258
      %v4260 = vpop.f32.mrb[0].mxu0
      %v4261 = vpop.f32.mrb[0].mxu0
      %v4262 = vadd.f32 %v4145, %v4261
      %v4263 = vpop.f32.mrb[0].mxu0
      %4264 = vmatprep.mubr.bf16.mxu0 0
      %4265 = vmatmul.mubr.bf16.gmra.mrb[0].mxu0 %v4170
      %v4266 = vpop.f32.mrb[0].mxu0
      %v4267 = vadd.f32 %v4145, %v4266
      %v4268 = vpop.f32.mrb[0].mxu0
      %v4269 = vpop.f32.mrb[0].mxu0
      %v4270 = vadd.f32 %v4145, %v4269
      %v4271 = vpop.f32.mrb[0].mxu0
      %4272 = vmatprep.mubr.bf16.mxu0 0
      %4273 = vmatmul.mubr.bf16.gmra.mrb[0].mxu0 %v4173
      %v4274 = vpop.f32.mrb[0].mxu0
      %v4275 = vadd.f32 %v4145, %v4274
      %v4276 = vpop.f32.mrb[0].mxu0
      %v4277 = vpop.f32.mrb[0].mxu0
      %v4278 = vadd.f32 %v4145, %v4277
      %v4279 = vpop.f32.mrb[0].mxu0
      %4280 = vmatprep.mubr.bf16.mxu0 0
      %4281 = vmatmul.mubr.bf16.gmra.mrb[0].mxu0 %v4176
      %v4282 = vpop.f32.mrb[0].mxu0
      %v4283 = vadd.f32 %v4145, %v4282
      %v4284 = vpop.f32.mrb[0].mxu0
      %v4285 = vpop.f32.mrb[0].mxu0
      %v4286 = vadd.f32 %v4145, %v4285
      %v4287 = vpop.f32.mrb[0].mxu0
      %4288 = vmatprep.mubr.bf16.mxu0 0
      %4289 = vmatmul.mubr.bf16.gmra.mrb[0].mxu0 %v4179
      %v4290 = vpop.f32.mrb[0].mxu0
      %v4291 = vadd.f32 %v4145, %v4290
      %v4292 = vpop.f32.mrb[0].mxu0
      %v4293 = vpop.f32.mrb[0].mxu0
      %v4294 = vadd.f32 %v4145, %v4293
      %v4295 = vpop.f32.mrb[0].mxu0
      %4296 = vmatprep.mubr.bf16.mxu0 0
      %4297 = vmatmul.mubr.bf16.gmra.mrb[0].mxu0 %v4182
      %v4298 = vpop.f32.mrb[0].mxu0
      %v4299 = vadd.f32 %v4145, %v4298
      %v4300 = vpop.f32.mrb[0].mxu0
      %v4301 = vpop.f32.mrb[0].mxu0
      %v4302 = vadd.f32 %v4145, %v4301
      %v4303 = vpop.f32.mrb[0].mxu0
      %4304 = vmatprep.mubr.bf16.mxu0 0
      %4305 = vmatmul.mubr.bf16.gmra.mrb[0].mxu0 %v4185
      %v4306 = vpop.f32.mrb[0].mxu0
      %v4307 = vadd.f32 %v4145, %v4306
      %v4308 = vpop.f32.mrb[0].mxu0
      %v4309 = vpop.f32.mrb[0].mxu0
      %v4310 = vadd.f32 %v4145, %v4309
      %v4311 = vpop.f32.mrb[0].mxu0
      %4312 = vmatprep.mubr.bf16.mxu0 0
      %4313 = vmatmul.mubr.bf16.gmra.mrb[0].mxu0 %v4188
      %v4314 = vpop.f32.mrb[0].mxu0
      %v4315 = vadd.f32 %v4145, %v4314
      %v4316 = vpop.f32.mrb[0].mxu0
      %v4317 = vpop.f32.mrb[0].mxu0
      %v4318 = vadd.f32 %v4145, %v4317
      %v4319 = vpop.f32.mrb[0].mxu0
      %4320 = vmatprep.mubr.bf16.mxu0 0
      %4321 = vmatmul.mubr.bf16.gmra.mrb[0].mxu0 %v4191
      %v4322 = vpop.f32.mrb[0].mxu0
      %v4323 = vadd.f32 %v4145, %v4322
      %v4324 = vpop.f32.mrb[0].mxu0
      %v4325 = vpop.f32.mrb[0].mxu0
      %v4326 = vadd.f32 %v4145, %v4325
      %v4327 = vpop.f32.mrb[0].mxu0
      %4328 = vmatprep.mubr.bf16.mxu0 0
      %4329 = vmatmul.mubr.bf16.gmra.mrb[0].mxu0 %v4194
      %v4330 = vpop.f32.mrb[0].mxu0
      %v4331 = vadd.f32 %v4145, %v4330
      %v4332 = vpop.f32.mrb[0].mxu0
      %v4333 = vpop.f32.mrb[0].mxu0
      %v4334 = vadd.f32 %v4145, %v4333
      %v4335 = vpop.f32.mrb[0].mxu0
      %4336 = vmatprep.mubr.bf16.mxu0 0
      %4337 = vmatmul.mubr.bf16.gmra.mrb[0].mxu0 %v4197
      %v4338 = vpop.f32.mrb[0].mxu0
      %v4339 = vadd.f32 %v4145, %v4338
      %v4340 = vpop.f32.mrb[0].mxu0
      %v4341 = vpop.f32.mrb[0].mxu0
      %v4342 = vadd.f32 %v4145, %v4341
      %v4343 = vpop.f32.mrb[0].mxu0
      %4344 = vmatprep.mubr.bf16.mxu0 0
      %4345 = vmatmul.mubr.bf16.gmra.mrb[0].mxu0 %v4200
      %v4346 = vpop.f32.mrb[0].mxu0
      %v4347 = vadd.f32 %v4145, %v4346
      %v4348 = vpop.f32.mrb[0].mxu0
      %v4349 = vpop.f32.mrb[0].mxu0
      %v4350 = vadd.f32 %v4145, %v4349
      %v4351 = vpop.f32.mrb[0].mxu0
      %4352 = vmatprep.mubr.bf16.mxu0 0
      %4353 = vmatmul.mubr.bf16.gmra.mrb[0].mxu0 %v4203
      %v4354 = vpop.f32.mrb[0].mxu0
      %v4355 = vadd.f32 %v4145, %v4354
      %v4356 = vpop.f32.mrb[0].mxu0
      %v4357 = vpop.f32.mrb[0].mxu0
      %v4358 = vadd.f32 %v4145, %v4357
      %v4359 = vpop.f32.mrb[0].mxu0
      %4360 = vmatprep.mubr.bf16.mxu0 0
      %4361 = vmatmul.mubr.bf16.gmra.mrb[0].mxu0 %v4206
      %v4362 = vpop.f32.mrb[0].mxu0
      %v4363 = vadd.f32 %v4145, %v4362
      %v4364 = vpop.f32.mrb[0].mxu0
      %v4365 = vpop.f32.mrb[0].mxu0
      %v4366 = vadd.f32 %v4145, %v4365
      %v4367 = vpop.f32.mrb[0].mxu0
      %4368 = vdwg.mxu0
      %v4369 = vxor.u32 %v4243, 2147483648
      %v4370 = vxor.u32 %v4246, 2147483648
      %v4371 = vxor.u32 %v4251, 2147483648
      %v4372 = vxor.u32 %v4254, 2147483648
      %v4373 = vxor.u32 %v4259, 2147483648
      %v4374 = vxor.u32 %v4262, 2147483648
      %v4375 = vxor.u32 %v4267, 2147483648
      %v4376 = vxor.u32 %v4270, 2147483648
      %v4377 = vxor.u32 %v4275, 2147483648
      %v4378 = vxor.u32 %v4278, 2147483648
      %v4379 = vxor.u32 %v4283, 2147483648
      %v4380 = vxor.u32 %v4286, 2147483648
      %v4381 = vxor.u32 %v4291, 2147483648
      %v4382 = vxor.u32 %v4294, 2147483648
      %v4383 = vxor.u32 %v4299, 2147483648
      %v4384 = vxor.u32 %v4302, 2147483648
      %v4385 = vxor.u32 %v4307, 2147483648
      %v4386 = vxor.u32 %v4310, 2147483648
      %v4387 = vxor.u32 %v4315, 2147483648
      %v4388 = vxor.u32 %v4318, 2147483648
      %v4389 = vxor.u32 %v4323, 2147483648
      %v4390 = vxor.u32 %v4326, 2147483648
      %v4391 = vxor.u32 %v4331, 2147483648
      %v4392 = vxor.u32 %v4334, 2147483648
      %v4393 = vxor.u32 %v4339, 2147483648
      %v4394 = vxor.u32 %v4342, 2147483648
      %v4395 = vxor.u32 %v4347, 2147483648
      %v4396 = vxor.u32 %v4350, 2147483648
      %v4397 = vxor.u32 %v4355, 2147483648
      %v4398 = vxor.u32 %v4358, 2147483648
      %v4399 = vxor.u32 %v4363, 2147483648
      %v4400 = vxor.u32 %v4366, 2147483648
      %v4401 = vmul.f32 %v4369, 1.442695
      %v4402 = vpow.pop %v4401
      %v4403 = vmul.f32 %v4370, 1.442695
      %v4404 = vpow.pop %v4403
      %v4405 = vmul.f32 %v4371, 1.442695
      %v4406 = vpow.pop %v4405
      %v4407 = vmul.f32 %v4372, 1.442695
      %v4408 = vpow.pop %v4407
      %v4409 = vmul.f32 %v4373, 1.442695
      %v4410 = vpow.pop %v4409
      %v4411 = vmul.f32 %v4374, 1.442695
      %v4412 = vpow.pop %v4411
      %v4413 = vmul.f32 %v4375, 1.442695
      %v4414 = vpow.pop %v4413
      %v4415 = vmul.f32 %v4376, 1.442695
      %v4416 = vpow.pop %v4415
      %v4417 = vmul.f32 %v4377, 1.442695
      %v4418 = vpow.pop %v4417
      %v4419 = vmul.f32 %v4378, 1.442695
      %v4420 = vpow.pop %v4419
      %v4421 = vmul.f32 %v4379, 1.442695
      %v4422 = vpow.pop %v4421
      %v4423 = vmul.f32 %v4380, 1.442695
      %v4424 = vpow.pop %v4423
      %v4425 = vmul.f32 %v4381, 1.442695
      %v4426 = vpow.pop %v4425
      %v4427 = vmul.f32 %v4382, 1.442695
      %v4428 = vpow.pop %v4427
      %v4429 = vmul.f32 %v4383, 1.442695
      %v4430 = vpow.pop %v4429
      %v4431 = vmul.f32 %v4384, 1.442695
      %v4432 = vpow.pop %v4431
      %v4433 = vmul.f32 %v4385, 1.442695
      %v4434 = vpow.pop %v4433
      %v4435 = vmul.f32 %v4386, 1.442695
      %v4436 = vpow.pop %v4435
      %v4437 = vmul.f32 %v4387, 1.442695
      %v4438 = vpow.pop %v4437
      %v4439 = vmul.f32 %v4388, 1.442695
      %v4440 = vpow.pop %v4439
      %v4441 = vmul.f32 %v4389, 1.442695
      %v4442 = vpow.pop %v4441
      %v4443 = vmul.f32 %v4390, 1.442695
      %v4444 = vpow.pop %v4443
      %v4445 = vmul.f32 %v4391, 1.442695
      %v4446 = vpow.pop %v4445
      %v4447 = vmul.f32 %v4392, 1.442695
      %v4448 = vpow.pop %v4447
      %v4449 = vmul.f32 %v4393, 1.442695
      %v4450 = vpow.pop %v4449
      %v4451 = vmul.f32 %v4394, 1.442695
      %v4452 = vpow.pop %v4451
      %v4453 = vmul.f32 %v4395, 1.442695
      %v4454 = vpow.pop %v4453
      %v4455 = vmul.f32 %v4396, 1.442695
      %v4456 = vpow.pop %v4455
      %v4457 = vmul.f32 %v4397, 1.442695
      %v4458 = vpow.pop %v4457
      %v4459 = vmul.f32 %v4398, 1.442695
      %v4460 = vpow.pop %v4459
      %v4461 = vmul.f32 %v4399, 1.442695
      %v4462 = vpow.pop %v4461
      %v4463 = vmul.f32 %v4400, 1.442695
      %v4464 = vpow.pop %v4463
      %v4465 = vadd.f32 %v4402, 1.0
      %v4466 = vadd.f32 %v4404, 1.0
      %v4467 = vadd.f32 %v4406, 1.0
      %v4468 = vadd.f32 %v4408, 1.0
      %v4469 = vadd.f32 %v4410, 1.0
      %v4470 = vadd.f32 %v4412, 1.0
      %v4471 = vadd.f32 %v4414, 1.0
      %v4472 = vadd.f32 %v4416, 1.0
      %v4473 = vadd.f32 %v4418, 1.0
      %v4474 = vadd.f32 %v4420, 1.0
      %v4475 = vadd.f32 %v4422, 1.0
      %v4476 = vadd.f32 %v4424, 1.0
      %v4477 = vadd.f32 %v4426, 1.0
      %v4478 = vadd.f32 %v4428, 1.0
      %v4479 = vadd.f32 %v4430, 1.0
      %v4480 = vadd.f32 %v4432, 1.0
      %v4481 = vadd.f32 %v4434, 1.0
      %v4482 = vadd.f32 %v4436, 1.0
      %v4483 = vadd.f32 %v4438, 1.0
      %v4484 = vadd.f32 %v4440, 1.0
      %v4485 = vadd.f32 %v4442, 1.0
      %v4486 = vadd.f32 %v4444, 1.0
      %v4487 = vadd.f32 %v4446, 1.0
      %v4488 = vadd.f32 %v4448, 1.0
      %v4489 = vadd.f32 %v4450, 1.0
      %v4490 = vadd.f32 %v4452, 1.0
      %v4491 = vadd.f32 %v4454, 1.0
      %v4492 = vadd.f32 %v4456, 1.0
      %v4493 = vadd.f32 %v4458, 1.0
      %v4494 = vadd.f32 %v4460, 1.0
      %v4495 = vadd.f32 %v4462, 1.0
      %v4496 = vadd.f32 %v4464, 1.0
      %v4497 = vrcp.pop %v4465
      %v4498 = vmul.f32 1.0, %v4497
      %v4499 = vrcp.pop %v4466
      %v4500 = vmul.f32 1.0, %v4499
      %v4501 = vrcp.pop %v4467
      %v4502 = vmul.f32 1.0, %v4501
      %v4503 = vrcp.pop %v4468
      %v4504 = vmul.f32 1.0, %v4503
      %v4505 = vrcp.pop %v4469
      %v4506 = vmul.f32 1.0, %v4505
      %v4507 = vrcp.pop %v4470
      %v4508 = vmul.f32 1.0, %v4507
      %v4509 = vrcp.pop %v4471
      %v4510 = vmul.f32 1.0, %v4509
      %v4511 = vrcp.pop %v4472
      %v4512 = vmul.f32 1.0, %v4511
      %v4513 = vrcp.pop %v4473
      %v4514 = vmul.f32 1.0, %v4513
      %v4515 = vrcp.pop %v4474
      %v4516 = vmul.f32 1.0, %v4515
      %v4517 = vrcp.pop %v4475
      %v4518 = vmul.f32 1.0, %v4517
      %v4519 = vrcp.pop %v4476
      %v4520 = vmul.f32 1.0, %v4519
      %v4521 = vrcp.pop %v4477
      %v4522 = vmul.f32 1.0, %v4521
      %v4523 = vrcp.pop %v4478
      %v4524 = vmul.f32 1.0, %v4523
      %v4525 = vrcp.pop %v4479
      %v4526 = vmul.f32 1.0, %v4525
      %v4527 = vrcp.pop %v4480
      %v4528 = vmul.f32 1.0, %v4527
      %v4529 = vrcp.pop %v4481
      %v4530 = vmul.f32 1.0, %v4529
      %v4531 = vrcp.pop %v4482
      %v4532 = vmul.f32 1.0, %v4531
      %v4533 = vrcp.pop %v4483
      %v4534 = vmul.f32 1.0, %v4533
      %v4535 = vrcp.pop %v4484
      %v4536 = vmul.f32 1.0, %v4535
      %v4537 = vrcp.pop %v4485
      %v4538 = vmul.f32 1.0, %v4537
      %v4539 = vrcp.pop %v4486
      %v4540 = vmul.f32 1.0, %v4539
      %v4541 = vrcp.pop %v4487
      %v4542 = vmul.f32 1.0, %v4541
      %v4543 = vrcp.pop %v4488
      %v4544 = vmul.f32 1.0, %v4543
      %v4545 = vrcp.pop %v4489
      %v4546 = vmul.f32 1.0, %v4545
      %v4547 = vrcp.pop %v4490
      %v4548 = vmul.f32 1.0, %v4547
      %v4549 = vrcp.pop %v4491
      %v4550 = vmul.f32 1.0, %v4549
      %v4551 = vrcp.pop %v4492
      %v4552 = vmul.f32 1.0, %v4551
      %v4553 = vrcp.pop %v4493
      %v4554 = vmul.f32 1.0, %v4553
      %v4555 = vrcp.pop %v4494
      %v4556 = vmul.f32 1.0, %v4555
      %v4557 = vrcp.pop %v4495
      %v4558 = vmul.f32 1.0, %v4557
      %v4559 = vrcp.pop %v4496
      %v4560 = vmul.f32 1.0, %v4559
      %v4593 = vcombine.high %v4498, %v4498
      %v4595 = vunpack.c.l.s4 1983009808
      %v4596 = vunpack.c.0.s8 %v4595
      %v4597 = vlaneseq
      %v4598 = vshrl.u32 %v4597, 7
      %v4599 = vsub.s32 %v4596, %v4598
      %v4600 = vrot.slane %v4498, %v4599
      %v4602 = vunpack.c.l.s4 1983009808
      %v4603 = vunpack.c.0.s8 %v4602
      %v4604 = vlaneseq
      %v4605 = vshrl.u32 %v4604, 7
      %v4606 = vsub.s32 %v4603, %v4605
      %v4607 = vrot.slane %v4593, %v4606
      %v4608 = vcombine.high %v4600, %v4600
      %v4609 = vcombine.high %v4607, %v4607
      %v4610 = vcombine.high %v4500, %v4500
      %v4612 = vunpack.c.l.s4 1983009808
      %v4613 = vunpack.c.0.s8 %v4612
      %v4614 = vlaneseq
      %v4615 = vshrl.u32 %v4614, 7
      %v4616 = vsub.s32 %v4613, %v4615
      %v4617 = vrot.slane %v4500, %v4616
      %v4619 = vunpack.c.l.s4 1983009808
      %v4620 = vunpack.c.0.s8 %v4619
      %v4621 = vlaneseq
      %v4622 = vshrl.u32 %v4621, 7
      %v4623 = vsub.s32 %v4620, %v4622
      %v4624 = vrot.slane %v4610, %v4623
      %v4625 = vcombine.high %v4617, %v4617
      %v4626 = vcombine.high %v4624, %v4624
      %v4627 = vcombine.high %v4502, %v4502
      %v4629 = vunpack.c.l.s4 1983009808
      %v4630 = vunpack.c.0.s8 %v4629
      %v4631 = vlaneseq
      %v4632 = vshrl.u32 %v4631, 7
      %v4633 = vsub.s32 %v4630, %v4632
      %v4634 = vrot.slane %v4502, %v4633
      %v4636 = vunpack.c.l.s4 1983009808
      %v4637 = vunpack.c.0.s8 %v4636
      %v4638 = vlaneseq
      %v4639 = vshrl.u32 %v4638, 7
      %v4640 = vsub.s32 %v4637, %v4639
      %v4641 = vrot.slane %v4627, %v4640
      %v4642 = vcombine.high %v4634, %v4634
      %v4643 = vcombine.high %v4641, %v4641
      %v4644 = vcombine.high %v4504, %v4504
      %v4646 = vunpack.c.l.s4 1983009808
      %v4647 = vunpack.c.0.s8 %v4646
      %v4648 = vlaneseq
      %v4649 = vshrl.u32 %v4648, 7
      %v4650 = vsub.s32 %v4647, %v4649
      %v4651 = vrot.slane %v4504, %v4650
      %v4653 = vunpack.c.l.s4 1983009808
      %v4654 = vunpack.c.0.s8 %v4653
      %v4655 = vlaneseq
      %v4656 = vshrl.u32 %v4655, 7
      %v4657 = vsub.s32 %v4654, %v4656
      %v4658 = vrot.slane %v4644, %v4657
      %v4659 = vcombine.high %v4651, %v4651
      %v4660 = vcombine.high %v4658, %v4658
      %v4661 = vcombine.high %v4506, %v4506
      %v4663 = vunpack.c.l.s4 1983009808
      %v4664 = vunpack.c.0.s8 %v4663
      %v4665 = vlaneseq
      %v4666 = vshrl.u32 %v4665, 7
      %v4667 = vsub.s32 %v4664, %v4666
      %v4668 = vrot.slane %v4506, %v4667
      %v4670 = vunpack.c.l.s4 1983009808
      %v4671 = vunpack.c.0.s8 %v4670
      %v4672 = vlaneseq
      %v4673 = vshrl.u32 %v4672, 7
      %v4674 = vsub.s32 %v4671, %v4673
      %v4675 = vrot.slane %v4661, %v4674
      %v4676 = vcombine.high %v4668, %v4668
      %v4677 = vcombine.high %v4675, %v4675
      %v4678 = vcombine.high %v4508, %v4508
      %v4680 = vunpack.c.l.s4 1983009808
      %v4681 = vunpack.c.0.s8 %v4680
      %v4682 = vlaneseq
      %v4683 = vshrl.u32 %v4682, 7
      %v4684 = vsub.s32 %v4681, %v4683
      %v4685 = vrot.slane %v4508, %v4684
      %v4687 = vunpack.c.l.s4 1983009808
      %v4688 = vunpack.c.0.s8 %v4687
      %v4689 = vlaneseq
      %v4690 = vshrl.u32 %v4689, 7
      %v4691 = vsub.s32 %v4688, %v4690
      %v4692 = vrot.slane %v4678, %v4691
      %v4693 = vcombine.high %v4685, %v4685
      %v4694 = vcombine.high %v4692, %v4692
      %v4695 = vcombine.high %v4510, %v4510
      %v4697 = vunpack.c.l.s4 1983009808
      %v4698 = vunpack.c.0.s8 %v4697
      %v4699 = vlaneseq
      %v4700 = vshrl.u32 %v4699, 7
      %v4701 = vsub.s32 %v4698, %v4700
      %v4702 = vrot.slane %v4510, %v4701
      %v4704 = vunpack.c.l.s4 1983009808
      %v4705 = vunpack.c.0.s8 %v4704
      %v4706 = vlaneseq
      %v4707 = vshrl.u32 %v4706, 7
      %v4708 = vsub.s32 %v4705, %v4707
      %v4709 = vrot.slane %v4695, %v4708
      %v4710 = vcombine.high %v4702, %v4702
      %v4711 = vcombine.high %v4709, %v4709
      %v4712 = vcombine.high %v4512, %v4512
      %v4714 = vunpack.c.l.s4 1983009808
      %v4715 = vunpack.c.0.s8 %v4714
      %v4716 = vlaneseq
      %v4717 = vshrl.u32 %v4716, 7
      %v4718 = vsub.s32 %v4715, %v4717
      %v4719 = vrot.slane %v4512, %v4718
      %v4721 = vunpack.c.l.s4 1983009808
      %v4722 = vunpack.c.0.s8 %v4721
      %v4723 = vlaneseq
      %v4724 = vshrl.u32 %v4723, 7
      %v4725 = vsub.s32 %v4722, %v4724
      %v4726 = vrot.slane %v4712, %v4725
      %v4727 = vcombine.high %v4719, %v4719
      %v4728 = vcombine.high %v4726, %v4726
      %v4729 = vcombine.high %v4514, %v4514
      %v4731 = vunpack.c.l.s4 1983009808
      %v4732 = vunpack.c.0.s8 %v4731
      %v4733 = vlaneseq
      %v4734 = vshrl.u32 %v4733, 7
      %v4735 = vsub.s32 %v4732, %v4734
      %v4736 = vrot.slane %v4514, %v4735
      %v4738 = vunpack.c.l.s4 1983009808
      %v4739 = vunpack.c.0.s8 %v4738
      %v4740 = vlaneseq
      %v4741 = vshrl.u32 %v4740, 7
      %v4742 = vsub.s32 %v4739, %v4741
      %v4743 = vrot.slane %v4729, %v4742
      %v4744 = vcombine.high %v4736, %v4736
      %v4745 = vcombine.high %v4743, %v4743
      %v4746 = vcombine.high %v4516, %v4516
      %v4748 = vunpack.c.l.s4 1983009808
      %v4749 = vunpack.c.0.s8 %v4748
      %v4750 = vlaneseq
      %v4751 = vshrl.u32 %v4750, 7
      %v4752 = vsub.s32 %v4749, %v4751
      %v4753 = vrot.slane %v4516, %v4752
      %v4755 = vunpack.c.l.s4 1983009808
      %v4756 = vunpack.c.0.s8 %v4755
      %v4757 = vlaneseq
      %v4758 = vshrl.u32 %v4757, 7
      %v4759 = vsub.s32 %v4756, %v4758
      %v4760 = vrot.slane %v4746, %v4759
      %v4761 = vcombine.high %v4753, %v4753
      %v4762 = vcombine.high %v4760, %v4760
      %v4763 = vcombine.high %v4518, %v4518
      %v4765 = vunpack.c.l.s4 1983009808
      %v4766 = vunpack.c.0.s8 %v4765
      %v4767 = vlaneseq
      %v4768 = vshrl.u32 %v4767, 7
      %v4769 = vsub.s32 %v4766, %v4768
      %v4770 = vrot.slane %v4518, %v4769
      %v4772 = vunpack.c.l.s4 1983009808
      %v4773 = vunpack.c.0.s8 %v4772
      %v4774 = vlaneseq
      %v4775 = vshrl.u32 %v4774, 7
      %v4776 = vsub.s32 %v4773, %v4775
      %v4777 = vrot.slane %v4763, %v4776
      %v4778 = vcombine.high %v4770, %v4770
      %v4779 = vcombine.high %v4777, %v4777
      %v4780 = vcombine.high %v4520, %v4520
      %v4782 = vunpack.c.l.s4 1983009808
      %v4783 = vunpack.c.0.s8 %v4782
      %v4784 = vlaneseq
      %v4785 = vshrl.u32 %v4784, 7
      %v4786 = vsub.s32 %v4783, %v4785
      %v4787 = vrot.slane %v4520, %v4786
      %v4789 = vunpack.c.l.s4 1983009808
      %v4790 = vunpack.c.0.s8 %v4789
      %v4791 = vlaneseq
      %v4792 = vshrl.u32 %v4791, 7
      %v4793 = vsub.s32 %v4790, %v4792
      %v4794 = vrot.slane %v4780, %v4793
      %v4795 = vcombine.high %v4787, %v4787
      %v4796 = vcombine.high %v4794, %v4794
      %v4797 = vcombine.high %v4522, %v4522
      %v4799 = vunpack.c.l.s4 1983009808
      %v4800 = vunpack.c.0.s8 %v4799
      %v4801 = vlaneseq
      %v4802 = vshrl.u32 %v4801, 7
      %v4803 = vsub.s32 %v4800, %v4802
      %v4804 = vrot.slane %v4522, %v4803
      %v4806 = vunpack.c.l.s4 1983009808
      %v4807 = vunpack.c.0.s8 %v4806
      %v4808 = vlaneseq
      %v4809 = vshrl.u32 %v4808, 7
      %v4810 = vsub.s32 %v4807, %v4809
      %v4811 = vrot.slane %v4797, %v4810
      %v4812 = vcombine.high %v4804, %v4804
      %v4813 = vcombine.high %v4811, %v4811
      %v4814 = vcombine.high %v4524, %v4524
      %v4816 = vunpack.c.l.s4 1983009808
      %v4817 = vunpack.c.0.s8 %v4816
      %v4818 = vlaneseq
      %v4819 = vshrl.u32 %v4818, 7
      %v4820 = vsub.s32 %v4817, %v4819
      %v4821 = vrot.slane %v4524, %v4820
      %v4823 = vunpack.c.l.s4 1983009808
      %v4824 = vunpack.c.0.s8 %v4823
      %v4825 = vlaneseq
      %v4826 = vshrl.u32 %v4825, 7
      %v4827 = vsub.s32 %v4824, %v4826
      %v4828 = vrot.slane %v4814, %v4827
      %v4829 = vcombine.high %v4821, %v4821
      %v4830 = vcombine.high %v4828, %v4828
      %v4831 = vcombine.high %v4526, %v4526
      %v4833 = vunpack.c.l.s4 1983009808
      %v4834 = vunpack.c.0.s8 %v4833
      %v4835 = vlaneseq
      %v4836 = vshrl.u32 %v4835, 7
      %v4837 = vsub.s32 %v4834, %v4836
      %v4838 = vrot.slane %v4526, %v4837
      %v4840 = vunpack.c.l.s4 1983009808
      %v4841 = vunpack.c.0.s8 %v4840
      %v4842 = vlaneseq
      %v4843 = vshrl.u32 %v4842, 7
      %v4844 = vsub.s32 %v4841, %v4843
      %v4845 = vrot.slane %v4831, %v4844
      %v4846 = vcombine.high %v4838, %v4838
      %v4847 = vcombine.high %v4845, %v4845
      %v4848 = vcombine.high %v4528, %v4528
      %v4850 = vunpack.c.l.s4 1983009808
      %v4851 = vunpack.c.0.s8 %v4850
      %v4852 = vlaneseq
      %v4853 = vshrl.u32 %v4852, 7
      %v4854 = vsub.s32 %v4851, %v4853
      %v4855 = vrot.slane %v4528, %v4854
      %v4857 = vunpack.c.l.s4 1983009808
      %v4858 = vunpack.c.0.s8 %v4857
      %v4859 = vlaneseq
      %v4860 = vshrl.u32 %v4859, 7
      %v4861 = vsub.s32 %v4858, %v4860
      %v4862 = vrot.slane %v4848, %v4861
      %v4863 = vcombine.high %v4855, %v4855
      %v4864 = vcombine.high %v4862, %v4862
      %v4865 = vcombine.high %v4530, %v4530
      %v4867 = vunpack.c.l.s4 1983009808
      %v4868 = vunpack.c.0.s8 %v4867
      %v4869 = vlaneseq
      %v4870 = vshrl.u32 %v4869, 7
      %v4871 = vsub.s32 %v4868, %v4870
      %v4872 = vrot.slane %v4530, %v4871
      %v4874 = vunpack.c.l.s4 1983009808
      %v4875 = vunpack.c.0.s8 %v4874
      %v4876 = vlaneseq
      %v4877 = vshrl.u32 %v4876, 7
      %v4878 = vsub.s32 %v4875, %v4877
      %v4879 = vrot.slane %v4865, %v4878
      %v4880 = vcombine.high %v4872, %v4872
      %v4881 = vcombine.high %v4879, %v4879
      %v4882 = vcombine.high %v4532, %v4532
      %v4884 = vunpack.c.l.s4 1983009808
      %v4885 = vunpack.c.0.s8 %v4884
      %v4886 = vlaneseq
      %v4887 = vshrl.u32 %v4886, 7
      %v4888 = vsub.s32 %v4885, %v4887
      %v4889 = vrot.slane %v4532, %v4888
      %v4891 = vunpack.c.l.s4 1983009808
      %v4892 = vunpack.c.0.s8 %v4891
      %v4893 = vlaneseq
      %v4894 = vshrl.u32 %v4893, 7
      %v4895 = vsub.s32 %v4892, %v4894
      %v4896 = vrot.slane %v4882, %v4895
      %v4897 = vcombine.high %v4889, %v4889
      %v4898 = vcombine.high %v4896, %v4896
      %v4899 = vcombine.high %v4534, %v4534
      %v4901 = vunpack.c.l.s4 1983009808
      %v4902 = vunpack.c.0.s8 %v4901
      %v4903 = vlaneseq
      %v4904 = vshrl.u32 %v4903, 7
      %v4905 = vsub.s32 %v4902, %v4904
      %v4906 = vrot.slane %v4534, %v4905
      %v4908 = vunpack.c.l.s4 1983009808
      %v4909 = vunpack.c.0.s8 %v4908
      %v4910 = vlaneseq
      %v4911 = vshrl.u32 %v4910, 7
      %v4912 = vsub.s32 %v4909, %v4911
      %v4913 = vrot.slane %v4899, %v4912
      %v4914 = vcombine.high %v4906, %v4906
      %v4915 = vcombine.high %v4913, %v4913
      %v4916 = vcombine.high %v4536, %v4536
      %v4918 = vunpack.c.l.s4 1983009808
      %v4919 = vunpack.c.0.s8 %v4918
      %v4920 = vlaneseq
      %v4921 = vshrl.u32 %v4920, 7
      %v4922 = vsub.s32 %v4919, %v4921
      %v4923 = vrot.slane %v4536, %v4922
      %v4925 = vunpack.c.l.s4 1983009808
      %v4926 = vunpack.c.0.s8 %v4925
      %v4927 = vlaneseq
      %v4928 = vshrl.u32 %v4927, 7
      %v4929 = vsub.s32 %v4926, %v4928
      %v4930 = vrot.slane %v4916, %v4929
      %v4931 = vcombine.high %v4923, %v4923
      %v4932 = vcombine.high %v4930, %v4930
      %v4933 = vcombine.high %v4538, %v4538
      %v4935 = vunpack.c.l.s4 1983009808
      %v4936 = vunpack.c.0.s8 %v4935
      %v4937 = vlaneseq
      %v4938 = vshrl.u32 %v4937, 7
      %v4939 = vsub.s32 %v4936, %v4938
      %v4940 = vrot.slane %v4538, %v4939
      %v4942 = vunpack.c.l.s4 1983009808
      %v4943 = vunpack.c.0.s8 %v4942
      %v4944 = vlaneseq
      %v4945 = vshrl.u32 %v4944, 7
      %v4946 = vsub.s32 %v4943, %v4945
      %v4947 = vrot.slane %v4933, %v4946
      %v4948 = vcombine.high %v4940, %v4940
      %v4949 = vcombine.high %v4947, %v4947
      %v4950 = vcombine.high %v4540, %v4540
      %v4952 = vunpack.c.l.s4 1983009808
      %v4953 = vunpack.c.0.s8 %v4952
      %v4954 = vlaneseq
      %v4955 = vshrl.u32 %v4954, 7
      %v4956 = vsub.s32 %v4953, %v4955
      %v4957 = vrot.slane %v4540, %v4956
      %v4959 = vunpack.c.l.s4 1983009808
      %v4960 = vunpack.c.0.s8 %v4959
      %v4961 = vlaneseq
      %v4962 = vshrl.u32 %v4961, 7
      %v4963 = vsub.s32 %v4960, %v4962
      %v4964 = vrot.slane %v4950, %v4963
      %v4965 = vcombine.high %v4957, %v4957
      %v4966 = vcombine.high %v4964, %v4964
      %v4967 = vcombine.high %v4542, %v4542
      %v4969 = vunpack.c.l.s4 1983009808
      %v4970 = vunpack.c.0.s8 %v4969
      %v4971 = vlaneseq
      %v4972 = vshrl.u32 %v4971, 7
      %v4973 = vsub.s32 %v4970, %v4972
      %v4974 = vrot.slane %v4542, %v4973
      %v4976 = vunpack.c.l.s4 1983009808
      %v4977 = vunpack.c.0.s8 %v4976
      %v4978 = vlaneseq
      %v4979 = vshrl.u32 %v4978, 7
      %v4980 = vsub.s32 %v4977, %v4979
      %v4981 = vrot.slane %v4967, %v4980
      %v4982 = vcombine.high %v4974, %v4974
      %v4983 = vcombine.high %v4981, %v4981
      %v4984 = vcombine.high %v4544, %v4544
      %v4986 = vunpack.c.l.s4 1983009808
      %v4987 = vunpack.c.0.s8 %v4986
      %v4988 = vlaneseq
      %v4989 = vshrl.u32 %v4988, 7
      %v4990 = vsub.s32 %v4987, %v4989
      %v4991 = vrot.slane %v4544, %v4990
      %v4993 = vunpack.c.l.s4 1983009808
      %v4994 = vunpack.c.0.s8 %v4993
      %v4995 = vlaneseq
      %v4996 = vshrl.u32 %v4995, 7
      %v4997 = vsub.s32 %v4994, %v4996
      %v4998 = vrot.slane %v4984, %v4997
      %v4999 = vcombine.high %v4991, %v4991
      %v5000 = vcombine.high %v4998, %v4998
      %v5001 = vcombine.high %v4546, %v4546
      %v5003 = vunpack.c.l.s4 1983009808
      %v5004 = vunpack.c.0.s8 %v5003
      %v5005 = vlaneseq
      %v5006 = vshrl.u32 %v5005, 7
      %v5007 = vsub.s32 %v5004, %v5006
      %v5008 = vrot.slane %v4546, %v5007
      %v5010 = vunpack.c.l.s4 1983009808
      %v5011 = vunpack.c.0.s8 %v5010
      %v5012 = vlaneseq
      %v5013 = vshrl.u32 %v5012, 7
      %v5014 = vsub.s32 %v5011, %v5013
      %v5015 = vrot.slane %v5001, %v5014
      %v5016 = vcombine.high %v5008, %v5008
      %v5017 = vcombine.high %v5015, %v5015
      %v5018 = vcombine.high %v4548, %v4548
      %v5020 = vunpack.c.l.s4 1983009808
      %v5021 = vunpack.c.0.s8 %v5020
      %v5022 = vlaneseq
      %v5023 = vshrl.u32 %v5022, 7
      %v5024 = vsub.s32 %v5021, %v5023
      %v5025 = vrot.slane %v4548, %v5024
      %v5027 = vunpack.c.l.s4 1983009808
      %v5028 = vunpack.c.0.s8 %v5027
      %v5029 = vlaneseq
      %v5030 = vshrl.u32 %v5029, 7
      %v5031 = vsub.s32 %v5028, %v5030
      %v5032 = vrot.slane %v5018, %v5031
      %v5033 = vcombine.high %v5025, %v5025
      %v5034 = vcombine.high %v5032, %v5032
      %v5035 = vcombine.high %v4550, %v4550
      %v5037 = vunpack.c.l.s4 1983009808
      %v5038 = vunpack.c.0.s8 %v5037
      %v5039 = vlaneseq
      %v5040 = vshrl.u32 %v5039, 7
      %v5041 = vsub.s32 %v5038, %v5040
      %v5042 = vrot.slane %v4550, %v5041
      %v5044 = vunpack.c.l.s4 1983009808
      %v5045 = vunpack.c.0.s8 %v5044
      %v5046 = vlaneseq
      %v5047 = vshrl.u32 %v5046, 7
      %v5048 = vsub.s32 %v5045, %v5047
      %v5049 = vrot.slane %v5035, %v5048
      %v5050 = vcombine.high %v5042, %v5042
      %v5051 = vcombine.high %v5049, %v5049
      %v5052 = vcombine.high %v4552, %v4552
      %v5054 = vunpack.c.l.s4 1983009808
      %v5055 = vunpack.c.0.s8 %v5054
      %v5056 = vlaneseq
      %v5057 = vshrl.u32 %v5056, 7
      %v5058 = vsub.s32 %v5055, %v5057
      %v5059 = vrot.slane %v4552, %v5058
      %v5061 = vunpack.c.l.s4 1983009808
      %v5062 = vunpack.c.0.s8 %v5061
      %v5063 = vlaneseq
      %v5064 = vshrl.u32 %v5063, 7
      %v5065 = vsub.s32 %v5062, %v5064
      %v5066 = vrot.slane %v5052, %v5065
      %v5067 = vcombine.high %v5059, %v5059
      %v5068 = vcombine.high %v5066, %v5066
      %v5069 = vcombine.high %v4554, %v4554
      %v5071 = vunpack.c.l.s4 1983009808
      %v5072 = vunpack.c.0.s8 %v5071
      %v5073 = vlaneseq
      %v5074 = vshrl.u32 %v5073, 7
      %v5075 = vsub.s32 %v5072, %v5074
      %v5076 = vrot.slane %v4554, %v5075
      %v5078 = vunpack.c.l.s4 1983009808
      %v5079 = vunpack.c.0.s8 %v5078
      %v5080 = vlaneseq
      %v5081 = vshrl.u32 %v5080, 7
      %v5082 = vsub.s32 %v5079, %v5081
      %v5083 = vrot.slane %v5069, %v5082
      %v5084 = vcombine.high %v5076, %v5076
      %v5085 = vcombine.high %v5083, %v5083
      %v5086 = vcombine.high %v4556, %v4556
      %v5088 = vunpack.c.l.s4 1983009808
      %v5089 = vunpack.c.0.s8 %v5088
      %v5090 = vlaneseq
      %v5091 = vshrl.u32 %v5090, 7
      %v5092 = vsub.s32 %v5089, %v5091
      %v5093 = vrot.slane %v4556, %v5092
      %v5095 = vunpack.c.l.s4 1983009808
      %v5096 = vunpack.c.0.s8 %v5095
      %v5097 = vlaneseq
      %v5098 = vshrl.u32 %v5097, 7
      %v5099 = vsub.s32 %v5096, %v5098
      %v5100 = vrot.slane %v5086, %v5099
      %v5101 = vcombine.high %v5093, %v5093
      %v5102 = vcombine.high %v5100, %v5100
      %v5103 = vcombine.high %v4558, %v4558
      %v5105 = vunpack.c.l.s4 1983009808
      %v5106 = vunpack.c.0.s8 %v5105
      %v5107 = vlaneseq
      %v5108 = vshrl.u32 %v5107, 7
      %v5109 = vsub.s32 %v5106, %v5108
      %v5110 = vrot.slane %v4558, %v5109
      %v5112 = vunpack.c.l.s4 1983009808
      %v5113 = vunpack.c.0.s8 %v5112
      %v5114 = vlaneseq
      %v5115 = vshrl.u32 %v5114, 7
      %v5116 = vsub.s32 %v5113, %v5115
      %v5117 = vrot.slane %v5103, %v5116
      %v5118 = vcombine.high %v5110, %v5110
      %v5119 = vcombine.high %v5117, %v5117
      %v5120 = vcombine.high %v4560, %v4560
      %v5122 = vunpack.c.l.s4 1983009808
      %v5123 = vunpack.c.0.s8 %v5122
      %v5124 = vlaneseq
      %v5125 = vshrl.u32 %v5124, 7
      %v5126 = vsub.s32 %v5123, %v5125
      %v5127 = vrot.slane %v4560, %v5126
      %v5129 = vunpack.c.l.s4 1983009808
      %v5130 = vunpack.c.0.s8 %v5129
      %v5131 = vlaneseq
      %v5132 = vshrl.u32 %v5131, 7
      %v5133 = vsub.s32 %v5130, %v5132
      %v5134 = vrot.slane %v5120, %v5133
      %v5135 = vcombine.high %v5127, %v5127
      %v5136 = vcombine.high %v5134, %v5134
      %v5265 = vld [vmem:[%s344] sm:$0xff]
      %v5266 = vlaneseq
      %v5267 = vshrl.u32 %v5266, 7
      %v5268 = vsub.s32 0, %v5267
      %v5269 = vrot.slane %v5265, %v5268
      %5271 = vbcast.lane.b32.xlu0 %v5269, 256
      %v5272 = vpop.permute.xlu0 %5271
      %v5273 = vlaneseq
      %v5274 = vshrl.u32 %v5273, 7
      %v5275 = vsub.s32 1, %v5274
      %v5276 = vrot.slane %v5265, %v5275
      %5278 = vbcast.lane.b32.xlu0 %v5276, 256
      %v5279 = vpop.permute.xlu0 %5278
      %v5280 = vlaneseq
      %v5281 = vshrl.u32 %v5280, 7
      %v5282 = vsub.s32 2, %v5281
      %v5283 = vrot.slane %v5265, %v5282
      %5285 = vbcast.lane.b32.xlu0 %v5283, 256
      %v5286 = vpop.permute.xlu0 %5285
      %v5287 = vlaneseq
      %v5288 = vshrl.u32 %v5287, 7
      %v5289 = vsub.s32 3, %v5288
      %v5290 = vrot.slane %v5265, %v5289
      %5292 = vbcast.lane.b32.xlu0 %v5290, 256
      %v5293 = vpop.permute.xlu0 %5292
      %v5294 = vlaneseq
      %v5295 = vshrl.u32 %v5294, 7
      %v5296 = vsub.s32 4, %v5295
      %v5297 = vrot.slane %v5265, %v5296
      %5299 = vbcast.lane.b32.xlu0 %v5297, 256
      %v5300 = vpop.permute.xlu0 %5299
      %v5301 = vlaneseq
      %v5302 = vshrl.u32 %v5301, 7
      %v5303 = vsub.s32 5, %v5302
      %v5304 = vrot.slane %v5265, %v5303
      %5306 = vbcast.lane.b32.xlu0 %v5304, 256
      %v5307 = vpop.permute.xlu0 %5306
      %v5308 = vlaneseq
      %v5309 = vshrl.u32 %v5308, 7
      %v5310 = vsub.s32 6, %v5309
      %v5311 = vrot.slane %v5265, %v5310
      %5313 = vbcast.lane.b32.xlu0 %v5311, 256
      %v5314 = vpop.permute.xlu0 %5313
      %v5315 = vlaneseq
      %v5316 = vshrl.u32 %v5315, 7
      %v5317 = vsub.s32 7, %v5316
      %v5318 = vrot.slane %v5265, %v5317
      %5320 = vbcast.lane.b32.xlu0 %v5318, 256
      %v5321 = vpop.permute.xlu0 %5320
      %v5322 = vld [vmem:[%s3] sm:$0xff]
      %v5323 = vld [vmem:[%s3 + $0x8] sm:$0xff]
      %v5324 = vlaneseq
      %v5325 = vshrl.u32 %v5324, 7
      %v5326 = vsub.s32 0, %v5325
      %v5327 = vrot.slane %v5322, %v5326
      %5329 = vbcast.lane.b32.xlu0 %v5327, 256
      %v5330 = vpop.permute.xlu0 %5329
      %v5331 = vlaneseq
      %v5332 = vshrl.u32 %v5331, 7
      %v5333 = vsub.s32 1, %v5332
      %v5334 = vrot.slane %v5322, %v5333
      %5336 = vbcast.lane.b32.xlu0 %v5334, 256
      %v5337 = vpop.permute.xlu0 %5336
      %v5338 = vlaneseq
      %v5339 = vshrl.u32 %v5338, 7
      %v5340 = vsub.s32 2, %v5339
      %v5341 = vrot.slane %v5322, %v5340
      %5343 = vbcast.lane.b32.xlu0 %v5341, 256
      %v5344 = vpop.permute.xlu0 %5343
      %v5345 = vlaneseq
      %v5346 = vshrl.u32 %v5345, 7
      %v5347 = vsub.s32 3, %v5346
      %v5348 = vrot.slane %v5322, %v5347
      %5350 = vbcast.lane.b32.xlu0 %v5348, 256
      %v5351 = vpop.permute.xlu0 %5350
      %v5352 = vlaneseq
      %v5353 = vshrl.u32 %v5352, 7
      %v5354 = vsub.s32 4, %v5353
      %v5355 = vrot.slane %v5322, %v5354
      %5357 = vbcast.lane.b32.xlu0 %v5355, 256
      %v5358 = vpop.permute.xlu0 %5357
      %v5359 = vlaneseq
      %v5360 = vshrl.u32 %v5359, 7
      %v5361 = vsub.s32 5, %v5360
      %v5362 = vrot.slane %v5322, %v5361
      %5364 = vbcast.lane.b32.xlu0 %v5362, 256
      %v5365 = vpop.permute.xlu0 %5364
      %v5366 = vlaneseq
      %v5367 = vshrl.u32 %v5366, 7
      %v5368 = vsub.s32 6, %v5367
      %v5369 = vrot.slane %v5322, %v5368
      %5371 = vbcast.lane.b32.xlu0 %v5369, 256
      %v5372 = vpop.permute.xlu0 %5371
      %v5373 = vlaneseq
      %v5374 = vshrl.u32 %v5373, 7
      %v5375 = vsub.s32 7, %v5374
      %v5376 = vrot.slane %v5322, %v5375
      %5378 = vbcast.lane.b32.xlu0 %v5376, 256
      %v5379 = vpop.permute.xlu0 %5378
      %v5380 = vlaneseq
      %v5381 = vshrl.u32 %v5380, 7
      %v5382 = vsub.s32 0, %v5381
      %v5383 = vrot.slane %v5323, %v5382
      %5385 = vbcast.lane.b32.xlu0 %v5383, 256
      %v5386 = vpop.permute.xlu0 %5385
      %v5387 = vlaneseq
      %v5388 = vshrl.u32 %v5387, 7
      %v5389 = vsub.s32 1, %v5388
      %v5390 = vrot.slane %v5323, %v5389
      %5392 = vbcast.lane.b32.xlu0 %v5390, 256
      %v5393 = vpop.permute.xlu0 %5392
      %v5394 = vlaneseq
      %v5395 = vshrl.u32 %v5394, 7
      %v5396 = vsub.s32 2, %v5395
      %v5397 = vrot.slane %v5323, %v5396
      %5399 = vbcast.lane.b32.xlu0 %v5397, 256
      %v5400 = vpop.permute.xlu0 %5399
      %v5401 = vlaneseq
      %v5402 = vshrl.u32 %v5401, 7
      %v5403 = vsub.s32 3, %v5402
      %v5404 = vrot.slane %v5323, %v5403
      %5406 = vbcast.lane.b32.xlu0 %v5404, 256
      %v5407 = vpop.permute.xlu0 %5406
      %v5408 = vlaneseq
      %v5409 = vshrl.u32 %v5408, 7
      %v5410 = vsub.s32 4, %v5409
      %v5411 = vrot.slane %v5323, %v5410
      %5413 = vbcast.lane.b32.xlu0 %v5411, 256
      %v5414 = vpop.permute.xlu0 %5413
      %v5415 = vlaneseq
      %v5416 = vshrl.u32 %v5415, 7
      %v5417 = vsub.s32 5, %v5416
      %v5418 = vrot.slane %v5323, %v5417
      %5420 = vbcast.lane.b32.xlu0 %v5418, 256
      %v5421 = vpop.permute.xlu0 %5420
      %v5422 = vlaneseq
      %v5423 = vshrl.u32 %v5422, 7
      %v5424 = vsub.s32 6, %v5423
      %v5425 = vrot.slane %v5323, %v5424
      %5427 = vbcast.lane.b32.xlu0 %v5425, 256
      %v5428 = vpop.permute.xlu0 %5427
      %v5429 = vlaneseq
      %v5430 = vshrl.u32 %v5429, 7
      %v5431 = vsub.s32 7, %v5430
      %v5432 = vrot.slane %v5323, %v5431
      %5434 = vbcast.lane.b32.xlu0 %v5432, 256
      %v5435 = vpop.permute.xlu0 %5434
      %v5436 = vmul.f32 %v5272, %v5330
      %v5437 = vmul.f32 %v5272, %v5337
      %v5438 = vmul.f32 %v5272, %v5344
      %v5439 = vmul.f32 %v5272, %v5351
      %v5440 = vmul.f32 %v5272, %v5358
      %v5441 = vmul.f32 %v5272, %v5365
      %v5442 = vmul.f32 %v5272, %v5372
      %v5443 = vmul.f32 %v5272, %v5379
      %v5444 = vmul.f32 %v5272, %v5386
      %v5445 = vmul.f32 %v5272, %v5393
      %v5446 = vmul.f32 %v5272, %v5400
      %v5447 = vmul.f32 %v5272, %v5407
      %v5448 = vmul.f32 %v5272, %v5414
      %v5449 = vmul.f32 %v5272, %v5421
      %v5450 = vmul.f32 %v5272, %v5428
      %v5451 = vmul.f32 %v5272, %v5435
      %v5452 = vmul.f32 %v5279, %v5330
      %v5453 = vmul.f32 %v5279, %v5337
      %v5454 = vmul.f32 %v5279, %v5344
      %v5455 = vmul.f32 %v5279, %v5351
      %v5456 = vmul.f32 %v5279, %v5358
      %v5457 = vmul.f32 %v5279, %v5365
      %v5458 = vmul.f32 %v5279, %v5372
      %v5459 = vmul.f32 %v5279, %v5379
      %v5460 = vmul.f32 %v5279, %v5386
      %v5461 = vmul.f32 %v5279, %v5393
      %v5462 = vmul.f32 %v5279, %v5400
      %v5463 = vmul.f32 %v5279, %v5407
      %v5464 = vmul.f32 %v5279, %v5414
      %v5465 = vmul.f32 %v5279, %v5421
      %v5466 = vmul.f32 %v5279, %v5428
      %v5467 = vmul.f32 %v5279, %v5435
      %v5468 = vmul.f32 %v5286, %v5330
      %v5469 = vmul.f32 %v5286, %v5337
      %v5470 = vmul.f32 %v5286, %v5344
      %v5471 = vmul.f32 %v5286, %v5351
      %v5472 = vmul.f32 %v5286, %v5358
      %v5473 = vmul.f32 %v5286, %v5365
      %v5474 = vmul.f32 %v5286, %v5372
      %v5475 = vmul.f32 %v5286, %v5379
      %v5476 = vmul.f32 %v5286, %v5386
      %v5477 = vmul.f32 %v5286, %v5393
      %v5478 = vmul.f32 %v5286, %v5400
      %v5479 = vmul.f32 %v5286, %v5407
      %v5480 = vmul.f32 %v5286, %v5414
      %v5481 = vmul.f32 %v5286, %v5421
      %v5482 = vmul.f32 %v5286, %v5428
      %v5483 = vmul.f32 %v5286, %v5435
      %v5484 = vmul.f32 %v5293, %v5330
      %v5485 = vmul.f32 %v5293, %v5337
      %v5486 = vmul.f32 %v5293, %v5344
      %v5487 = vmul.f32 %v5293, %v5351
      %v5488 = vmul.f32 %v5293, %v5358
      %v5489 = vmul.f32 %v5293, %v5365
      %v5490 = vmul.f32 %v5293, %v5372
      %v5491 = vmul.f32 %v5293, %v5379
      %v5492 = vmul.f32 %v5293, %v5386
      %v5493 = vmul.f32 %v5293, %v5393
      %v5494 = vmul.f32 %v5293, %v5400
      %v5495 = vmul.f32 %v5293, %v5407
      %v5496 = vmul.f32 %v5293, %v5414
      %v5497 = vmul.f32 %v5293, %v5421
      %v5498 = vmul.f32 %v5293, %v5428
      %v5499 = vmul.f32 %v5293, %v5435
      %v5500 = vmul.f32 %v5300, %v5330
      %v5501 = vmul.f32 %v5300, %v5337
      %v5502 = vmul.f32 %v5300, %v5344
      %v5503 = vmul.f32 %v5300, %v5351
      %v5504 = vmul.f32 %v5300, %v5358
      %v5505 = vmul.f32 %v5300, %v5365
      %v5506 = vmul.f32 %v5300, %v5372
      %v5507 = vmul.f32 %v5300, %v5379
      %v5508 = vmul.f32 %v5300, %v5386
      %v5509 = vmul.f32 %v5300, %v5393
      %v5510 = vmul.f32 %v5300, %v5400
      %v5511 = vmul.f32 %v5300, %v5407
      %v5512 = vmul.f32 %v5300, %v5414
      %v5513 = vmul.f32 %v5300, %v5421
      %v5514 = vmul.f32 %v5300, %v5428
      %v5515 = vmul.f32 %v5300, %v5435
      %v5516 = vmul.f32 %v5307, %v5330
      %v5517 = vmul.f32 %v5307, %v5337
      %v5518 = vmul.f32 %v5307, %v5344
      %v5519 = vmul.f32 %v5307, %v5351
      %v5520 = vmul.f32 %v5307, %v5358
      %v5521 = vmul.f32 %v5307, %v5365
      %v5522 = vmul.f32 %v5307, %v5372
      %v5523 = vmul.f32 %v5307, %v5379
      %v5524 = vmul.f32 %v5307, %v5386
      %v5525 = vmul.f32 %v5307, %v5393
      %v5526 = vmul.f32 %v5307, %v5400
      %v5527 = vmul.f32 %v5307, %v5407
      %v5528 = vmul.f32 %v5307, %v5414
      %v5529 = vmul.f32 %v5307, %v5421
      %v5530 = vmul.f32 %v5307, %v5428
      %v5531 = vmul.f32 %v5307, %v5435
      %v5532 = vmul.f32 %v5314, %v5330
      %v5533 = vmul.f32 %v5314, %v5337
      %v5534 = vmul.f32 %v5314, %v5344
      %v5535 = vmul.f32 %v5314, %v5351
      %v5536 = vmul.f32 %v5314, %v5358
      %v5537 = vmul.f32 %v5314, %v5365
      %v5538 = vmul.f32 %v5314, %v5372
      %v5539 = vmul.f32 %v5314, %v5379
      %v5540 = vmul.f32 %v5314, %v5386
      %v5541 = vmul.f32 %v5314, %v5393
      %v5542 = vmul.f32 %v5314, %v5400
      %v5543 = vmul.f32 %v5314, %v5407
      %v5544 = vmul.f32 %v5314, %v5414
      %v5545 = vmul.f32 %v5314, %v5421
      %v5546 = vmul.f32 %v5314, %v5428
      %v5547 = vmul.f32 %v5314, %v5435
      %v5548 = vmul.f32 %v5321, %v5330
      %v5549 = vmul.f32 %v5321, %v5337
      %v5550 = vmul.f32 %v5321, %v5344
      %v5551 = vmul.f32 %v5321, %v5351
      %v5552 = vmul.f32 %v5321, %v5358
      %v5553 = vmul.f32 %v5321, %v5365
      %v5554 = vmul.f32 %v5321, %v5372
      %v5555 = vmul.f32 %v5321, %v5379
      %v5556 = vmul.f32 %v5321, %v5386
      %v5557 = vmul.f32 %v5321, %v5393
      %v5558 = vmul.f32 %v5321, %v5400
      %v5559 = vmul.f32 %v5321, %v5407
      %v5560 = vmul.f32 %v5321, %v5414
      %v5561 = vmul.f32 %v5321, %v5421
      %v5562 = vmul.f32 %v5321, %v5428
      %v5563 = vmul.f32 %v5321, %v5435
      %v5564 = vmul.f32 %v4600, %v5436
      %v5565 = vmul.f32 %v4608, %v5437
      %v5566 = vmul.f32 %v4607, %v5438
      %v5567 = vmul.f32 %v4609, %v5439
      %v5568 = vmul.f32 %v4617, %v5440
      %v5569 = vmul.f32 %v4625, %v5441
      %v5570 = vmul.f32 %v4624, %v5442
      %v5571 = vmul.f32 %v4626, %v5443
      %v5572 = vmul.f32 %v4634, %v5444
      %v5573 = vmul.f32 %v4642, %v5445
      %v5574 = vmul.f32 %v4641, %v5446
      %v5575 = vmul.f32 %v4643, %v5447
      %v5576 = vmul.f32 %v4651, %v5448
      %v5577 = vmul.f32 %v4659, %v5449
      %v5578 = vmul.f32 %v4658, %v5450
      %v5579 = vmul.f32 %v4660, %v5451
      %v5580 = vmul.f32 %v4668, %v5452
      %v5581 = vmul.f32 %v4676, %v5453
      %v5582 = vmul.f32 %v4675, %v5454
      %v5583 = vmul.f32 %v4677, %v5455
      %v5584 = vmul.f32 %v4685, %v5456
      %v5585 = vmul.f32 %v4693, %v5457
      %v5586 = vmul.f32 %v4692, %v5458
      %v5587 = vmul.f32 %v4694, %v5459
      %v5588 = vmul.f32 %v4702, %v5460
      %v5589 = vmul.f32 %v4710, %v5461
      %v5590 = vmul.f32 %v4709, %v5462
      %v5591 = vmul.f32 %v4711, %v5463
      %v5592 = vmul.f32 %v4719, %v5464
      %v5593 = vmul.f32 %v4727, %v5465
      %v5594 = vmul.f32 %v4726, %v5466
      %v5595 = vmul.f32 %v4728, %v5467
      %v5596 = vmul.f32 %v4736, %v5468
      %v5597 = vmul.f32 %v4744, %v5469
      %v5598 = vmul.f32 %v4743, %v5470
      %v5599 = vmul.f32 %v4745, %v5471
      %v5600 = vmul.f32 %v4753, %v5472
      %v5601 = vmul.f32 %v4761, %v5473
      %v5602 = vmul.f32 %v4760, %v5474
      %v5603 = vmul.f32 %v4762, %v5475
      %v5604 = vmul.f32 %v4770, %v5476
      %v5605 = vmul.f32 %v4778, %v5477
      %v5606 = vmul.f32 %v4777, %v5478
      %v5607 = vmul.f32 %v4779, %v5479
      %v5608 = vmul.f32 %v4787, %v5480
      %v5609 = vmul.f32 %v4795, %v5481
      %v5610 = vmul.f32 %v4794, %v5482
      %v5611 = vmul.f32 %v4796, %v5483
      %v5612 = vmul.f32 %v4804, %v5484
      %v5613 = vmul.f32 %v4812, %v5485
      %v5614 = vmul.f32 %v4811, %v5486
      %v5615 = vmul.f32 %v4813, %v5487
      %v5616 = vmul.f32 %v4821, %v5488
      %v5617 = vmul.f32 %v4829, %v5489
      %v5618 = vmul.f32 %v4828, %v5490
      %v5619 = vmul.f32 %v4830, %v5491
      %v5620 = vmul.f32 %v4838, %v5492
      %v5621 = vmul.f32 %v4846, %v5493
      %v5622 = vmul.f32 %v4845, %v5494
      %v5623 = vmul.f32 %v4847, %v5495
      %v5624 = vmul.f32 %v4855, %v5496
      %v5625 = vmul.f32 %v4863, %v5497
      %v5626 = vmul.f32 %v4862, %v5498
      %v5627 = vmul.f32 %v4864, %v5499
      %v5628 = vmul.f32 %v4872, %v5500
      %v5629 = vmul.f32 %v4880, %v5501
      %v5630 = vmul.f32 %v4879, %v5502
      %v5631 = vmul.f32 %v4881, %v5503
      %v5632 = vmul.f32 %v4889, %v5504
      %v5633 = vmul.f32 %v4897, %v5505
      %v5634 = vmul.f32 %v4896, %v5506
      %v5635 = vmul.f32 %v4898, %v5507
      %v5636 = vmul.f32 %v4906, %v5508
      %v5637 = vmul.f32 %v4914, %v5509
      %v5638 = vmul.f32 %v4913, %v5510
      %v5639 = vmul.f32 %v4915, %v5511
      %v5640 = vmul.f32 %v4923, %v5512
      %v5641 = vmul.f32 %v4931, %v5513
      %v5642 = vmul.f32 %v4930, %v5514
      %v5643 = vmul.f32 %v4932, %v5515
      %v5644 = vmul.f32 %v4940, %v5516
      %v5645 = vmul.f32 %v4948, %v5517
      %v5646 = vmul.f32 %v4947, %v5518
      %v5647 = vmul.f32 %v4949, %v5519
      %v5648 = vmul.f32 %v4957, %v5520
      %v5649 = vmul.f32 %v4965, %v5521
      %v5650 = vmul.f32 %v4964, %v5522
      %v5651 = vmul.f32 %v4966, %v5523
      %v5652 = vmul.f32 %v4974, %v5524
      %v5653 = vmul.f32 %v4982, %v5525
      %v5654 = vmul.f32 %v4981, %v5526
      %v5655 = vmul.f32 %v4983, %v5527
      %v5656 = vmul.f32 %v4991, %v5528
      %v5657 = vmul.f32 %v4999, %v5529
      %v5658 = vmul.f32 %v4998, %v5530
      %v5659 = vmul.f32 %v5000, %v5531
      %v5660 = vmul.f32 %v5008, %v5532
      %v5661 = vmul.f32 %v5016, %v5533
      %v5662 = vmul.f32 %v5015, %v5534
      %v5663 = vmul.f32 %v5017, %v5535
      %v5664 = vmul.f32 %v5025, %v5536
      %v5665 = vmul.f32 %v5033, %v5537
      %v5666 = vmul.f32 %v5032, %v5538
      %v5667 = vmul.f32 %v5034, %v5539
      %v5668 = vmul.f32 %v5042, %v5540
      %v5669 = vmul.f32 %v5050, %v5541
      %v5670 = vmul.f32 %v5049, %v5542
      %v5671 = vmul.f32 %v5051, %v5543
      %v5672 = vmul.f32 %v5059, %v5544
      %v5673 = vmul.f32 %v5067, %v5545
      %v5674 = vmul.f32 %v5066, %v5546
      %v5675 = vmul.f32 %v5068, %v5547
      %v5676 = vmul.f32 %v5076, %v5548
      %v5677 = vmul.f32 %v5084, %v5549
      %v5678 = vmul.f32 %v5083, %v5550
      %v5679 = vmul.f32 %v5085, %v5551
      %v5680 = vmul.f32 %v5093, %v5552
      %v5681 = vmul.f32 %v5101, %v5553
      %v5682 = vmul.f32 %v5100, %v5554
      %v5683 = vmul.f32 %v5102, %v5555
      %v5684 = vmul.f32 %v5110, %v5556
      %v5685 = vmul.f32 %v5118, %v5557
      %v5686 = vmul.f32 %v5117, %v5558
      %v5687 = vmul.f32 %v5119, %v5559
      %v5688 = vmul.f32 %v5127, %v5560
      %v5689 = vmul.f32 %v5135, %v5561
      %v5690 = vmul.f32 %v5134, %v5562
      %v5691 = vmul.f32 %v5136, %v5563
      %vm5692 = vcmask 33792
      %5693 = vst.msk [vmem:[%s350] sm:$0x3] %vm5692, %v5564
      %5694 = vst.msk [vmem:[%s350 + $0x2] sm:$0x3] %vm5692, %v5565
      %5695 = vst.msk [vmem:[%s350 + $0x4] sm:$0x3] %vm5692, %v5566
      %5696 = vst.msk [vmem:[%s350 + $0x6] sm:$0x3] %vm5692, %v5567
      %5697 = vst.msk [vmem:[%s350 + $0x8] sm:$0x3] %vm5692, %v5568
      %5698 = vst.msk [vmem:[%s350 + $0xa] sm:$0x3] %vm5692, %v5569
      %5699 = vst.msk [vmem:[%s350 + $0xc] sm:$0x3] %vm5692, %v5570
      %5700 = vst.msk [vmem:[%s350 + $0xe] sm:$0x3] %vm5692, %v5571
      %5701 = vst.msk [vmem:[%s350 + $0x10] sm:$0x3] %vm5692, %v5572
      %5702 = vst.msk [vmem:[%s350 + $0x12] sm:$0x3] %vm5692, %v5573
      %5703 = vst.msk [vmem:[%s350 + $0x14] sm:$0x3] %vm5692, %v5574
      %5704 = vst.msk [vmem:[%s350 + $0x16] sm:$0x3] %vm5692, %v5575
      %5705 = vst.msk [vmem:[%s350 + $0x18] sm:$0x3] %vm5692, %v5576
      %5706 = vst.msk [vmem:[%s350 + $0x1a] sm:$0x3] %vm5692, %v5577
      %5707 = vst.msk [vmem:[%s350 + $0x1c] sm:$0x3] %vm5692, %v5578
      %5708 = vst.msk [vmem:[%s350 + $0x1e] sm:$0x3] %vm5692, %v5579
      %5709 = vst.msk [vmem:[%s350 + $0x20] sm:$0x3] %vm5692, %v5580
      %5710 = vst.msk [vmem:[%s350 + $0x22] sm:$0x3] %vm5692, %v5581
      %5711 = vst.msk [vmem:[%s350 + $0x24] sm:$0x3] %vm5692, %v5582
      %5712 = vst.msk [vmem:[%s350 + $0x26] sm:$0x3] %vm5692, %v5583
      %5713 = vst.msk [vmem:[%s350 + $0x28] sm:$0x3] %vm5692, %v5584
      %5714 = vst.msk [vmem:[%s350 + $0x2a] sm:$0x3] %vm5692, %v5585
      %5715 = vst.msk [vmem:[%s350 + $0x2c] sm:$0x3] %vm5692, %v5586
      %5716 = vst.msk [vmem:[%s350 + $0x2e] sm:$0x3] %vm5692, %v5587
      %5717 = vst.msk [vmem:[%s350 + $0x30] sm:$0x3] %vm5692, %v5588
      %5718 = vst.msk [vmem:[%s350 + $0x32] sm:$0x3] %vm5692, %v5589
      %5719 = vst.msk [vmem:[%s350 + $0x34] sm:$0x3] %vm5692, %v5590
      %5720 = vst.msk [vmem:[%s350 + $0x36] sm:$0x3] %vm5692, %v5591
      %5721 = vst.msk [vmem:[%s350 + $0x38] sm:$0x3] %vm5692, %v5592
      %5722 = vst.msk [vmem:[%s350 + $0x3a] sm:$0x3] %vm5692, %v5593
      %5723 = vst.msk [vmem:[%s350 + $0x3c] sm:$0x3] %vm5692, %v5594
      %5724 = vst.msk [vmem:[%s350 + $0x3e] sm:$0x3] %vm5692, %v5595
      %5725 = vst.msk [vmem:[%s350 + $0x40] sm:$0x3] %vm5692, %v5596
      %5726 = vst.msk [vmem:[%s350 + $0x42] sm:$0x3] %vm5692, %v5597
      %5727 = vst.msk [vmem:[%s350 + $0x44] sm:$0x3] %vm5692, %v5598
      %5728 = vst.msk [vmem:[%s350 + $0x46] sm:$0x3] %vm5692, %v5599
      %5729 = vst.msk [vmem:[%s350 + $0x48] sm:$0x3] %vm5692, %v5600
      %5730 = vst.msk [vmem:[%s350 + $0x4a] sm:$0x3] %vm5692, %v5601
      %5731 = vst.msk [vmem:[%s350 + $0x4c] sm:$0x3] %vm5692, %v5602
      %5732 = vst.msk [vmem:[%s350 + $0x4e] sm:$0x3] %vm5692, %v5603
      %5733 = vst.msk [vmem:[%s350 + $0x50] sm:$0x3] %vm5692, %v5604
      %5734 = vst.msk [vmem:[%s350 + $0x52] sm:$0x3] %vm5692, %v5605
      %5735 = vst.msk [vmem:[%s350 + $0x54] sm:$0x3] %vm5692, %v5606
      %5736 = vst.msk [vmem:[%s350 + $0x56] sm:$0x3] %vm5692, %v5607
      %5737 = vst.msk [vmem:[%s350 + $0x58] sm:$0x3] %vm5692, %v5608
      %5738 = vst.msk [vmem:[%s350 + $0x5a] sm:$0x3] %vm5692, %v5609
      %5739 = vst.msk [vmem:[%s350 + $0x5c] sm:$0x3] %vm5692, %v5610
      %5740 = vst.msk [vmem:[%s350 + $0x5e] sm:$0x3] %vm5692, %v5611
      %5741 = vst.msk [vmem:[%s350 + $0x60] sm:$0x3] %vm5692, %v5612
      %5742 = vst.msk [vmem:[%s350 + $0x62] sm:$0x3] %vm5692, %v5613
      %5743 = vst.msk [vmem:[%s350 + $0x64] sm:$0x3] %vm5692, %v5614
      %5744 = vst.msk [vmem:[%s350 + $0x66] sm:$0x3] %vm5692, %v5615
      %5745 = vst.msk [vmem:[%s350 + $0x68] sm:$0x3] %vm5692, %v5616
      %5746 = vst.msk [vmem:[%s350 + $0x6a] sm:$0x3] %vm5692, %v5617
      %5747 = vst.msk [vmem:[%s350 + $0x6c] sm:$0x3] %vm5692, %v5618
      %5748 = vst.msk [vmem:[%s350 + $0x6e] sm:$0x3] %vm5692, %v5619
      %5749 = vst.msk [vmem:[%s350 + $0x70] sm:$0x3] %vm5692, %v5620
      %5750 = vst.msk [vmem:[%s350 + $0x72] sm:$0x3] %vm5692, %v5621
      %5751 = vst.msk [vmem:[%s350 + $0x74] sm:$0x3] %vm5692, %v5622
      %5752 = vst.msk [vmem:[%s350 + $0x76] sm:$0x3] %vm5692, %v5623
      %5753 = vst.msk [vmem:[%s350 + $0x78] sm:$0x3] %vm5692, %v5624
      %5754 = vst.msk [vmem:[%s350 + $0x7a] sm:$0x3] %vm5692, %v5625
      %5755 = vst.msk [vmem:[%s350 + $0x7c] sm:$0x3] %vm5692, %v5626
      %5756 = vst.msk [vmem:[%s350 + $0x7e] sm:$0x3] %vm5692, %v5627
      %5757 = vst.msk [vmem:[%s350 + $0x80] sm:$0x3] %vm5692, %v5628
      %5758 = vst.msk [vmem:[%s350 + $0x82] sm:$0x3] %vm5692, %v5629
      %5759 = vst.msk [vmem:[%s350 + $0x84] sm:$0x3] %vm5692, %v5630
      %5760 = vst.msk [vmem:[%s350 + $0x86] sm:$0x3] %vm5692, %v5631
      %5761 = vst.msk [vmem:[%s350 + $0x88] sm:$0x3] %vm5692, %v5632
      %5762 = vst.msk [vmem:[%s350 + $0x8a] sm:$0x3] %vm5692, %v5633
      %5763 = vst.msk [vmem:[%s350 + $0x8c] sm:$0x3] %vm5692, %v5634
      %5764 = vst.msk [vmem:[%s350 + $0x8e] sm:$0x3] %vm5692, %v5635
      %5765 = vst.msk [vmem:[%s350 + $0x90] sm:$0x3] %vm5692, %v5636
      %5766 = vst.msk [vmem:[%s350 + $0x92] sm:$0x3] %vm5692, %v5637
      %5767 = vst.msk [vmem:[%s350 + $0x94] sm:$0x3] %vm5692, %v5638
      %5768 = vst.msk [vmem:[%s350 + $0x96] sm:$0x3] %vm5692, %v5639
      %5769 = vst.msk [vmem:[%s350 + $0x98] sm:$0x3] %vm5692, %v5640
      %5770 = vst.msk [vmem:[%s350 + $0x9a] sm:$0x3] %vm5692, %v5641
      %5771 = vst.msk [vmem:[%s350 + $0x9c] sm:$0x3] %vm5692, %v5642
      %5772 = vst.msk [vmem:[%s350 + $0x9e] sm:$0x3] %vm5692, %v5643
      %5773 = vst.msk [vmem:[%s350 + $0xa0] sm:$0x3] %vm5692, %v5644
      %5774 = vst.msk [vmem:[%s350 + $0xa2] sm:$0x3] %vm5692, %v5645
      %5775 = vst.msk [vmem:[%s350 + $0xa4] sm:$0x3] %vm5692, %v5646
      %5776 = vst.msk [vmem:[%s350 + $0xa6] sm:$0x3] %vm5692, %v5647
      %5777 = vst.msk [vmem:[%s350 + $0xa8] sm:$0x3] %vm5692, %v5648
      %5778 = vst.msk [vmem:[%s350 + $0xaa] sm:$0x3] %vm5692, %v5649
      %5779 = vst.msk [vmem:[%s350 + $0xac] sm:$0x3] %vm5692, %v5650
      %5780 = vst.msk [vmem:[%s350 + $0xae] sm:$0x3] %vm5692, %v5651
      %5781 = vst.msk [vmem:[%s350 + $0xb0] sm:$0x3] %vm5692, %v5652
      %5782 = vst.msk [vmem:[%s350 + $0xb2] sm:$0x3] %vm5692, %v5653
      %5783 = vst.msk [vmem:[%s350 + $0xb4] sm:$0x3] %vm5692, %v5654
      %5784 = vst.msk [vmem:[%s350 + $0xb6] sm:$0x3] %vm5692, %v5655
      %5785 = vst.msk [vmem:[%s350 + $0xb8] sm:$0x3] %vm5692, %v5656
      %5786 = vst.msk [vmem:[%s350 + $0xba] sm:$0x3] %vm5692, %v5657
      %5787 = vst.msk [vmem:[%s350 + $0xbc] sm:$0x3] %vm5692, %v5658
      %5788 = vst.msk [vmem:[%s350 + $0xbe] sm:$0x3] %vm5692, %v5659
      %5789 = vst.msk [vmem:[%s350 + $0xc0] sm:$0x3] %vm5692, %v5660
      %5790 = vst.msk [vmem:[%s350 + $0xc2] sm:$0x3] %vm5692, %v5661
      %5791 = vst.msk [vmem:[%s350 + $0xc4] sm:$0x3] %vm5692, %v5662
      %5792 = vst.msk [vmem:[%s350 + $0xc6] sm:$0x3] %vm5692, %v5663
      %5793 = vst.msk [vmem:[%s350 + $0xc8] sm:$0x3] %vm5692, %v5664
      %5794 = vst.msk [vmem:[%s350 + $0xca] sm:$0x3] %vm5692, %v5665
      %5795 = vst.msk [vmem:[%s350 + $0xcc] sm:$0x3] %vm5692, %v5666
      %5796 = vst.msk [vmem:[%s350 + $0xce] sm:$0x3] %vm5692, %v5667
      %5797 = vst.msk [vmem:[%s350 + $0xd0] sm:$0x3] %vm5692, %v5668
      %5798 = vst.msk [vmem:[%s350 + $0xd2] sm:$0x3] %vm5692, %v5669
      %5799 = vst.msk [vmem:[%s350 + $0xd4] sm:$0x3] %vm5692, %v5670
      %5800 = vst.msk [vmem:[%s350 + $0xd6] sm:$0x3] %vm5692, %v5671
      %5801 = vst.msk [vmem:[%s350 + $0xd8] sm:$0x3] %vm5692, %v5672
      %5802 = vst.msk [vmem:[%s350 + $0xda] sm:$0x3] %vm5692, %v5673
      %5803 = vst.msk [vmem:[%s350 + $0xdc] sm:$0x3] %vm5692, %v5674
      %5804 = vst.msk [vmem:[%s350 + $0xde] sm:$0x3] %vm5692, %v5675
      %5805 = vst.msk [vmem:[%s350 + $0xe0] sm:$0x3] %vm5692, %v5676
      %5806 = vst.msk [vmem:[%s350 + $0xe2] sm:$0x3] %vm5692, %v5677
      %5807 = vst.msk [vmem:[%s350 + $0xe4] sm:$0x3] %vm5692, %v5678
      %5808 = vst.msk [vmem:[%s350 + $0xe6] sm:$0x3] %vm5692, %v5679
      %5809 = vst.msk [vmem:[%s350 + $0xe8] sm:$0x3] %vm5692, %v5680
      %5810 = vst.msk [vmem:[%s350 + $0xea] sm:$0x3] %vm5692, %v5681
      %5811 = vst.msk [vmem:[%s350 + $0xec] sm:$0x3] %vm5692, %v5682
      %5812 = vst.msk [vmem:[%s350 + $0xee] sm:$0x3] %vm5692, %v5683
      %5813 = vst.msk [vmem:[%s350 + $0xf0] sm:$0x3] %vm5692, %v5684
      %5814 = vst.msk [vmem:[%s350 + $0xf2] sm:$0x3] %vm5692, %v5685
      %5815 = vst.msk [vmem:[%s350 + $0xf4] sm:$0x3] %vm5692, %v5686
      %5816 = vst.msk [vmem:[%s350 + $0xf6] sm:$0x3] %vm5692, %v5687
      %5817 = vst.msk [vmem:[%s350 + $0xf8] sm:$0x3] %vm5692, %v5688
      %5818 = vst.msk [vmem:[%s350 + $0xfa] sm:$0x3] %vm5692, %v5689
      %5819 = vst.msk [vmem:[%s350 + $0xfc] sm:$0x3] %vm5692, %v5690
      %5820 = vst.msk [vmem:[%s350 + $0xfe] sm:$0x3] %vm5692, %v5691
      %s5821 = smul.u32 8, %s20
      %p5822 = scmp.lt.s32.totalorder %s5821, 15
      %s5823 = scalar_select %p5822, %s5821, 15
      %s5824 = smul.addr %s5823, 16
      %s5825 = smul.addr %s5824, 2
      %s5826 = scalar_lea.vmem %s9, %s5825
      // Predicated region
      $region57: #{tpu_custom_call.1} parent=55 // pred_check
        %p5827 = pneg %p237
      $region58: #{tpu_custom_call.1} parent=55 // pred_check_branch
        %5829 = sbr.rel (%p5827) target = $region60
      $region59: #{tpu_custom_call.1} parent=55 // pred_region
        %s5830 = smul.u32 8, %s20
      $region60: #{tpu_custom_call.1} parent=55 // pred_fallthru
        _
    $region56: #{tpu_custom_call.1} parent=5 // pred_fallthru
      _
    %p5831 = scmp.le.s32.totalorder 2, %s15
    // Predicated region
    $region61: #{tpu_custom_call.1} parent=5 // pred_check
      %p5832 = pneg %p5831
    $region62: #{tpu_custom_call.1} parent=5 // pred_check_branch
      %5834 = sbr.rel (%p5832) target = $region64
    $region63: #{tpu_custom_call.1} parent=5 // pred_region
      %s5835 = ssub.s32 %s15, 2
      // Predicated region
      $region65: #{tpu_custom_call.1} parent=63 // pred_check
        %p5836 = pneg %p243
      $region66: #{tpu_custom_call.1} parent=63 // pred_check_branch
        %5838 = sbr.rel (%p5836) target = $region68
      $region67: #{tpu_custom_call.1} parent=63 // pred_region
        %s5839 = smul.u32 8, %s21
        %p5840 = scmp.lt.s32.totalorder %s5839, 15
        %s5841 = scalar_select %p5840, %s5839, 15
        %s5842 = smul.addr %s5841, 16
        %s5843 = smul.addr %s5842, 2
        %s5844 = scalar_lea.vmem %s9, %s5843
      $region68: #{tpu_custom_call.1} parent=63 // pred_fallthru
        _
    $region64: #{tpu_custom_call.1} parent=5 // pred_fallthru
      _
  $region6: #{tpu_custom_call.1} parent=0 // loop_footer
    %s19 = sadd.s32 1, %s15
  $region7: #{tpu_custom_call.1} parent=0 // loop_footer_branch
    %14 = sbr.rel target = $region3
  $region8: #{tpu_custom_call.1} parent=0 // loop_exit
    _

</llo_original>
